<compile_context>
chip_gen: v7x
topology: tpu7x:2x2x1
jax: 0.10.0
libtpu: 0.0.40
codegen_flags: <defaults>
</compile_context>

<pallas_src>
import functools
import math

import jax
import jax.numpy as jnp
from jax.experimental import pallas as pl
from jax.experimental.pallas import tpu as pltpu


def _gelu_tanh(x):
    # GELU() in the reference repo is the tanh-approximation GELU.
    # TODO(synk): switch to the exact erf form if the repo's GELU() is exact.
    c = math.sqrt(2.0 / math.pi)
    return 0.5 * x * (1.0 + jnp.tanh(c * (x + 0.044715 * x * x * x)))


def _layernorm(v, eps=1e-5):
    # Affine (gamma/beta) is folded into the following matmul's weight/bias on the host.
    mu = jnp.mean(v, axis=-1, keepdims=True)
    var = jnp.mean((v - mu) ** 2, axis=-1, keepdims=True)
    return (v - mu) * jax.lax.rsqrt(var + eps)


def transformer_decoder_kernel(
    x_ref, ctx_ref,
    qw_ref, kvw_ref, ow_ref, w1_ref, w2_ref,
    bvec_ref, fb1_ref,
    o_ref,
    x_carry,                      # VMEM scratch (Bt*L, E) f32 — residual stream across layers
    *, n_head,
):
    layer = pl.program_id(1)
    num_layers = pl.num_programs(1)

    Bt, L, E = x_ref.shape
    S, C = ctx_ref.shape[1], ctx_ref.shape[2]
    dh = E // n_head
    cdt = qw_ref.dtype            # MXU operand dtype (bf16 weights -> bf16 x bf16 MXU)

    # Load x into the f32 carry at the first layer of this batch tile.
    @pl.when(layer == 0)
    def _():
        x_carry[...] = x_ref[...].reshape(Bt * L, E).astype(jnp.float32)

    x2 = x_carry[...]                                              # (Bt*L, E) f32

    bvec = bvec_ref[0]                                             # (8, E) f32, rows 0..4 used
    bq, bk, bv, ob, fb2 = (bvec[i:i + 1, :] for i in range(5))     # each (1, E)

    # ---------------- cross-attention block on norm1(x) ----------------
    # norm1's gamma/beta and the 1/sqrt(dh) query scale are pre-folded into qw/bq.
    xn = _layernorm(x2)
    q = jnp.dot(xn.astype(cdt), qw_ref[0], preferred_element_type=jnp.float32) + bq
    ctx2 = ctx_ref[...].reshape(Bt * S, C).astype(cdt)
    kv = jnp.dot(ctx2, kvw_ref[0], preferred_element_type=jnp.float32)    # (Bt*S, 2E) K|V
    k = kv[:, :E] + bk
    v = kv[:, E:] + bv

    q3 = q.reshape(Bt, L, E).astype(cdt)
    k3 = k.reshape(Bt, S, E).astype(cdt)
    v3 = v.reshape(Bt, S, E).astype(cdt)

    # TODO(synk): replace this loop with one head-batched einsum pair ('blhd,bshd->bhls')
    # when Mosaic dot_general supports two batch dims; for now keep a single Bt batch dim
    # and fold the head-concat into the output projection (no concatenate, no per-head
    # output buffers kept live).
    attn = jnp.zeros((Bt * L, E), jnp.float32)
    for h in range(n_head):                                        # static unroll over heads
        lo, hi = h * dh, (h + 1) * dh
        s = jnp.einsum("bld,bsd->bls", q3[..., lo:hi], k3[..., lo:hi],
                       preferred_element_type=jnp.float32)         # (Bt, L, S)
        s = s - jnp.max(s, axis=-1, keepdims=True)
        p = jnp.exp(s)
        p = p * pl.reciprocal(jnp.sum(p, axis=-1, keepdims=True), approx=True)
        oh = jnp.einsum("bls,bsd->bld", p.astype(cdt), v3[..., lo:hi],
                        preferred_element_type=jnp.float32)        # (Bt, L, dh)
        # head-concat folded into out-projection: o_h @ ow[h*dh:(h+1)*dh, :]
        attn = attn + jnp.dot(oh.reshape(Bt * L, dh).astype(cdt),
                              ow_ref[0, lo:hi, :],
                              preferred_element_type=jnp.float32)
    x2 = x2 + attn + ob

    # ---------------- feedforward block on norm2(x) ----------------
    # norm2's gamma/beta are pre-folded into w1/fb1.
    xn2 = _layernorm(x2)
    hdn = jnp.dot(xn2.astype(cdt), w1_ref[0],
                  preferred_element_type=jnp.float32) + fb1_ref[0]
    hdn = _gelu_tanh(hdn)
    ff = jnp.dot(hdn.astype(cdt), w2_ref[0],
                 preferred_element_type=jnp.float32) + fb2
    x2 = x2 + ff

    x_carry[...] = x2

    @pl.when(layer == num_layers - 1)
    def _():
        o_ref[...] = x_carry[...].reshape(Bt, L, E).astype(o_ref.dtype)


def _vmem_limit_bytes():
    """Per-generation VMEM budget: ~85% of physical (128 MiB v5e/v6e, 64 MiB v7x)."""
    cap = 64 * 1024 * 1024
    try:
        info = pltpu.get_tpu_info()
        cap = int(getattr(info, "vmem_capacity_bytes", cap) or cap)
    except Exception:
        pass
    return int(min(cap, 128 * 1024 * 1024) * 0.85)


def _pick_block_batch(N, L, S, E, C, F, act_bytes, w_bytes, vmem_budget):
    """Largest divisor of N whose (double-buffered) tile set + working set fits the budget;
    prefer >=2 batch grid steps (v7x megacore) when the tile is already MXU-sized."""
    def tile_bytes(bt):
        io = 2 * act_bytes * (bt * L * E + bt * S * C) + 2 * act_bytes * bt * L * E
        w = 2 * w_bytes * (E * E + C * 2 * E + E * E + E * F + F * E) + 2 * 4 * (8 * E + F)
        carry = 4 * bt * L * E
        work = 4 * (8 * bt * L * E + 4 * bt * S * E + 2 * bt * L * S + bt * L * F)
        return io + w + carry + work

    divisors = [d for d in range(1, N + 1) if N % d == 0]
    fitting = [d for d in divisors if tile_bytes(d) <= vmem_budget] or [1]
    bt = fitting[-1]
    if bt == N and len(fitting) > 1 and fitting[-2] * L >= 256:
        bt = fitting[-2]          # keep 2+ steps on the "parallel" axis for v7x megacore
    return bt


def transformer_decoder(x, context, params, n_head, *, block_batch=None,
                        weight_dtype=jnp.bfloat16):
    """params: list (one per layer) of dicts with PyTorch-convention shapes:
       qw (E,E), kw (E,C), vw (E,C), bq/bk/bv (1,E), ow (E,E), ob (1,E),
       g1/be1/g2/be2 (1,E), w1 (F,E), fb1 (1,F), w2 (E,F), fb2 (1,E)."""
    N, L, E = x.shape
    Nc, S, C = context.shape
    assert Nc == N, "batch mismatch between x and context"
    assert E % n_head == 0, "d_model must be divisible by n_head"
    num_layers = len(params)
    F = params[0]["w1"].shape[0]
    dh = E // n_head
    inv_s = 1.0 / math.sqrt(dh)
    wdt = weight_dtype if weight_dtype is not None else params[0]["qw"].dtype

    # -------- host-side (one-time): fold constants, fuse K|V, pre-transpose, stack, cast ---
    qw_l, kvw_l, ow_l, w1_l, w2_l, bvec_l, fb1_l = [], [], [], [], [], [], []
    for p in params:
        qw_t = p["qw"].T                                     # (E, E), rows = input features
        qw_f = (p["g1"][0][:, None] * qw_t) * inv_s          # fold norm1 gamma + 1/sqrt(dh)
        qb_f = (p["be1"] @ qw_t + p["bq"]) * inv_s           # fold norm1 beta  + 1/sqrt(dh)
        kvw = jnp.concatenate([p["kw"].T, p["vw"].T], axis=1)        # (C, 2E) fused K|V
        w1_t = p["w1"].T                                     # (E, F)
        w1_f = p["g2"][0][:, None] * w1_t                    # fold norm2 gamma
        fb1_f = p["be2"] @ w1_t + p["fb1"]                   # fold norm2 beta
        bvec = jnp.zeros((8, E), jnp.float32)                # coalesced small biases (8-row pad)
        bvec = (bvec.at[0].set(qb_f[0]).at[1].set(p["bk"][0]).at[2].set(p["bv"][0])
                    .at[3].set(p["ob"][0]).at[4].set(p["fb2"][0]))

        qw_l.append(qw_f); kvw_l.append(kvw); ow_l.append(p["ow"].T)
        w1_l.append(w1_f); w2_l.append(p["w2"].T)
        bvec_l.append(bvec); fb1_l.append(fb1_f)

    qw = jnp.stack(qw_l).astype(wdt)                 # (Ly, E, E)
    kvw = jnp.stack(kvw_l).astype(wdt)               # (Ly, C, 2E)
    ow = jnp.stack(ow_l).astype(wdt)                 # (Ly, E, E)
    w1 = jnp.stack(w1_l).astype(wdt)                 # (Ly, E, F)
    w2 = jnp.stack(w2_l).astype(wdt)                 # (Ly, F, E)
    bvec = jnp.stack(bvec_l).astype(jnp.float32)     # (Ly, 8, E): qb|bk|bv|ob|fb2 (+3 pad rows)
    fb1 = jnp.stack(fb1_l).astype(jnp.float32)       # (Ly, 1, F)

    vmem_limit = _vmem_limit_bytes()
    if block_batch is None:
        block_batch = _pick_block_batch(
            N, L, S, E, C, F,
            act_bytes=x.dtype.itemsize,
            w_bytes=jnp.dtype(wdt).itemsize,
            vmem_budget=int(0.75 * vmem_limit))
    bt = block_batch
    assert N % bt == 0

    def batch_spec(shape):
        return pl.BlockSpec(shape, lambda b, l: (b, 0, 0))

    def layer_spec(s1, s2):
        return pl.BlockSpec((1, s1, s2), lambda b, l: (l, 0, 0))

    in_specs = [
        batch_spec((bt, L, E)),            # x
        batch_spec((bt, S, C)),            # context
        layer_spec(E, E),                  # qw  (pre-transposed, LN1 affine + scale folded)
        layer_spec(C, 2 * E),              # kvw (fused K|V, pre-transposed)
        layer_spec(E, E),                  # ow  (pre-transposed)
        layer_spec(E, F),                  # w1  (pre-transposed, LN2 affine folded)
        layer_spec(F, E),                  # w2  (pre-transposed)
        layer_spec(8, E),                  # coalesced biases: qb|bk|bv|ob|fb2
        layer_spec(1, F),                  # fb1
    ]

    call = pl.pallas_call(
        functools.partial(transformer_decoder_kernel, n_head=n_head),
        out_shape=jax.ShapeDtypeStruct((N, L, E), x.dtype),
        grid=(N // bt, num_layers),
        in_specs=in_specs,
        out_specs=batch_spec((bt, L, E)),
        scratch_shapes=[pltpu.VMEM((bt * L, E), jnp.float32)],
        compiler_params=pltpu.CompilerParams(
            dimension_semantics=("parallel", "arbitrary"),
            vmem_limit_bytes=vmem_limit,
        ),
    )
    return call(x, context, qw, kvw, ow, w1, w2, bvec, fb1)


def init_decoder_params(key, d_model, d_context, num_layers, d_ff):
    params = []
    for _ in range(num_layers):
        key, *ks = jax.random.split(key, 13)

        def u(k, shape, scale=0.1):
            return scale * jax.random.normal(k, shape, jnp.float32)

        params.append(dict(
            qw=u(ks[0], (d_model, d_model)),
            kw=u(ks[1], (d_model, d_context)),
            vw=u(ks[2], (d_model, d_context)),
            bq=u(ks[3], (1, d_model)),
            bk=u(ks[4], (1, d_model)),
            bv=u(ks[5], (1, d_model)),
            ow=u(ks[6], (d_model, d_model)),
            ob=u(ks[7], (1, d_model)),
            g1=jnp.ones((1, d_model), jnp.float32),
            be1=jnp.zeros((1, d_model), jnp.float32),
            g2=jnp.ones((1, d_model), jnp.float32),
            be2=jnp.zeros((1, d_model), jnp.float32),
            w1=u(ks[8], (d_ff, d_model)),
            fb1=u(ks[9], (1, d_ff)),
            w2=u(ks[10], (d_model, d_ff)),
            fb2=u(ks[11], (1, d_model)),
        ))
    return params


# ---------------- pure-JAX reference (same math) for a correctness check ----------------
def _ref_layer(x, ctx, p, n_head):
    def ln(v, g, b):
        mu = v.mean(-1, keepdims=True)
        var = ((v - mu) ** 2).mean(-1, keepdims=True)
        return (v - mu) / jnp.sqrt(var + 1e-5) * g + b

    xn = ln(x, p["g1"][0], p["be1"][0])
    q = xn @ p["qw"].T + p["bq"][0]
    k = ctx @ p["kw"].T + p["bk"][0]
    v = ctx @ p["vw"].T + p["bv"][0]
    N, L, E = q.shape
    S = k.shape[1]
    dh = E // n_head
    qh = q.reshape(N, L, n_head, dh)
    kh = k.reshape(N, S, n_head, dh)
    vh = v.reshape(N, S, n_head, dh)
    s = jnp.einsum("nlhd,nshd->nhls", qh, kh) / math.sqrt(dh)
    a = jax.nn.softmax(s, axis=-1)
    o = jnp.einsum("nhls,nshd->nlhd", a, vh).reshape(N, L, E)
    x = x + o @ p["ow"].T + p["ob"][0]
    xn2 = ln(x, p["g2"][0], p["be2"][0])
    h = _gelu_tanh(xn2 @ p["w1"].T + p["fb1"][0])
    return x + h @ p["w2"].T + p["fb2"][0]


def _ref_decoder(x, ctx, params, n_head):
    for p in params:
        x = _ref_layer(x, ctx, p, n_head)
    return x


if __name__ == "__main__":
    d_model, n_head, d_context, num_layers, d_ff = 32, 4, 16, 2, 64
    N, L, S = 2, 8, 8

    key = jax.random.PRNGKey(0)
    kx, kc, kp = jax.random.split(key, 3)
    x = jax.random.normal(kx, (N, L, d_model), jnp.float32)
    context = jax.random.normal(kc, (N, S, d_context), jnp.float32)
    params = init_decoder_params(kp, d_model, d_context, num_layers, d_ff)

    ref = _ref_decoder(x, context, params, n_head)

    # f32 weights: tight check (only deviation is the EUP approximate softmax reciprocal).
    out_f32 = jax.block_until_ready(
        transformer_decoder(x, context, params, n_head, weight_dtype=jnp.float32))
    assert out_f32.shape == (N, L, d_model)
    assert jnp.allclose(out_f32, ref, rtol=5e-3, atol=5e-3), "f32 mismatch vs reference"

    # bf16 weights (default / production path: bf16 x bf16 MXU, f32 accumulation).
    out_bf16 = jax.block_until_ready(transformer_decoder(x, context, params, n_head))
    assert out_bf16.shape == (N, L, d_model)
    assert jnp.allclose(out_bf16, ref, rtol=1e-1, atol=1e-1), "bf16 mismatch vs reference"

    print("KERNEL_OK")
</pallas_src>

<mosaic_0001>
module attributes {stable_mosaic.version = 11 : i64} {
  func.func @transformer_decoder_kernel(%arg0: i32, %arg1: i32, %arg2: memref<2x8x32xf32, #tpu.memory_space<vmem>>, %arg3: memref<2x8x16xf32, #tpu.memory_space<vmem>>, %arg4: memref<1x32x32xf32, #tpu.memory_space<vmem>>, %arg5: memref<1x16x64xf32, #tpu.memory_space<vmem>>, %arg6: memref<1x32x32xf32, #tpu.memory_space<vmem>>, %arg7: memref<1x32x64xf32, #tpu.memory_space<vmem>>, %arg8: memref<1x64x32xf32, #tpu.memory_space<vmem>>, %arg9: memref<1x8x32xf32, #tpu.memory_space<vmem>>, %arg10: memref<1x1x64xf32, #tpu.memory_space<vmem>>, %arg11: memref<2x8x32xf32, #tpu.memory_space<vmem>>, %arg12: memref<16x32xf32, #tpu.memory_space<vmem>>) attributes {dimension_semantics = [#tpu.dimension_semantics<parallel>, #tpu.dimension_semantics<arbitrary>], iteration_bounds = array<i64: 1, 2>, scalar_prefetch = 0 : i64, scratch_operands = 1 : i64, tpu.core_type = #tpu.core_type<tc>, window_params = [{transform_indices = @transform_0, window_bounds = array<i64: 2, 8, 32>}, {transform_indices = @transform_1, window_bounds = array<i64: 2, 8, 16>}, {transform_indices = @transform_2, window_bounds = array<i64: 1, 32, 32>}, {transform_indices = @transform_3, window_bounds = array<i64: 1, 16, 64>}, {transform_indices = @transform_4, window_bounds = array<i64: 1, 32, 32>}, {transform_indices = @transform_5, window_bounds = array<i64: 1, 32, 64>}, {transform_indices = @transform_6, window_bounds = array<i64: 1, 64, 32>}, {transform_indices = @transform_7, window_bounds = array<i64: 1, 8, 32>}, {transform_indices = @transform_8, window_bounds = array<i64: 1, 1, 64>}, {transform_indices = @transform_9, window_bounds = array<i64: 2, 8, 32>}]} {
    %c0_i32 = arith.constant 0 : i32
    %0 = arith.cmpi eq, %arg1, %c0_i32 : i32
    %1 = arith.extui %0 : i1 to i32
    %c0_i32_0 = arith.constant 0 : i32
    %2 = arith.cmpi ne, %1, %c0_i32_0 : i32
    scf.if %2 {
      %c0_73 = arith.constant 0 : index
      %c0_74 = arith.constant 0 : index
      %c0_75 = arith.constant 0 : index
      %180 = vector.load %arg2[%c0_73, %c0_74, %c0_75] : memref<2x8x32xf32, #tpu.memory_space<vmem>>, vector<2x8x32xf32>
      %181 = vector.shape_cast %180 : vector<2x8x32xf32> to vector<16x32xf32>
      %c0_76 = arith.constant 0 : index
      %c0_77 = arith.constant 0 : index
      %182 = vector.load %arg12[%c0_76, %c0_77] : memref<16x32xf32, #tpu.memory_space<vmem>>, vector<16x32xf32>
      tpu.vector_store %arg12[%c0_76, %c0_77], %181 {strides = array<i32>} : memref<16x32xf32, #tpu.memory_space<vmem>>, vector<16x32xf32>,
    } else {
    }
    %c0 = arith.constant 0 : index
    %c0_1 = arith.constant 0 : index
    %3 = vector.load %arg12[%c0, %c0_1] : memref<16x32xf32, #tpu.memory_space<vmem>>, vector<16x32xf32>
    %c0_2 = arith.constant 0 : index
    %c0_3 = arith.constant 0 : index
    %c0_4 = arith.constant 0 : index
    %4 = vector.load %arg9[%c0_2, %c0_3, %c0_4] : memref<1x8x32xf32, #tpu.memory_space<vmem>>, vector<1x8x32xf32>
    %5 = vector.shape_cast %4 : vector<1x8x32xf32> to vector<8x32xf32>
    %6 = vector.extract_strided_slice %5 {offsets = [0, 0], sizes = [1, 32], strides = [1, 1]} : vector<8x32xf32> to vector<1x32xf32>
    %7 = vector.extract_strided_slice %5 {offsets = [1, 0], sizes = [1, 32], strides = [1, 1]} : vector<8x32xf32> to vector<1x32xf32>
    %8 = vector.extract_strided_slice %5 {offsets = [2, 0], sizes = [1, 32], strides = [1, 1]} : vector<8x32xf32> to vector<1x32xf32>
    %9 = vector.extract_strided_slice %5 {offsets = [3, 0], sizes = [1, 32], strides = [1, 1]} : vector<8x32xf32> to vector<1x32xf32>
    %10 = vector.extract_strided_slice %5 {offsets = [4, 0], sizes = [1, 32], strides = [1, 1]} : vector<8x32xf32> to vector<1x32xf32>
    %cst = arith.constant dense<0.000000e+00> : vector<16xf32>
    %11 = vector.multi_reduction <add>, %3, %cst [1] : vector<16x32xf32> to vector<16xf32>
    %12 = vector.shape_cast %11 : vector<16xf32> to vector<16x1xf32>
    %cst_5 = arith.constant 3.200000e+01 : f32
    %13 = vector.broadcast %cst_5 : f32 to vector<16x1xf32>
    %14 = arith.divf %12, %13 : vector<16x1xf32>
    %15 = vector.broadcast %14 : vector<16x1xf32> to vector<16x32xf32>
    %16 = arith.subf %3, %15 : vector<16x32xf32>
    %17 = arith.mulf %16, %16 : vector<16x32xf32>
    %cst_6 = arith.constant dense<0.000000e+00> : vector<16xf32>
    %18 = vector.multi_reduction <add>, %17, %cst_6 [1] : vector<16x32xf32> to vector<16xf32>
    %19 = vector.shape_cast %18 : vector<16xf32> to vector<16x1xf32>
    %cst_7 = arith.constant 3.200000e+01 : f32
    %20 = vector.broadcast %cst_7 : f32 to vector<16x1xf32>
    %21 = arith.divf %19, %20 : vector<16x1xf32>
    %22 = vector.broadcast %14 : vector<16x1xf32> to vector<16x32xf32>
    %23 = arith.subf %3, %22 : vector<16x32xf32>
    %cst_8 = arith.constant 9.99999974E-6 : f32
    %24 = vector.broadcast %cst_8 : f32 to vector<16x1xf32>
    %25 = arith.addf %21, %24 : vector<16x1xf32>
    %26 = math.rsqrt %25 : vector<16x1xf32>
    %27 = vector.broadcast %26 : vector<16x1xf32> to vector<16x32xf32>
    %28 = arith.mulf %23, %27 : vector<16x32xf32>
    %c0_9 = arith.constant 0 : index
    %c0_10 = arith.constant 0 : index
    %c0_11 = arith.constant 0 : index
    %29 = vector.load %arg4[%c0_9, %c0_10, %c0_11] : memref<1x32x32xf32, #tpu.memory_space<vmem>>, vector<1x32x32xf32>
    %30 = vector.shape_cast %29 : vector<1x32x32xf32> to vector<32x32xf32>
    %cst_12 = arith.constant dense<0.000000e+00> : vector<16x32xf32>
    %31 = tpu.matmul %28, %30, %cst_12 {dimension_numbers = #tpu.dot_dimension_numbers<[1], [0], [0], [1], [0, 0, 1, 1], [], []>} : vector<16x32xf32>, vector<32x32xf32>, vector<16x32xf32> -> vector<16x32xf32>
    %32 = vector.broadcast %6 : vector<1x32xf32> to vector<16x32xf32>
    %33 = arith.addf %31, %32 : vector<16x32xf32>
    %c0_13 = arith.constant 0 : index
    %c0_14 = arith.constant 0 : index
    %c0_15 = arith.constant 0 : index
    %34 = vector.load %arg3[%c0_13, %c0_14, %c0_15] : memref<2x8x16xf32, #tpu.memory_space<vmem>>, vector<2x8x16xf32>
    %35 = vector.shape_cast %34 : vector<2x8x16xf32> to vector<16x16xf32>
    %c0_16 = arith.constant 0 : index
    %c0_17 = arith.constant 0 : index
    %c0_18 = arith.constant 0 : index
    %36 = vector.load %arg5[%c0_16, %c0_17, %c0_18] : memref<1x16x64xf32, #tpu.memory_space<vmem>>, vector<1x16x64xf32>
    %37 = vector.shape_cast %36 : vector<1x16x64xf32> to vector<16x64xf32>
    %cst_19 = arith.constant dense<0.000000e+00> : vector<16x64xf32>
    %38 = tpu.matmul %35, %37, %cst_19 {dimension_numbers = #tpu.dot_dimension_numbers<[1], [0], [0], [1], [0, 0, 1, 1], [], []>} : vector<16x16xf32>, vector<16x64xf32>, vector<16x64xf32> -> vector<16x64xf32>
    %39 = vector.extract_strided_slice %38 {offsets = [0, 0], sizes = [16, 32], strides = [1, 1]} : vector<16x64xf32> to vector<16x32xf32>
    %40 = vector.broadcast %7 : vector<1x32xf32> to vector<16x32xf32>
    %41 = arith.addf %39, %40 : vector<16x32xf32>
    %42 = vector.extract_strided_slice %38 {offsets = [0, 32], sizes = [16, 32], strides = [1, 1]} : vector<16x64xf32> to vector<16x32xf32>
    %43 = vector.broadcast %8 : vector<1x32xf32> to vector<16x32xf32>
    %44 = arith.addf %42, %43 : vector<16x32xf32>
    %45 = vector.shape_cast %33 : vector<16x32xf32> to vector<2x8x32xf32>
    %46 = vector.shape_cast %41 : vector<16x32xf32> to vector<2x8x32xf32>
    %47 = vector.shape_cast %44 : vector<16x32xf32> to vector<2x8x32xf32>
    %cst_20 = arith.constant 0.000000e+00 : f32
    %48 = vector.broadcast %cst_20 : f32 to vector<16x32xf32>
    %49 = vector.extract_strided_slice %45 {offsets = [0, 0, 0], sizes = [2, 8, 8], strides = [1, 1, 1]} : vector<2x8x32xf32> to vector<2x8x8xf32>
    %50 = vector.extract_strided_slice %46 {offsets = [0, 0, 0], sizes = [2, 8, 8], strides = [1, 1, 1]} : vector<2x8x32xf32> to vector<2x8x8xf32>
    "tpu.trace_start"() <{level = 10 : i32, message = "bld,bsd->bls"}> : () -> ()
    %cst_21 = arith.constant dense<0.000000e+00> : vector<2x8x8xf32>
    %51 = tpu.matmul %49, %50, %cst_21 {dimension_numbers = #tpu.dot_dimension_numbers<[2], [2], [1], [1], [0, 0, 0, 1, 1, 1], [0], [0]>} : vector<2x8x8xf32>, vector<2x8x8xf32>, vector<2x8x8xf32> -> vector<2x8x8xf32>
    "tpu.trace_stop"() : () -> ()
    %cst_22 = arith.constant dense<0xFF800000> : vector<2x8xf32>
    %52 = vector.multi_reduction <maximumf>, %51, %cst_22 [2] : vector<2x8x8xf32> to vector<2x8xf32>
    %53 = vector.shape_cast %52 : vector<2x8xf32> to vector<2x8x1xf32>
    %54 = vector.broadcast %53 : vector<2x8x1xf32> to vector<2x8x8xf32>
    %55 = arith.subf %51, %54 : vector<2x8x8xf32>
    %56 = math.exp %55 : vector<2x8x8xf32>
    %cst_23 = arith.constant dense<0.000000e+00> : vector<2x8xf32>
    %57 = vector.multi_reduction <add>, %56, %cst_23 [2] : vector<2x8x8xf32> to vector<2x8xf32>
    %58 = vector.shape_cast %57 : vector<2x8xf32> to vector<2x8x1xf32>
    %59 = tpu.reciprocal %58 {approx = true} : vector<2x8x1xf32> -> vector<2x8x1xf32>
    %60 = vector.broadcast %59 : vector<2x8x1xf32> to vector<2x8x8xf32>
    %61 = arith.mulf %56, %60 : vector<2x8x8xf32>
    %62 = vector.extract_strided_slice %47 {offsets = [0, 0, 0], sizes = [2, 8, 8], strides = [1, 1, 1]} : vector<2x8x32xf32> to vector<2x8x8xf32>
    "tpu.trace_start"() <{level = 10 : i32, message = "bls,bsd->bld"}> : () -> ()
    %cst_24 = arith.constant dense<0.000000e+00> : vector<2x8x8xf32>
    %63 = tpu.matmul %61, %62, %cst_24 {dimension_numbers = #tpu.dot_dimension_numbers<[2], [1], [1], [2], [0, 0, 0, 1, 1, 2], [0], [0]>} : vector<2x8x8xf32>, vector<2x8x8xf32>, vector<2x8x8xf32> -> vector<2x8x8xf32>
    "tpu.trace_stop"() : () -> ()
    %64 = vector.shape_cast %63 : vector<2x8x8xf32> to vector<16x8xf32>
    %c0_25 = arith.constant 0 : index
    %c0_26 = arith.constant 0 : index
    %c0_27 = arith.constant 0 : index
    %65 = vector.load %arg6[%c0_25, %c0_26, %c0_27] : memref<1x32x32xf32, #tpu.memory_space<vmem>>, vector<1x8x32xf32>
    %66 = vector.shape_cast %65 : vector<1x8x32xf32> to vector<8x32xf32>
    %cst_28 = arith.constant dense<0.000000e+00> : vector<16x32xf32>
    %67 = tpu.matmul %64, %66, %cst_28 {dimension_numbers = #tpu.dot_dimension_numbers<[1], [0], [0], [1], [0, 0, 1, 1], [], []>} : vector<16x8xf32>, vector<8x32xf32>, vector<16x32xf32> -> vector<16x32xf32>
    %68 = arith.addf %48, %67 : vector<16x32xf32>
    %69 = vector.extract_strided_slice %45 {offsets = [0, 0, 8], sizes = [2, 8, 8], strides = [1, 1, 1]} : vector<2x8x32xf32> to vector<2x8x8xf32>
    %70 = vector.extract_strided_slice %46 {offsets = [0, 0, 8], sizes = [2, 8, 8], strides = [1, 1, 1]} : vector<2x8x32xf32> to vector<2x8x8xf32>
    "tpu.trace_start"() <{level = 10 : i32, message = "bld,bsd->bls"}> : () -> ()
    %cst_29 = arith.constant dense<0.000000e+00> : vector<2x8x8xf32>
    %71 = tpu.matmul %69, %70, %cst_29 {dimension_numbers = #tpu.dot_dimension_numbers<[2], [2], [1], [1], [0, 0, 0, 1, 1, 1], [0], [0]>} : vector<2x8x8xf32>, vector<2x8x8xf32>, vector<2x8x8xf32> -> vector<2x8x8xf32>
    "tpu.trace_stop"() : () -> ()
    %cst_30 = arith.constant dense<0xFF800000> : vector<2x8xf32>
    %72 = vector.multi_reduction <maximumf>, %71, %cst_30 [2] : vector<2x8x8xf32> to vector<2x8xf32>
    %73 = vector.shape_cast %72 : vector<2x8xf32> to vector<2x8x1xf32>
    %74 = vector.broadcast %73 : vector<2x8x1xf32> to vector<2x8x8xf32>
    %75 = arith.subf %71, %74 : vector<2x8x8xf32>
    %76 = math.exp %75 : vector<2x8x8xf32>
    %cst_31 = arith.constant dense<0.000000e+00> : vector<2x8xf32>
    %77 = vector.multi_reduction <add>, %76, %cst_31 [2] : vector<2x8x8xf32> to vector<2x8xf32>
    %78 = vector.shape_cast %77 : vector<2x8xf32> to vector<2x8x1xf32>
    %79 = tpu.reciprocal %78 {approx = true} : vector<2x8x1xf32> -> vector<2x8x1xf32>
    %80 = vector.broadcast %79 : vector<2x8x1xf32> to vector<2x8x8xf32>
    %81 = arith.mulf %76, %80 : vector<2x8x8xf32>
    %82 = vector.extract_strided_slice %47 {offsets = [0, 0, 8], sizes = [2, 8, 8], strides = [1, 1, 1]} : vector<2x8x32xf32> to vector<2x8x8xf32>
    "tpu.trace_start"() <{level = 10 : i32, message = "bls,bsd->bld"}> : () -> ()
    %cst_32 = arith.constant dense<0.000000e+00> : vector<2x8x8xf32>
    %83 = tpu.matmul %81, %82, %cst_32 {dimension_numbers = #tpu.dot_dimension_numbers<[2], [1], [1], [2], [0, 0, 0, 1, 1, 2], [0], [0]>} : vector<2x8x8xf32>, vector<2x8x8xf32>, vector<2x8x8xf32> -> vector<2x8x8xf32>
    "tpu.trace_stop"() : () -> ()
    %84 = vector.shape_cast %83 : vector<2x8x8xf32> to vector<16x8xf32>
    %c0_33 = arith.constant 0 : index
    %c8 = arith.constant 8 : index
    %c0_34 = arith.constant 0 : index
    %85 = vector.load %arg6[%c0_33, %c8, %c0_34] : memref<1x32x32xf32, #tpu.memory_space<vmem>>, vector<1x8x32xf32>
    %86 = vector.shape_cast %85 : vector<1x8x32xf32> to vector<8x32xf32>
    %cst_35 = arith.constant dense<0.000000e+00> : vector<16x32xf32>
    %87 = tpu.matmul %84, %86, %cst_35 {dimension_numbers = #tpu.dot_dimension_numbers<[1], [0], [0], [1], [0, 0, 1, 1], [], []>} : vector<16x8xf32>, vector<8x32xf32>, vector<16x32xf32> -> vector<16x32xf32>
    %88 = arith.addf %68, %87 : vector<16x32xf32>
    %89 = vector.extract_strided_slice %45 {offsets = [0, 0, 16], sizes = [2, 8, 8], strides = [1, 1, 1]} : vector<2x8x32xf32> to vector<2x8x8xf32>
    %90 = vector.extract_strided_slice %46 {offsets = [0, 0, 16], sizes = [2, 8, 8], strides = [1, 1, 1]} : vector<2x8x32xf32> to vector<2x8x8xf32>
    "tpu.trace_start"() <{level = 10 : i32, message = "bld,bsd->bls"}> : () -> ()
    %cst_36 = arith.constant dense<0.000000e+00> : vector<2x8x8xf32>
    %91 = tpu.matmul %89, %90, %cst_36 {dimension_numbers = #tpu.dot_dimension_numbers<[2], [2], [1], [1], [0, 0, 0, 1, 1, 1], [0], [0]>} : vector<2x8x8xf32>, vector<2x8x8xf32>, vector<2x8x8xf32> -> vector<2x8x8xf32>
    "tpu.trace_stop"() : () -> ()
    %cst_37 = arith.constant dense<0xFF800000> : vector<2x8xf32>
    %92 = vector.multi_reduction <maximumf>, %91, %cst_37 [2] : vector<2x8x8xf32> to vector<2x8xf32>
    %93 = vector.shape_cast %92 : vector<2x8xf32> to vector<2x8x1xf32>
    %94 = vector.broadcast %93 : vector<2x8x1xf32> to vector<2x8x8xf32>
    %95 = arith.subf %91, %94 : vector<2x8x8xf32>
    %96 = math.exp %95 : vector<2x8x8xf32>
    %cst_38 = arith.constant dense<0.000000e+00> : vector<2x8xf32>
    %97 = vector.multi_reduction <add>, %96, %cst_38 [2] : vector<2x8x8xf32> to vector<2x8xf32>
    %98 = vector.shape_cast %97 : vector<2x8xf32> to vector<2x8x1xf32>
    %99 = tpu.reciprocal %98 {approx = true} : vector<2x8x1xf32> -> vector<2x8x1xf32>
    %100 = vector.broadcast %99 : vector<2x8x1xf32> to vector<2x8x8xf32>
    %101 = arith.mulf %96, %100 : vector<2x8x8xf32>
    %102 = vector.extract_strided_slice %47 {offsets = [0, 0, 16], sizes = [2, 8, 8], strides = [1, 1, 1]} : vector<2x8x32xf32> to vector<2x8x8xf32>
    "tpu.trace_start"() <{level = 10 : i32, message = "bls,bsd->bld"}> : () -> ()
    %cst_39 = arith.constant dense<0.000000e+00> : vector<2x8x8xf32>
    %103 = tpu.matmul %101, %102, %cst_39 {dimension_numbers = #tpu.dot_dimension_numbers<[2], [1], [1], [2], [0, 0, 0, 1, 1, 2], [0], [0]>} : vector<2x8x8xf32>, vector<2x8x8xf32>, vector<2x8x8xf32> -> vector<2x8x8xf32>
    "tpu.trace_stop"() : () -> ()
    %104 = vector.shape_cast %103 : vector<2x8x8xf32> to vector<16x8xf32>
    %c0_40 = arith.constant 0 : index
    %c16 = arith.constant 16 : index
    %c0_41 = arith.constant 0 : index
    %105 = vector.load %arg6[%c0_40, %c16, %c0_41] : memref<1x32x32xf32, #tpu.memory_space<vmem>>, vector<1x8x32xf32>
    %106 = vector.shape_cast %105 : vector<1x8x32xf32> to vector<8x32xf32>
    %cst_42 = arith.constant dense<0.000000e+00> : vector<16x32xf32>
    %107 = tpu.matmul %104, %106, %cst_42 {dimension_numbers = #tpu.dot_dimension_numbers<[1], [0], [0], [1], [0, 0, 1, 1], [], []>} : vector<16x8xf32>, vector<8x32xf32>, vector<16x32xf32> -> vector<16x32xf32>
    %108 = arith.addf %88, %107 : vector<16x32xf32>
    %109 = vector.extract_strided_slice %45 {offsets = [0, 0, 24], sizes = [2, 8, 8], strides = [1, 1, 1]} : vector<2x8x32xf32> to vector<2x8x8xf32>
    %110 = vector.extract_strided_slice %46 {offsets = [0, 0, 24], sizes = [2, 8, 8], strides = [1, 1, 1]} : vector<2x8x32xf32> to vector<2x8x8xf32>
    "tpu.trace_start"() <{level = 10 : i32, message = "bld,bsd->bls"}> : () -> ()
    %cst_43 = arith.constant dense<0.000000e+00> : vector<2x8x8xf32>
    %111 = tpu.matmul %109, %110, %cst_43 {dimension_numbers = #tpu.dot_dimension_numbers<[2], [2], [1], [1], [0, 0, 0, 1, 1, 1], [0], [0]>} : vector<2x8x8xf32>, vector<2x8x8xf32>, vector<2x8x8xf32> -> vector<2x8x8xf32>
    "tpu.trace_stop"() : () -> ()
    %cst_44 = arith.constant dense<0xFF800000> : vector<2x8xf32>
    %112 = vector.multi_reduction <maximumf>, %111, %cst_44 [2] : vector<2x8x8xf32> to vector<2x8xf32>
    %113 = vector.shape_cast %112 : vector<2x8xf32> to vector<2x8x1xf32>
    %114 = vector.broadcast %113 : vector<2x8x1xf32> to vector<2x8x8xf32>
    %115 = arith.subf %111, %114 : vector<2x8x8xf32>
    %116 = math.exp %115 : vector<2x8x8xf32>
    %cst_45 = arith.constant dense<0.000000e+00> : vector<2x8xf32>
    %117 = vector.multi_reduction <add>, %116, %cst_45 [2] : vector<2x8x8xf32> to vector<2x8xf32>
    %118 = vector.shape_cast %117 : vector<2x8xf32> to vector<2x8x1xf32>
    %119 = tpu.reciprocal %118 {approx = true} : vector<2x8x1xf32> -> vector<2x8x1xf32>
    %120 = vector.broadcast %119 : vector<2x8x1xf32> to vector<2x8x8xf32>
    %121 = arith.mulf %116, %120 : vector<2x8x8xf32>
    %122 = vector.extract_strided_slice %47 {offsets = [0, 0, 24], sizes = [2, 8, 8], strides = [1, 1, 1]} : vector<2x8x32xf32> to vector<2x8x8xf32>
    "tpu.trace_start"() <{level = 10 : i32, message = "bls,bsd->bld"}> : () -> ()
    %cst_46 = arith.constant dense<0.000000e+00> : vector<2x8x8xf32>
    %123 = tpu.matmul %121, %122, %cst_46 {dimension_numbers = #tpu.dot_dimension_numbers<[2], [1], [1], [2], [0, 0, 0, 1, 1, 2], [0], [0]>} : vector<2x8x8xf32>, vector<2x8x8xf32>, vector<2x8x8xf32> -> vector<2x8x8xf32>
    "tpu.trace_stop"() : () -> ()
    %124 = vector.shape_cast %123 : vector<2x8x8xf32> to vector<16x8xf32>
    %c0_47 = arith.constant 0 : index
    %c24 = arith.constant 24 : index
    %c0_48 = arith.constant 0 : index
    %125 = vector.load %arg6[%c0_47, %c24, %c0_48] : memref<1x32x32xf32, #tpu.memory_space<vmem>>, vector<1x8x32xf32>
    %126 = vector.shape_cast %125 : vector<1x8x32xf32> to vector<8x32xf32>
    %cst_49 = arith.constant dense<0.000000e+00> : vector<16x32xf32>
    %127 = tpu.matmul %124, %126, %cst_49 {dimension_numbers = #tpu.dot_dimension_numbers<[1], [0], [0], [1], [0, 0, 1, 1], [], []>} : vector<16x8xf32>, vector<8x32xf32>, vector<16x32xf32> -> vector<16x32xf32>
    %128 = arith.addf %108, %127 : vector<16x32xf32>
    %129 = arith.addf %3, %128 : vector<16x32xf32>
    %130 = vector.broadcast %9 : vector<1x32xf32> to vector<16x32xf32>
    %131 = arith.addf %129, %130 : vector<16x32xf32>
    %cst_50 = arith.constant dense<0.000000e+00> : vector<16xf32>
    %132 = vector.multi_reduction <add>, %131, %cst_50 [1] : vector<16x32xf32> to vector<16xf32>
    %133 = vector.shape_cast %132 : vector<16xf32> to vector<16x1xf32>
    %cst_51 = arith.constant 3.200000e+01 : f32
    %134 = vector.broadcast %cst_51 : f32 to vector<16x1xf32>
    %135 = arith.divf %133, %134 : vector<16x1xf32>
    %136 = vector.broadcast %135 : vector<16x1xf32> to vector<16x32xf32>
    %137 = arith.subf %131, %136 : vector<16x32xf32>
    %138 = arith.mulf %137, %137 : vector<16x32xf32>
    %cst_52 = arith.constant dense<0.000000e+00> : vector<16xf32>
    %139 = vector.multi_reduction <add>, %138, %cst_52 [1] : vector<16x32xf32> to vector<16xf32>
    %140 = vector.shape_cast %139 : vector<16xf32> to vector<16x1xf32>
    %cst_53 = arith.constant 3.200000e+01 : f32
    %141 = vector.broadcast %cst_53 : f32 to vector<16x1xf32>
    %142 = arith.divf %140, %141 : vector<16x1xf32>
    %143 = vector.broadcast %135 : vector<16x1xf32> to vector<16x32xf32>
    %144 = arith.subf %131, %143 : vector<16x32xf32>
    %cst_54 = arith.constant 9.99999974E-6 : f32
    %145 = vector.broadcast %cst_54 : f32 to vector<16x1xf32>
    %146 = arith.addf %142, %145 : vector<16x1xf32>
    %147 = math.rsqrt %146 : vector<16x1xf32>
    %148 = vector.broadcast %147 : vector<16x1xf32> to vector<16x32xf32>
    %149 = arith.mulf %144, %148 : vector<16x32xf32>
    %c0_55 = arith.constant 0 : index
    %c0_56 = arith.constant 0 : index
    %c0_57 = arith.constant 0 : index
    %150 = vector.load %arg7[%c0_55, %c0_56, %c0_57] : memref<1x32x64xf32, #tpu.memory_space<vmem>>, vector<1x32x64xf32>
    %151 = vector.shape_cast %150 : vector<1x32x64xf32> to vector<32x64xf32>
    %cst_58 = arith.constant dense<0.000000e+00> : vector<16x64xf32>
    %152 = tpu.matmul %149, %151, %cst_58 {dimension_numbers = #tpu.dot_dimension_numbers<[1], [0], [0], [1], [0, 0, 1, 1], [], []>} : vector<16x32xf32>, vector<32x64xf32>, vector<16x64xf32> -> vector<16x64xf32>
    %c0_59 = arith.constant 0 : index
    %c0_60 = arith.constant 0 : index
    %c0_61 = arith.constant 0 : index
    %153 = vector.load %arg10[%c0_59, %c0_60, %c0_61] : memref<1x1x64xf32, #tpu.memory_space<vmem>>, vector<1x1x64xf32>
    %154 = vector.shape_cast %153 : vector<1x1x64xf32> to vector<1x64xf32>
    %155 = vector.broadcast %154 : vector<1x64xf32> to vector<16x64xf32>
    %156 = arith.addf %152, %155 : vector<16x64xf32>
    %cst_62 = arith.constant 5.000000e-01 : f32
    %157 = vector.broadcast %cst_62 : f32 to vector<16x64xf32>
    %158 = arith.mulf %157, %156 : vector<16x64xf32>
    %cst_63 = arith.constant 4.471500e-02 : f32
    %159 = vector.broadcast %cst_63 : f32 to vector<16x64xf32>
    %160 = arith.mulf %159, %156 : vector<16x64xf32>
    %161 = arith.mulf %160, %156 : vector<16x64xf32>
    %162 = arith.mulf %161, %156 : vector<16x64xf32>
    %163 = arith.addf %156, %162 : vector<16x64xf32>
    %cst_64 = arith.constant 0.797884583 : f32
    %164 = vector.broadcast %cst_64 : f32 to vector<16x64xf32>
    %165 = arith.mulf %164, %163 : vector<16x64xf32>
    %166 = math.tanh %165 : vector<16x64xf32>
    %cst_65 = arith.constant 1.000000e+00 : f32
    %167 = vector.broadcast %cst_65 : f32 to vector<16x64xf32>
    %168 = arith.addf %167, %166 : vector<16x64xf32>
    %169 = arith.mulf %158, %168 : vector<16x64xf32>
    %c0_66 = arith.constant 0 : index
    %c0_67 = arith.constant 0 : index
    %c0_68 = arith.constant 0 : index
    %170 = vector.load %arg8[%c0_66, %c0_67, %c0_68] : memref<1x64x32xf32, #tpu.memory_space<vmem>>, vector<1x64x32xf32>
    %171 = vector.shape_cast %170 : vector<1x64x32xf32> to vector<64x32xf32>
    %cst_69 = arith.constant dense<0.000000e+00> : vector<16x32xf32>
    %172 = tpu.matmul %169, %171, %cst_69 {dimension_numbers = #tpu.dot_dimension_numbers<[1], [0], [0], [1], [0, 0, 1, 1], [], []>} : vector<16x64xf32>, vector<64x32xf32>, vector<16x32xf32> -> vector<16x32xf32>
    %173 = vector.broadcast %10 : vector<1x32xf32> to vector<16x32xf32>
    %174 = arith.addf %172, %173 : vector<16x32xf32>
    %175 = arith.addf %131, %174 : vector<16x32xf32>
    %c0_70 = arith.constant 0 : index
    %c0_71 = arith.constant 0 : index
    %176 = vector.load %arg12[%c0_70, %c0_71] : memref<16x32xf32, #tpu.memory_space<vmem>>, vector<16x32xf32>
    tpu.vector_store %arg12[%c0_70, %c0_71], %175 {strides = array<i32>} : memref<16x32xf32, #tpu.memory_space<vmem>>, vector<16x32xf32>,
    %c1_i32 = arith.constant 1 : i32
    %177 = arith.cmpi eq, %arg1, %c1_i32 : i32
    %178 = arith.extui %177 : i1 to i32
    %c0_i32_72 = arith.constant 0 : i32
    %179 = arith.cmpi ne, %178, %c0_i32_72 : i32
    scf.if %179 {
      %c0_73 = arith.constant 0 : index
      %c0_74 = arith.constant 0 : index
      %180 = vector.load %arg12[%c0_73, %c0_74] : memref<16x32xf32, #tpu.memory_space<vmem>>, vector<16x32xf32>
      %181 = vector.shape_cast %180 : vector<16x32xf32> to vector<2x8x32xf32>
      %c0_75 = arith.constant 0 : index
      %c0_76 = arith.constant 0 : index
      %c0_77 = arith.constant 0 : index
      %182 = vector.load %arg11[%c0_75, %c0_76, %c0_77] : memref<2x8x32xf32, #tpu.memory_space<vmem>>, vector<2x8x32xf32>
      tpu.vector_store %arg11[%c0_75, %c0_76, %c0_77], %181 {strides = array<i32>} : memref<2x8x32xf32, #tpu.memory_space<vmem>>, vector<2x8x32xf32>,
    } else {
    }
    return
  }
  func.func @transform_0(%arg0: i32, %arg1: i32) -> (i32, i32, i32) {
    %c0_i32 = arith.constant 0 : i32
    %c0_i32_0 = arith.constant 0 : i32
    %c0_i32_1 = arith.constant 0 : i32
    return %arg0, %c0_i32, %c0_i32_0 : i32, i32, i32
  }
  func.func @transform_1(%arg0: i32, %arg1: i32) -> (i32, i32, i32) {
    %c0_i32 = arith.constant 0 : i32
    %c0_i32_0 = arith.constant 0 : i32
    %c0_i32_1 = arith.constant 0 : i32
    return %arg0, %c0_i32, %c0_i32_0 : i32, i32, i32
  }
  func.func @transform_2(%arg0: i32, %arg1: i32) -> (i32, i32, i32) {
    %c0_i32 = arith.constant 0 : i32
    %c0_i32_0 = arith.constant 0 : i32
    %c0_i32_1 = arith.constant 0 : i32
    return %arg1, %c0_i32, %c0_i32_0 : i32, i32, i32
  }
  func.func @transform_3(%arg0: i32, %arg1: i32) -> (i32, i32, i32) {
    %c0_i32 = arith.constant 0 : i32
    %c0_i32_0 = arith.constant 0 : i32
    %c0_i32_1 = arith.constant 0 : i32
    return %arg1, %c0_i32, %c0_i32_0 : i32, i32, i32
  }
  func.func @transform_4(%arg0: i32, %arg1: i32) -> (i32, i32, i32) {
    %c0_i32 = arith.constant 0 : i32
    %c0_i32_0 = arith.constant 0 : i32
    %c0_i32_1 = arith.constant 0 : i32
    return %arg1, %c0_i32, %c0_i32_0 : i32, i32, i32
  }
  func.func @transform_5(%arg0: i32, %arg1: i32) -> (i32, i32, i32) {
    %c0_i32 = arith.constant 0 : i32
    %c0_i32_0 = arith.constant 0 : i32
    %c0_i32_1 = arith.constant 0 : i32
    return %arg1, %c0_i32, %c0_i32_0 : i32, i32, i32
  }
  func.func @transform_6(%arg0: i32, %arg1: i32) -> (i32, i32, i32) {
    %c0_i32 = arith.constant 0 : i32
    %c0_i32_0 = arith.constant 0 : i32
    %c0_i32_1 = arith.constant 0 : i32
    return %arg1, %c0_i32, %c0_i32_0 : i32, i32, i32
  }
  func.func @transform_7(%arg0: i32, %arg1: i32) -> (i32, i32, i32) {
    %c0_i32 = arith.constant 0 : i32
    %c0_i32_0 = arith.constant 0 : i32
    %c0_i32_1 = arith.constant 0 : i32
    return %arg1, %c0_i32, %c0_i32_0 : i32, i32, i32
  }
  func.func @transform_8(%arg0: i32, %arg1: i32) -> (i32, i32, i32) {
    %c0_i32 = arith.constant 0 : i32
    %c0_i32_0 = arith.constant 0 : i32
    %c0_i32_1 = arith.constant 0 : i32
    return %arg1, %c0_i32, %c0_i32_0 : i32, i32, i32
  }
  func.func @transform_9(%arg0: i32, %arg1: i32) -> (i32, i32, i32) {
    %c0_i32 = arith.constant 0 : i32
    %c0_i32_0 = arith.constant 0 : i32
    %c0_i32_1 = arith.constant 0 : i32
    return %arg0, %c0_i32, %c0_i32_0 : i32, i32, i32
  }
}

</mosaic_0001>

<llo_original>
// kernel: tpu_custom_call.1
$region0: #{tpu_custom_call.1}
  #allocation0 [shape = 'u32[]', space=smem, size = 0x4, offset = 0x4, fixed_abs, tag = 'smem constant byte address 0x4 - core index']
  #allocation1 [shape = 'u32[144,128]{1,0:T(1,128)}', space=vmem, size = 0x12000, scoped, tag = 'internal scratch']
  #allocation2 [shape = 'f32[16,32]{1,0:T(8,128)}', space=vmem, size = 0x2000, scoped, tag = 'scratch operand']
  %s0 = inlined_call_operand.hbm [shape: f32[2,8,32], index: 0, kind: input, shape index: {}]
  %s1 = inlined_call_operand.hbm [shape: f32[2,8,16], index: 1, kind: input, shape index: {}]
  %s2 = inlined_call_operand.vmem [shape: f32[2,32,32], index: 2, kind: input, shape index: {}]
  %s3 = inlined_call_operand.hbm [shape: f32[2,16,64], index: 3, kind: input, shape index: {}]
  %s4 = inlined_call_operand.vmem [shape: f32[2,32,32], index: 4, kind: input, shape index: {}]
  %s5 = inlined_call_operand.vmem [shape: f32[2,32,64], index: 5, kind: input, shape index: {}]
  %s6 = inlined_call_operand.vmem [shape: f32[2,64,32], index: 6, kind: input, shape index: {}]
  %s7 = inlined_call_operand.vmem [shape: f32[2,8,32], index: 7, kind: input, shape index: {}]
  %s8 = inlined_call_operand.vmem [shape: f32[2,1,64], index: 8, kind: input, shape index: {}]
  %s9 = inlined_call_operand.hbm [shape: f32[2,8,32], index: 9, kind: output, shape index: {}]
  %s10 = sld [smem:[#allocation0]]
  $region89: #{tpu_custom_call.1} parent=0
    _
  %s12 = ssub.s32 1, %s10
  %s13 = scalar_select 0, %s12, %s10
  $region1: #{tpu_custom_call.1} parent=0
    #allocation3 [shape = 'u8[8192]{0}', space=vmem, size = 0x2000, scoped, tag = 'input window, operand 0, single buffered']
    #allocation4 [shape = 's32[2]{0}', space=sflag, size = 0x8, scoped, tag = 'scoped memory for tpu_custom_call.1']
    #allocation5 [shape = 's32[2]{0}', space=sflag, size = 0x8, scoped, tag = 'scoped memory for tpu_custom_call.1']
    #allocation6 [shape = 'u8[8192]{0}', space=vmem, size = 0x2000, scoped, tag = 'input window, operand 1, single buffered']
    #allocation7 [shape = 's32[1]{0}', space=sflag, size = 0x4, scoped, tag = 'scoped memory for tpu_custom_call.1']
    #allocation8 [shape = 'u8[16384]{0}', space=vmem, size = 0x4000, scoped, tag = 'input window, operand 3']
    #allocation9 [shape = 'u8[8192]{0}', space=vmem, size = 0x2000, scoped, tag = 'output window, operand 0, single buffered']
    %14 = vsyncpa [#allocation4], 0
    %15 = vsyncpa [#allocation7], 0
    %16 = vsyncpa [#allocation5], 0
    loop: start=0, step=1, limit=4
    $region2: #{tpu_custom_call.1} parent=1 // loop_pre_header
      _
    $region3: #{tpu_custom_call.1} parent=1 // loop_header
      %s18 = sphi 0, %s22
      %p19 = scmp.ge.s32.totalorder %s18, 4
      %s25 = sphi 0, %s37
      %s26 = sphi 0, %s33
      %s27 = sphi 0, %s25
      %s28 = sphi 0, %s26
      %s29 = sphi 0, %s27
      %s30 = sphi 0, %s28
      %s40 = sphi 0, %s42
      %s43 = sphi 0, %s40
      %s44 = sphi 0, %s43
      %s60 = sphi 0, %s44
      %s66 = sphi 0, %s68
      %s69 = sphi 0, %s66
      %s70 = sphi 0, %s69
      %s86 = sphi 0, %s70
      %s92 = sphi 0, %s94
      %s95 = sphi 0, %s92
      %s96 = sphi 0, %s95
      %s112 = sphi 0, %s96
      %s118 = sphi 0, %s120
      %s121 = sphi 0, %s118
      %s122 = sphi 0, %s121
      %s138 = sphi 0, %s122
      %s144 = sphi 0, %s146
      %s147 = sphi 0, %s144
      %s148 = sphi 0, %s147
      %s164 = sphi 0, %s148
      %s170 = sphi 0, %s172
      %s173 = sphi 0, %s170
      %s174 = sphi 0, %s173
      %s190 = sphi 0, %s174
      %s196 = sphi 0, %s198
      %s199 = sphi 0, %s196
      %s200 = sphi 0, %s199
      %s216 = sphi 0, %s200
      %s222 = sphi 0, %s224
      %s225 = sphi 0, %s222
      %s226 = sphi 0, %s225
      %s242 = sphi 0, %s226
      %s248 = sphi 0, %s250
      %s251 = sphi 0, %s248
      %s252 = sphi 0, %s251
      %s268 = sphi 0, %s252
      %s274 = sphi 0, %s276
      %s277 = sphi 0, %s274
      %s278 = sphi 0, %s277
      %s294 = sphi 0, %s278
    $region4: #{tpu_custom_call.1} parent=1 // loop_header_branch
      %21 = sbr.rel (%p19) target = $region8
    $region5: #{tpu_custom_call.1} parent=1 // loop_body
      %s23 = ssub.s32 %s18, 1
      %s24 = ssub.s32 %s18, 2
      %s31 = sadd.s32 1, %s26
      %p32 = scmp.ge.s32.totalorder %s31, 2
      %s33 = scalar_select %p32, 0, %s31
      %s34 = sadd.s32 1, %s25
      %s35 = scalar_select %p32, %s34, %s25
      %p36 = scmp.ge.s32.totalorder %s35, 1
      %s37 = scalar_select %p36, 0, %s35
      %s38 = ssub.s32 %s25, %s37
      %p39 = scmp.eq.s32.totalorder %s38, 0
      %s41 = sadd.s32 %s40, 1
      %s42 = scalar_select %p39, %s40, %s41
      %p45 = pneg %p39
      %p46 = scmp.eq.s32.totalorder %s18, 1
      %p47 = por %p45, %p46
      %p48 = scmp.ne.s32.totalorder %s40, %s43
      %p49 = scmp.eq.s32.totalorder %s18, 0
      %p50 = por %p48, %p49
      %p51 = scmp.ne.s32.totalorder %s40, %s43
      %p52 = scmp.eq.s32.totalorder %s23, 1
      %p53 = por %p51, %p52
      %p54 = scmp.ne.s32.totalorder %s43, %s44
      %p55 = scmp.eq.s32.totalorder %s23, 0
      %p56 = por %p54, %p55
      %p57 = scmp.ne.s32.totalorder %s43, %s44
      %p58 = scmp.eq.s32.totalorder %s24, 1
      %p59 = por %p57, %p58
      %p61 = scmp.ne.s32.totalorder %s44, %s60
      %p62 = scmp.eq.s32.totalorder %s24, 0
      %p63 = por %p61, %p62
      %s64 = ssub.s32 %s25, %s37
      %p65 = scmp.eq.s32.totalorder %s64, 0
      %s67 = sadd.s32 %s66, 1
      %s68 = scalar_select %p65, %s66, %s67
      %p71 = pneg %p65
      %p72 = scmp.eq.s32.totalorder %s18, 1
      %p73 = por %p71, %p72
      %p74 = scmp.ne.s32.totalorder %s66, %s69
      %p75 = scmp.eq.s32.totalorder %s18, 0
      %p76 = por %p74, %p75
      %p77 = scmp.ne.s32.totalorder %s66, %s69
      %p78 = scmp.eq.s32.totalorder %s23, 1
      %p79 = por %p77, %p78
      %p80 = scmp.ne.s32.totalorder %s69, %s70
      %p81 = scmp.eq.s32.totalorder %s23, 0
      %p82 = por %p80, %p81
      %p83 = scmp.ne.s32.totalorder %s69, %s70
      %p84 = scmp.eq.s32.totalorder %s24, 1
      %p85 = por %p83, %p84
      %p87 = scmp.ne.s32.totalorder %s70, %s86
      %p88 = scmp.eq.s32.totalorder %s24, 0
      %p89 = por %p87, %p88
      %s90 = ssub.s32 %s26, %s33
      %p91 = scmp.eq.s32.totalorder %s90, 0
      %s93 = sadd.s32 %s92, 1
      %s94 = scalar_select %p91, %s92, %s93
      %p97 = pneg %p91
      %p98 = scmp.eq.s32.totalorder %s18, 1
      %p99 = por %p97, %p98
      %p100 = scmp.ne.s32.totalorder %s92, %s95
      %p101 = scmp.eq.s32.totalorder %s18, 0
      %p102 = por %p100, %p101
      %p103 = scmp.ne.s32.totalorder %s92, %s95
      %p104 = scmp.eq.s32.totalorder %s23, 1
      %p105 = por %p103, %p104
      %p106 = scmp.ne.s32.totalorder %s95, %s96
      %p107 = scmp.eq.s32.totalorder %s23, 0
      %p108 = por %p106, %p107
      %p109 = scmp.ne.s32.totalorder %s95, %s96
      %p110 = scmp.eq.s32.totalorder %s24, 1
      %p111 = por %p109, %p110
      %p113 = scmp.ne.s32.totalorder %s96, %s112
      %p114 = scmp.eq.s32.totalorder %s24, 0
      %p115 = por %p113, %p114
      %s116 = ssub.s32 %s26, %s33
      %p117 = scmp.eq.s32.totalorder %s116, 0
      %s119 = sadd.s32 %s118, 1
      %s120 = scalar_select %p117, %s118, %s119
      %p123 = pneg %p117
      %p124 = scmp.eq.s32.totalorder %s18, 1
      %p125 = por %p123, %p124
      %p126 = scmp.ne.s32.totalorder %s118, %s121
      %p127 = scmp.eq.s32.totalorder %s18, 0
      %p128 = por %p126, %p127
      %p129 = scmp.ne.s32.totalorder %s118, %s121
      %p130 = scmp.eq.s32.totalorder %s23, 1
      %p131 = por %p129, %p130
      %p132 = scmp.ne.s32.totalorder %s121, %s122
      %p133 = scmp.eq.s32.totalorder %s23, 0
      %p134 = por %p132, %p133
      %p135 = scmp.ne.s32.totalorder %s121, %s122
      %p136 = scmp.eq.s32.totalorder %s24, 1
      %p137 = por %p135, %p136
      %p139 = scmp.ne.s32.totalorder %s122, %s138
      %p140 = scmp.eq.s32.totalorder %s24, 0
      %p141 = por %p139, %p140
      %s142 = ssub.s32 %s26, %s33
      %p143 = scmp.eq.s32.totalorder %s142, 0
      %s145 = sadd.s32 %s144, 1
      %s146 = scalar_select %p143, %s144, %s145
      %p149 = pneg %p143
      %p150 = scmp.eq.s32.totalorder %s18, 1
      %p151 = por %p149, %p150
      %p152 = scmp.ne.s32.totalorder %s144, %s147
      %p153 = scmp.eq.s32.totalorder %s18, 0
      %p154 = por %p152, %p153
      %p155 = scmp.ne.s32.totalorder %s144, %s147
      %p156 = scmp.eq.s32.totalorder %s23, 1
      %p157 = por %p155, %p156
      %p158 = scmp.ne.s32.totalorder %s147, %s148
      %p159 = scmp.eq.s32.totalorder %s23, 0
      %p160 = por %p158, %p159
      %p161 = scmp.ne.s32.totalorder %s147, %s148
      %p162 = scmp.eq.s32.totalorder %s24, 1
      %p163 = por %p161, %p162
      %p165 = scmp.ne.s32.totalorder %s148, %s164
      %p166 = scmp.eq.s32.totalorder %s24, 0
      %p167 = por %p165, %p166
      %s168 = ssub.s32 %s26, %s33
      %p169 = scmp.eq.s32.totalorder %s168, 0
      %s171 = sadd.s32 %s170, 1
      %s172 = scalar_select %p169, %s170, %s171
      %p175 = pneg %p169
      %p176 = scmp.eq.s32.totalorder %s18, 1
      %p177 = por %p175, %p176
      %p178 = scmp.ne.s32.totalorder %s170, %s173
      %p179 = scmp.eq.s32.totalorder %s18, 0
      %p180 = por %p178, %p179
      %p181 = scmp.ne.s32.totalorder %s170, %s173
      %p182 = scmp.eq.s32.totalorder %s23, 1
      %p183 = por %p181, %p182
      %p184 = scmp.ne.s32.totalorder %s173, %s174
      %p185 = scmp.eq.s32.totalorder %s23, 0
      %p186 = por %p184, %p185
      %p187 = scmp.ne.s32.totalorder %s173, %s174
      %p188 = scmp.eq.s32.totalorder %s24, 1
      %p189 = por %p187, %p188
      %p191 = scmp.ne.s32.totalorder %s174, %s190
      %p192 = scmp.eq.s32.totalorder %s24, 0
      %p193 = por %p191, %p192
      %s194 = ssub.s32 %s26, %s33
      %p195 = scmp.eq.s32.totalorder %s194, 0
      %s197 = sadd.s32 %s196, 1
      %s198 = scalar_select %p195, %s196, %s197
      %p201 = pneg %p195
      %p202 = scmp.eq.s32.totalorder %s18, 1
      %p203 = por %p201, %p202
      %p204 = scmp.ne.s32.totalorder %s196, %s199
      %p205 = scmp.eq.s32.totalorder %s18, 0
      %p206 = por %p204, %p205
      %p207 = scmp.ne.s32.totalorder %s196, %s199
      %p208 = scmp.eq.s32.totalorder %s23, 1
      %p209 = por %p207, %p208
      %p210 = scmp.ne.s32.totalorder %s199, %s200
      %p211 = scmp.eq.s32.totalorder %s23, 0
      %p212 = por %p210, %p211
      %p213 = scmp.ne.s32.totalorder %s199, %s200
      %p214 = scmp.eq.s32.totalorder %s24, 1
      %p215 = por %p213, %p214
      %p217 = scmp.ne.s32.totalorder %s200, %s216
      %p218 = scmp.eq.s32.totalorder %s24, 0
      %p219 = por %p217, %p218
      %s220 = ssub.s32 %s26, %s33
      %p221 = scmp.eq.s32.totalorder %s220, 0
      %s223 = sadd.s32 %s222, 1
      %s224 = scalar_select %p221, %s222, %s223
      %p227 = pneg %p221
      %p228 = scmp.eq.s32.totalorder %s18, 1
      %p229 = por %p227, %p228
      %p230 = scmp.ne.s32.totalorder %s222, %s225
      %p231 = scmp.eq.s32.totalorder %s18, 0
      %p232 = por %p230, %p231
      %p233 = scmp.ne.s32.totalorder %s222, %s225
      %p234 = scmp.eq.s32.totalorder %s23, 1
      %p235 = por %p233, %p234
      %p236 = scmp.ne.s32.totalorder %s225, %s226
      %p237 = scmp.eq.s32.totalorder %s23, 0
      %p238 = por %p236, %p237
      %p239 = scmp.ne.s32.totalorder %s225, %s226
      %p240 = scmp.eq.s32.totalorder %s24, 1
      %p241 = por %p239, %p240
      %p243 = scmp.ne.s32.totalorder %s226, %s242
      %p244 = scmp.eq.s32.totalorder %s24, 0
      %p245 = por %p243, %p244
      %s246 = ssub.s32 %s26, %s33
      %p247 = scmp.eq.s32.totalorder %s246, 0
      %s249 = sadd.s32 %s248, 1
      %s250 = scalar_select %p247, %s248, %s249
      %p253 = pneg %p247
      %p254 = scmp.eq.s32.totalorder %s18, 1
      %p255 = por %p253, %p254
      %p256 = scmp.ne.s32.totalorder %s248, %s251
      %p257 = scmp.eq.s32.totalorder %s18, 0
      %p258 = por %p256, %p257
      %p259 = scmp.ne.s32.totalorder %s248, %s251
      %p260 = scmp.eq.s32.totalorder %s23, 1
      %p261 = por %p259, %p260
      %p262 = scmp.ne.s32.totalorder %s251, %s252
      %p263 = scmp.eq.s32.totalorder %s23, 0
      %p264 = por %p262, %p263
      %p265 = scmp.ne.s32.totalorder %s251, %s252
      %p266 = scmp.eq.s32.totalorder %s24, 1
      %p267 = por %p265, %p266
      %p269 = scmp.ne.s32.totalorder %s252, %s268
      %p270 = scmp.eq.s32.totalorder %s24, 0
      %p271 = por %p269, %p270
      %s272 = ssub.s32 %s25, %s37
      %p273 = scmp.eq.s32.totalorder %s272, 0
      %s275 = sadd.s32 %s274, 1
      %s276 = scalar_select %p273, %s274, %s275
      %p279 = pneg %p273
      %p280 = scmp.eq.s32.totalorder %s18, 1
      %p281 = por %p279, %p280
      %p282 = scmp.ne.s32.totalorder %s274, %s277
      %p283 = scmp.eq.s32.totalorder %s18, 0
      %p284 = por %p282, %p283
      %p285 = scmp.ne.s32.totalorder %s274, %s277
      %p286 = scmp.eq.s32.totalorder %s23, 1
      %p287 = por %p285, %p286
      %p288 = scmp.ne.s32.totalorder %s277, %s278
      %p289 = scmp.eq.s32.totalorder %s23, 0
      %p290 = por %p288, %p289
      %p291 = scmp.ne.s32.totalorder %s277, %s278
      %p292 = scmp.eq.s32.totalorder %s24, 1
      %p293 = por %p291, %p292
      %p295 = scmp.ne.s32.totalorder %s278, %s294
      %p296 = scmp.eq.s32.totalorder %s24, 0
      %p297 = por %p295, %p296
      %p298 = scmp.le.s32.totalorder 1, %s18
      %p299 = scmp.lt.s32.totalorder %s18, 3
      %p300 = pnand %p298, %p299
      %p301 = pneg %p300
      // Predicated region
      $region9: #{tpu_custom_call.1} parent=5 // pred_check
        _
      $region10: #{tpu_custom_call.1} parent=5 // pred_check_branch
        %303 = sbr.rel (%p300) target = $region12
      $region11: #{tpu_custom_call.1} parent=5 // pred_region
        %s304 = ssub.s32 %s18, 1
        // Predicated region
        $region13: #{tpu_custom_call.1} parent=11 // pred_check
          %p305 = pneg %p56
        $region14: #{tpu_custom_call.1} parent=11 // pred_check_branch
          %307 = sbr.rel (%p305) target = $region16
        $region15: #{tpu_custom_call.1} parent=11 // pred_region
          %s308 = smul.u32 2, %s27
          %s310 = ssub.s32 256, 256
          %311 = vsyncadd [#allocation4], %s310
          %s312 = smul.addr %s308, 128
          %s313 = scalar_lea.hbm %s0, %s312
          %s314 = sshll.u32 [#allocation3], 4
          %s315 = int_to_ptr.vmem [resolvable:$true] %s314
          %320 = dma.hbm_to_vmem [thread:$0]  %s313, 256, %s315, [#allocation4], 128, 128, 8
        $region16: #{tpu_custom_call.1} parent=11 // pred_fallthru
          _
        // Predicated region
        $region17: #{tpu_custom_call.1} parent=11 // pred_check
          %p321 = pneg %p82
        $region18: #{tpu_custom_call.1} parent=11 // pred_check_branch
          %323 = sbr.rel (%p321) target = $region20
        $region19: #{tpu_custom_call.1} parent=11 // pred_region
          %s324 = smul.u32 2, %s27
          %s326 = ssub.s32 256, 256
          %327 = vsyncadd [#allocation7], %s326
          %s328 = smul.addr %s324, 128
          %s329 = scalar_lea.hbm %s1, %s328
          %s330 = sshll.u32 [#allocation6], 4
          %s331 = int_to_ptr.vmem [resolvable:$true] %s330
          %336 = dma.hbm_to_vmem [thread:$0]  %s329, 256, %s331, [#allocation7], 128, 128, 8
        $region20: #{tpu_custom_call.1} parent=11 // pred_fallthru
          _
      $region12: #{tpu_custom_call.1} parent=5 // pred_fallthru
        _
      %p337 = scmp.lt.s32.totalorder %s18, 2
      // Predicated region
      $region21: #{tpu_custom_call.1} parent=5 // pred_check
        %p338 = pneg %p337
      $region22: #{tpu_custom_call.1} parent=5 // pred_check_branch
        %340 = sbr.rel (%p338) target = $region24
      $region23: #{tpu_custom_call.1} parent=5 // pred_region
        // Predicated region
        $region25: #{tpu_custom_call.1} parent=23 // pred_check
          %p341 = pneg %p102
        $region26: #{tpu_custom_call.1} parent=23 // pred_check_branch
          %343 = sbr.rel (%p341) target = $region28
        $region27: #{tpu_custom_call.1} parent=23 // pred_region
          %p344 = scmp.lt.s32.totalorder %s26, 1
          %s345 = scalar_select %p344, %s26, 1
          %s346 = smul.addr %s345, 4
          %s347 = smul.addr %s346, 8
          %s348 = scalar_lea.vmem %s2, %s347
        $region28: #{tpu_custom_call.1} parent=23 // pred_fallthru
          _
        // Predicated region
        $region29: #{tpu_custom_call.1} parent=23 // pred_check
          %p349 = pneg %p128
        $region30: #{tpu_custom_call.1} parent=23 // pred_check_branch
          %351 = sbr.rel (%p349) target = $region32
        $region31: #{tpu_custom_call.1} parent=23 // pred_region
          %s352 = sand.u32 %s18, 1
          %s353 = scalar_lea.sflag [#allocation4], %s352
          %s354 = sand.u32 %s118, 1
          %s355 = smul.addr %s354, 16
          %s356 = scalar_lea.vmem [#allocation8], %s355
          %s358 = ssub.s32 256, 256
          %359 = vsyncadd %s353, %s358
          %s360 = smul.addr %s26, 2
          %s361 = smul.addr %s360, 128
          %s362 = scalar_lea.hbm %s3, %s361
          %s363 = sshll.u32 %s356, 4
          %s364 = int_to_ptr.vmem [resolvable:$true] %s363
          %369 = dma.hbm_to_vmem [thread:$0]  %s362, 256, %s364, %s353, 128, 128, 8
        $region32: #{tpu_custom_call.1} parent=23 // pred_fallthru
          _
        // Predicated region
        $region33: #{tpu_custom_call.1} parent=23 // pred_check
          %p370 = pneg %p154
        $region34: #{tpu_custom_call.1} parent=23 // pred_check_branch
          %372 = sbr.rel (%p370) target = $region36
        $region35: #{tpu_custom_call.1} parent=23 // pred_region
          %p373 = scmp.lt.s32.totalorder %s26, 1
          %s374 = scalar_select %p373, %s26, 1
          %s375 = smul.addr %s374, 4
          %s376 = smul.addr %s375, 8
          %s377 = scalar_lea.vmem %s4, %s376
        $region36: #{tpu_custom_call.1} parent=23 // pred_fallthru
          _
        // Predicated region
        $region37: #{tpu_custom_call.1} parent=23 // pred_check
          %p378 = pneg %p180
        $region38: #{tpu_custom_call.1} parent=23 // pred_check_branch
          %380 = sbr.rel (%p378) target = $region40
        $region39: #{tpu_custom_call.1} parent=23 // pred_region
          %p381 = scmp.lt.s32.totalorder %s26, 1
          %s382 = scalar_select %p381, %s26, 1
          %s383 = smul.addr %s382, 4
          %s384 = smul.addr %s383, 8
          %s385 = scalar_lea.vmem %s5, %s384
        $region40: #{tpu_custom_call.1} parent=23 // pred_fallthru
          _
        // Predicated region
        $region41: #{tpu_custom_call.1} parent=23 // pred_check
          %p386 = pneg %p206
        $region42: #{tpu_custom_call.1} parent=23 // pred_check_branch
          %388 = sbr.rel (%p386) target = $region44
        $region43: #{tpu_custom_call.1} parent=23 // pred_region
          %p389 = scmp.lt.s32.totalorder %s26, 1
          %s390 = scalar_select %p389, %s26, 1
          %s391 = smul.addr %s390, 8
          %s392 = smul.addr %s391, 8
          %s393 = scalar_lea.vmem %s6, %s392
        $region44: #{tpu_custom_call.1} parent=23 // pred_fallthru
          _
        // Predicated region
        $region45: #{tpu_custom_call.1} parent=23 // pred_check
          %p394 = pneg %p232
        $region46: #{tpu_custom_call.1} parent=23 // pred_check_branch
          %396 = sbr.rel (%p394) target = $region48
        $region47: #{tpu_custom_call.1} parent=23 // pred_region
          %p397 = scmp.lt.s32.totalorder %s26, 1
          %s398 = scalar_select %p397, %s26, 1
          %s399 = smul.addr %s398, 8
          %s400 = scalar_lea.vmem %s7, %s399
        $region48: #{tpu_custom_call.1} parent=23 // pred_fallthru
          _
        // Predicated region
        $region49: #{tpu_custom_call.1} parent=23 // pred_check
          %p401 = pneg %p258
        $region50: #{tpu_custom_call.1} parent=23 // pred_check_branch
          %403 = sbr.rel (%p401) target = $region52
        $region51: #{tpu_custom_call.1} parent=23 // pred_region
          %p404 = scmp.lt.s32.totalorder %s26, 1
          %s405 = scalar_select %p404, %s26, 1
          %s406 = scalar_lea.vmem %s8, %s405
        $region52: #{tpu_custom_call.1} parent=23 // pred_fallthru
          _
      $region24: #{tpu_custom_call.1} parent=5 // pred_fallthru
        _
      %p407 = scmp.le.s32.totalorder 1, %s18
      %p408 = scmp.lt.s32.totalorder %s18, 3
      %p409 = pnand %p407, %p408
      %p410 = pneg %p409
      // Predicated region
      $region53: #{tpu_custom_call.1} parent=5 // pred_check
        _
      $region54: #{tpu_custom_call.1} parent=5 // pred_check_branch
        %412 = sbr.rel (%p409) target = $region56
      $region55: #{tpu_custom_call.1} parent=5 // pred_region
        %s413 = ssub.s32 %s18, 1
        // Predicated region
        $region57: #{tpu_custom_call.1} parent=55 // pred_check
          %p414 = pneg %p56
        $region58: #{tpu_custom_call.1} parent=55 // pred_check_branch
          %416 = sbr.rel (%p414) target = $region60
        $region59: #{tpu_custom_call.1} parent=55 // pred_region
          %417 = dma.done [#allocation4], 256
        $region60: #{tpu_custom_call.1} parent=55 // pred_fallthru
          _
        // Predicated region
        $region61: #{tpu_custom_call.1} parent=55 // pred_check
          %p418 = pneg %p82
        $region62: #{tpu_custom_call.1} parent=55 // pred_check_branch
          %420 = sbr.rel (%p418) target = $region64
        $region63: #{tpu_custom_call.1} parent=55 // pred_region
          %421 = dma.done [#allocation7], 256
        $region64: #{tpu_custom_call.1} parent=55 // pred_fallthru
          _
        %s422 = sand.u32 %s23, 1
        %s423 = scalar_lea.sflag [#allocation4], %s422
        %s424 = sand.u32 %s121, 1
        %s425 = smul.addr %s424, 16
        %s426 = scalar_lea.vmem [#allocation8], %s425
        // Predicated region
        $region65: #{tpu_custom_call.1} parent=55 // pred_check
          %p427 = pneg %p134
        $region66: #{tpu_custom_call.1} parent=55 // pred_check_branch
          %429 = sbr.rel (%p427) target = $region68
        $region67: #{tpu_custom_call.1} parent=55 // pred_region
          %430 = dma.done %s423, 256
        $region68: #{tpu_custom_call.1} parent=55 // pred_fallthru
          _
        %p431 = pneg %p56
        %p432 = pneg %p53
        %p433 = pneg %p82
        %p434 = pneg %p79
        %p435 = scmp.lt.s32.totalorder %s28, 1
        %s436 = scalar_select %p435, %s28, 1
        %s437 = smul.addr %s436, 4
        %s438 = smul.addr %s437, 8
        %s439 = scalar_lea.vmem %s2, %s438
        %p440 = pneg %p108
        %p441 = pneg %p105
        %s442 = sand.u32 %s23, 1
        %s443 = scalar_lea.sflag [#allocation4], %s442
        %s444 = sand.u32 %s121, 1
        %s445 = smul.addr %s444, 16
        %s446 = scalar_lea.vmem [#allocation8], %s445
        %p447 = pneg %p134
        %p448 = pneg %p131
        %p449 = scmp.lt.s32.totalorder %s28, 1
        %s450 = scalar_select %p449, %s28, 1
        %s451 = smul.addr %s450, 4
        %s452 = smul.addr %s451, 8
        %s453 = scalar_lea.vmem %s4, %s452
        %p454 = pneg %p160
        %p455 = pneg %p157
        %p456 = scmp.lt.s32.totalorder %s28, 1
        %s457 = scalar_select %p456, %s28, 1
        %s458 = smul.addr %s457, 4
        %s459 = smul.addr %s458, 8
        %s460 = scalar_lea.vmem %s5, %s459
        %p461 = pneg %p186
        %p462 = pneg %p183
        %p463 = scmp.lt.s32.totalorder %s28, 1
        %s464 = scalar_select %p463, %s28, 1
        %s465 = smul.addr %s464, 8
        %s466 = smul.addr %s465, 8
        %s467 = scalar_lea.vmem %s6, %s466
        %p468 = pneg %p212
        %p469 = pneg %p209
        %p470 = scmp.lt.s32.totalorder %s28, 1
        %s471 = scalar_select %p470, %s28, 1
        %s472 = smul.addr %s471, 8
        %s473 = scalar_lea.vmem %s7, %s472
        %p474 = pneg %p238
        %p475 = pneg %p235
        %p476 = scmp.lt.s32.totalorder %s28, 1
        %s477 = scalar_select %p476, %s28, 1
        %s478 = scalar_lea.vmem %s8, %s477
        %p479 = pneg %p264
        %p480 = pneg %p261
        %p481 = pneg %p290
        %p482 = pneg %p287
        %s483 = smul.u32 2, %s27
        %s484 = smul.u32 2, %s27
        %p485 = scmp.lt.s32.totalorder %s28, 1
        %s486 = scalar_select %p485, %s28, 1
        %s487 = smul.addr %s486, 4
        %s488 = smul.addr %s487, 8
        %s489 = scalar_lea.vmem %s2, %s488
        %p490 = scmp.lt.s32.totalorder %s28, 1
        %s491 = scalar_select %p490, %s28, 1
        %s492 = smul.addr %s491, 4
        %s493 = smul.addr %s492, 8
        %s494 = scalar_lea.vmem %s4, %s493
        %p495 = scmp.lt.s32.totalorder %s28, 1
        %s496 = scalar_select %p495, %s28, 1
        %s497 = smul.addr %s496, 4
        %s498 = smul.addr %s497, 8
        %s499 = scalar_lea.vmem %s5, %s498
        %p500 = scmp.lt.s32.totalorder %s28, 1
        %s501 = scalar_select %p500, %s28, 1
        %s502 = smul.addr %s501, 8
        %s503 = smul.addr %s502, 8
        %s504 = scalar_lea.vmem %s6, %s503
        %p505 = scmp.lt.s32.totalorder %s28, 1
        %s506 = scalar_select %p505, %s28, 1
        %s507 = smul.addr %s506, 8
        %s508 = scalar_lea.vmem %s7, %s507
        %p509 = scmp.lt.s32.totalorder %s28, 1
        %s510 = scalar_select %p509, %s28, 1
        %s511 = scalar_lea.vmem %s8, %s510
        %s512 = smul.u32 2, %s27
        %p513 = scmp.eq.s32.totalorder %s28, 0
        // Predicated region
        $region69: #{tpu_custom_call.1} parent=55 // pred_check
          %p514 = pneg %p513
        $region70: #{tpu_custom_call.1} parent=55 // pred_check_branch
          %516 = sbr.rel (%p514) target = $region72
        $region71: #{tpu_custom_call.1} parent=55 // pred_region
          %v517 = vld [vmem:[#allocation3] sm:$0xff]
          %v518 = vld [vmem:[#allocation3 + $0x8] sm:$0xff]
          %vm519 = vcmask 261120
          %520 = vst.msk [vmem:[#allocation2] sm:$0xff] %vm519, %v517
          %521 = vst.msk [vmem:[#allocation2 + $0x8] sm:$0xff] %vm519, %v518
        $region72: #{tpu_custom_call.1} parent=55 // pred_fallthru
          _
        %v522 = vld [vmem:[#allocation2] sm:$0xff]
        %v523 = vld [vmem:[#allocation2 + $0x8] sm:$0xff]
        %v524 = vld [vmem:[%s508] sm:$0xff]
        %vm525 = vcmask 261120
        %v526 = vsel %vm525, %v522, 0.0
        %527 = vadd.xlane.f32.xlu0 %v526
        %v528 = vpop.xlane.xlu0 %527
        %v529 = vsel %vm525, %v523, 0.0
        %530 = vadd.xlane.f32.xlu0 %v529
        %v531 = vpop.xlane.xlu0 %530
        %v532 = vrcp.pop 32.0
        %v533 = vmul.f32 %v528, %v532
        %v534 = vmul.f32 %v531, %v532
        %v535 = vsub.f32 %v522, %v533
        %v536 = vsub.f32 %v523, %v534
        %v537 = vmul.f32 %v535, %v535
        %v538 = vmul.f32 %v536, %v536
        %v539 = vsel %vm525, %v537, 0.0
        %540 = vadd.xlane.f32.xlu0 %v539
        %v541 = vpop.xlane.xlu0 %540
        %v542 = vsel %vm525, %v538, 0.0
        %543 = vadd.xlane.f32.xlu0 %v542
        %v544 = vpop.xlane.xlu0 %543
        %v545 = vmul.f32 %v541, %v532
        %v546 = vmul.f32 %v544, %v532
        %v547 = vadd.f32 %v545, 1e-05
        %v548 = vadd.f32 %v546, 1e-05
        %v549 = vrsqrt.pop %v547
        %v550 = vrsqrt.pop %v548
        %v551 = vmul.f32 %v535, %v549
        %v552 = vmul.f32 %v536, %v550
        %v553 = vld [vmem:[%s489] sm:$0xff]
        %v554 = vld [vmem:[%s489 + $0x8] sm:$0xff]
        %v555 = vld [vmem:[%s489 + $0x10] sm:$0xff]
        %v556 = vld [vmem:[%s489 + $0x18] sm:$0xff]
        %v557 = vlaneseq
        %v558 = vshrl.u32 %v557, 7
        %v559 = vsub.s32 0, %v558
        %v560 = vrot.slane %v524, %v559
        %v562 = vsel %vm525, %v551, 0
        %v565 = vsel %vm525, %v552, 0
        %567 = vmatprep.subr.mxu0 0.0
        %568 = vmatpush1.msra.mxu0 %v553
        %569 = vmatprep.subr.mxu0 0.0
        %570 = vmatpush1.msra.mxu0 %v554
        %571 = vmatprep.subr.mxu0 0.0
        %572 = vmatpush1.msra.mxu0 %v555
        %573 = vmatprep.subr.mxu0 0.0
        %574 = vmatpush1.msra.mxu0 %v556
        %575 = vmatprep.subr.mxu0 0.0
        %576 = vmatpush1.msra.mxu0 0.0
        %577 = vmatprep.subr.mxu0 0.0
        %578 = vmatpush1.msra.mxu0 0.0
        %579 = vmatprep.subr.mxu0 0.0
        %580 = vmatpush1.msra.mxu0 0.0
        %581 = vmatprep.subr.mxu0 0.0
        %582 = vmatpush1.msra.mxu0 0.0
        %583 = vmatprep.subr.mxu0 0.0
        %584 = vmatpush1.msra.mxu0 0.0
        %585 = vmatprep.subr.mxu0 0.0
        %586 = vmatpush1.msra.mxu0 0.0
        %587 = vmatprep.subr.mxu0 0.0
        %588 = vmatpush1.msra.mxu0 0.0
        %589 = vmatprep.subr.mxu0 0.0
        %590 = vmatpush1.msra.mxu0 0.0
        %591 = vmatprep.subr.mxu0 0.0
        %592 = vmatpush1.msra.mxu0 0.0
        %593 = vmatprep.subr.mxu0 0.0
        %594 = vmatpush1.msra.mxu0 0.0
        %595 = vmatprep.subr.mxu0 0.0
        %596 = vmatpush1.msra.mxu0 0.0
        %597 = vmatprep.subr.mxu0 0.0
        %598 = vmatpush1.msra.mxu0 0.0
        %599 = vmatprep.subr.mxu0 0.0
        %600 = vmatpush1.msra.mxu0 0.0
        %601 = vmatprep.subr.mxu0 0.0
        %602 = vmatpush1.msra.mxu0 0.0
        %603 = vmatprep.subr.mxu0 0.0
        %604 = vmatpush1.msra.mxu0 0.0
        %605 = vmatprep.subr.mxu0 0.0
        %606 = vmatpush1.msra.mxu0 0.0
        %607 = vmatprep.subr.mxu0 0.0
        %608 = vmatpush1.msra.mxu0 0.0
        %609 = vmatprep.subr.mxu0 0.0
        %610 = vmatpush1.msra.mxu0 0.0
        %611 = vmatprep.subr.mxu0 0.0
        %612 = vmatpush1.msra.mxu0 0.0
        %613 = vmatprep.subr.mxu0 0.0
        %614 = vmatpush1.msra.mxu0 0.0
        %615 = vmatprep.subr.mxu0 0.0
        %616 = vmatpush1.msra.mxu0 0.0
        %617 = vmatprep.subr.mxu0 0.0
        %618 = vmatpush1.msra.mxu0 0.0
        %619 = vmatprep.subr.mxu0 0.0
        %620 = vmatpush1.msra.mxu0 0.0
        %621 = vmatprep.subr.mxu0 0.0
        %622 = vmatpush1.msra.mxu0 0.0
        %623 = vmatprep.subr.mxu0 0.0
        %624 = vmatpush1.msra.mxu0 0.0
        %625 = vmatprep.subr.mxu0 0.0
        %626 = vmatpush1.msra.mxu0 0.0
        %627 = vmatprep.subr.mxu0 0.0
        %628 = vmatpush1.msra.mxu0 0.0
        %629 = vmatprep.subr.mxu0 0.0
        %630 = vmatpush1.msra.mxu0 0.0
        %631 = vmatprep.mubr.f32.mxu0 0.0
        %632 = vmatmul.mubr.f32.gmra.mrb[0].mxu0 %v562
        %v633 = vpop.f32.mrb[0].mxu0
        %v634 = vadd.f32 %v560, %v633
        %v635 = vpop.f32.mrb[0].mxu0
        %636 = vmatprep.mubr.f32.mxu0 0.0
        %637 = vmatmul.mubr.f32.gmra.mrb[0].mxu0 %v565
        %v638 = vpop.f32.mrb[0].mxu0
        %v639 = vadd.f32 %v560, %v638
        %v640 = vpop.f32.mrb[0].mxu0
        %641 = vdwg.mxu0
        %v642 = vld [vmem:[#allocation6] sm:$0xff]
        %v643 = vld [vmem:[#allocation6 + $0x8] sm:$0xff]
        %v644 = vld [vmem:[%s426] sm:$0xff]
        %v645 = vld [vmem:[%s426 + $0x8] sm:$0xff]
        %vm646 = vcmask 130048
        %v648 = vsel %vm646, %v642, 0
        %v651 = vsel %vm646, %v643, 0
        %653 = vmatprep.subr.mxu0 0.0
        %654 = vmatpush1.msra.mxu0 %v644
        %655 = vmatprep.subr.mxu0 0.0
        %656 = vmatpush1.msra.mxu0 %v645
        %657 = vmatprep.subr.mxu0 0.0
        %658 = vmatpush1.msra.mxu0 0.0
        %659 = vmatprep.subr.mxu0 0.0
        %660 = vmatpush1.msra.mxu0 0.0
        %661 = vmatprep.subr.mxu0 0.0
        %662 = vmatpush1.msra.mxu0 0.0
        %663 = vmatprep.subr.mxu0 0.0
        %664 = vmatpush1.msra.mxu0 0.0
        %665 = vmatprep.subr.mxu0 0.0
        %666 = vmatpush1.msra.mxu0 0.0
        %667 = vmatprep.subr.mxu0 0.0
        %668 = vmatpush1.msra.mxu0 0.0
        %669 = vmatprep.subr.mxu0 0.0
        %670 = vmatpush1.msra.mxu0 0.0
        %671 = vmatprep.subr.mxu0 0.0
        %672 = vmatpush1.msra.mxu0 0.0
        %673 = vmatprep.subr.mxu0 0.0
        %674 = vmatpush1.msra.mxu0 0.0
        %675 = vmatprep.subr.mxu0 0.0
        %676 = vmatpush1.msra.mxu0 0.0
        %677 = vmatprep.subr.mxu0 0.0
        %678 = vmatpush1.msra.mxu0 0.0
        %679 = vmatprep.subr.mxu0 0.0
        %680 = vmatpush1.msra.mxu0 0.0
        %681 = vmatprep.subr.mxu0 0.0
        %682 = vmatpush1.msra.mxu0 0.0
        %683 = vmatprep.subr.mxu0 0.0
        %684 = vmatpush1.msra.mxu0 0.0
        %685 = vmatprep.subr.mxu0 0.0
        %686 = vmatpush1.msra.mxu0 0.0
        %687 = vmatprep.subr.mxu0 0.0
        %688 = vmatpush1.msra.mxu0 0.0
        %689 = vmatprep.subr.mxu0 0.0
        %690 = vmatpush1.msra.mxu0 0.0
        %691 = vmatprep.subr.mxu0 0.0
        %692 = vmatpush1.msra.mxu0 0.0
        %693 = vmatprep.subr.mxu0 0.0
        %694 = vmatpush1.msra.mxu0 0.0
        %695 = vmatprep.subr.mxu0 0.0
        %696 = vmatpush1.msra.mxu0 0.0
        %697 = vmatprep.subr.mxu0 0.0
        %698 = vmatpush1.msra.mxu0 0.0
        %699 = vmatprep.subr.mxu0 0.0
        %700 = vmatpush1.msra.mxu0 0.0
        %701 = vmatprep.subr.mxu0 0.0
        %702 = vmatpush1.msra.mxu0 0.0
        %703 = vmatprep.subr.mxu0 0.0
        %704 = vmatpush1.msra.mxu0 0.0
        %705 = vmatprep.subr.mxu0 0.0
        %706 = vmatpush1.msra.mxu0 0.0
        %707 = vmatprep.subr.mxu0 0.0
        %708 = vmatpush1.msra.mxu0 0.0
        %709 = vmatprep.subr.mxu0 0.0
        %710 = vmatpush1.msra.mxu0 0.0
        %711 = vmatprep.subr.mxu0 0.0
        %712 = vmatpush1.msra.mxu0 0.0
        %713 = vmatprep.subr.mxu0 0.0
        %714 = vmatpush1.msra.mxu0 0.0
        %715 = vmatprep.subr.mxu0 0.0
        %716 = vmatpush1.msra.mxu0 0.0
        %717 = vmatprep.mubr.f32.mxu0 0.0
        %718 = vmatmul.mubr.f32.gmra.mrb[0].mxu0 %v648
        %v719 = vpop.f32.mrb[0].mxu0
        %v720 = vadd.f32 0.0, %v719
        %v721 = vpop.f32.mrb[0].mxu0
        %722 = vmatprep.mubr.f32.mxu0 0.0
        %723 = vmatmul.mubr.f32.gmra.mrb[0].mxu0 %v651
        %v724 = vpop.f32.mrb[0].mxu0
        %v725 = vadd.f32 0.0, %v724
        %v726 = vpop.f32.mrb[0].mxu0
        %727 = vdwg.mxu0
        %v728 = vlaneseq
        %v729 = vshrl.u32 %v728, 7
        %v730 = vsub.s32 1, %v729
        %v731 = vrot.slane %v524, %v730
        %v732 = vadd.f32 %v720, %v731
        %v733 = vadd.f32 %v725, %v731
        %v734 = vlaneseq
        %v735 = vshrl.u32 %v734, 7
        %v736 = vsub.s32 2, %v735
        %v737 = vrot.slane %v524, %v736
        %739 = vrot.lane.b32.xlu0 %v737, 32
        %v740 = vpop.permute.xlu0 %739
        %v742 = vadd.f32 %v720, %v740
        %v743 = vadd.f32 %v725, %v740
        %vm744 = vcmask 64512
        %v746 = vsel %vm744, %v634, 0
        %v749 = vsel %vm744, %v732, 0
        %751 = vmatprep.subr.mxu0 0.0
        %752 = vmatpush1.xpose.msra.mxu0 %v749
        %753 = vmatprep.subr.mxu0 0.0
        %754 = vmatpush1.xpose.msra.mxu0 0.0
        %755 = vmatprep.subr.mxu0 0.0
        %756 = vmatpush1.xpose.msra.mxu0 0.0
        %757 = vmatprep.subr.mxu0 0.0
        %758 = vmatpush1.xpose.msra.mxu0 0.0
        %759 = vmatprep.subr.mxu0 0.0
        %760 = vmatpush1.xpose.msra.mxu0 0.0
        %761 = vmatprep.subr.mxu0 0.0
        %762 = vmatpush1.xpose.msra.mxu0 0.0
        %763 = vmatprep.subr.mxu0 0.0
        %764 = vmatpush1.xpose.msra.mxu0 0.0
        %765 = vmatprep.subr.mxu0 0.0
        %766 = vmatpush1.xpose.msra.mxu0 0.0
        %767 = vmatprep.subr.mxu0 0.0
        %768 = vmatpush1.xpose.msra.mxu0 0.0
        %769 = vmatprep.subr.mxu0 0.0
        %770 = vmatpush1.xpose.msra.mxu0 0.0
        %771 = vmatprep.subr.mxu0 0.0
        %772 = vmatpush1.xpose.msra.mxu0 0.0
        %773 = vmatprep.subr.mxu0 0.0
        %774 = vmatpush1.xpose.msra.mxu0 0.0
        %775 = vmatprep.subr.mxu0 0.0
        %776 = vmatpush1.xpose.msra.mxu0 0.0
        %777 = vmatprep.subr.mxu0 0.0
        %778 = vmatpush1.xpose.msra.mxu0 0.0
        %779 = vmatprep.subr.mxu0 0.0
        %780 = vmatpush1.xpose.msra.mxu0 0.0
        %781 = vmatprep.subr.mxu0 0.0
        %782 = vmatpush1.xpose.msra.mxu0 0.0
        %783 = vmatprep.subr.mxu0 0.0
        %784 = vmatpush1.xpose.msra.mxu0 0.0
        %785 = vmatprep.subr.mxu0 0.0
        %786 = vmatpush1.xpose.msra.mxu0 0.0
        %787 = vmatprep.subr.mxu0 0.0
        %788 = vmatpush1.xpose.msra.mxu0 0.0
        %789 = vmatprep.subr.mxu0 0.0
        %790 = vmatpush1.xpose.msra.mxu0 0.0
        %791 = vmatprep.subr.mxu0 0.0
        %792 = vmatpush1.xpose.msra.mxu0 0.0
        %793 = vmatprep.subr.mxu0 0.0
        %794 = vmatpush1.xpose.msra.mxu0 0.0
        %795 = vmatprep.subr.mxu0 0.0
        %796 = vmatpush1.xpose.msra.mxu0 0.0
        %797 = vmatprep.subr.mxu0 0.0
        %798 = vmatpush1.xpose.msra.mxu0 0.0
        %799 = vmatprep.subr.mxu0 0.0
        %800 = vmatpush1.xpose.msra.mxu0 0.0
        %801 = vmatprep.subr.mxu0 0.0
        %802 = vmatpush1.xpose.msra.mxu0 0.0
        %803 = vmatprep.subr.mxu0 0.0
        %804 = vmatpush1.xpose.msra.mxu0 0.0
        %805 = vmatprep.subr.mxu0 0.0
        %806 = vmatpush1.xpose.msra.mxu0 0.0
        %807 = vmatprep.subr.mxu0 0.0
        %808 = vmatpush1.xpose.msra.mxu0 0.0
        %809 = vmatprep.subr.mxu0 0.0
        %810 = vmatpush1.xpose.msra.mxu0 0.0
        %811 = vmatprep.subr.mxu0 0.0
        %812 = vmatpush1.xpose.msra.mxu0 0.0
        %813 = vmatprep.subr.mxu0 0.0
        %814 = vmatpush1.xpose.msra.mxu0 0.0
        %815 = vmatprep.mubr.f32.mxu0 0.0
        %816 = vmatmul.mubr.f32.gmra.mrb[0].mxu0 %v746
        %v817 = vpop.f32.mrb[0].mxu0
        %v818 = vadd.f32 0.0, %v817
        %v819 = vpop.f32.mrb[0].mxu0
        %820 = vdwg.mxu0
        %v822 = vsel %vm744, %v639, 0
        %v825 = vsel %vm744, %v733, 0
        %827 = vmatprep.subr.mxu0 0.0
        %828 = vmatpush1.xpose.msra.mxu0 %v825
        %829 = vmatprep.subr.mxu0 0.0
        %830 = vmatpush1.xpose.msra.mxu0 0.0
        %831 = vmatprep.subr.mxu0 0.0
        %832 = vmatpush1.xpose.msra.mxu0 0.0
        %833 = vmatprep.subr.mxu0 0.0
        %834 = vmatpush1.xpose.msra.mxu0 0.0
        %835 = vmatprep.subr.mxu0 0.0
        %836 = vmatpush1.xpose.msra.mxu0 0.0
        %837 = vmatprep.subr.mxu0 0.0
        %838 = vmatpush1.xpose.msra.mxu0 0.0
        %839 = vmatprep.subr.mxu0 0.0
        %840 = vmatpush1.xpose.msra.mxu0 0.0
        %841 = vmatprep.subr.mxu0 0.0
        %842 = vmatpush1.xpose.msra.mxu0 0.0
        %843 = vmatprep.subr.mxu0 0.0
        %844 = vmatpush1.xpose.msra.mxu0 0.0
        %845 = vmatprep.subr.mxu0 0.0
        %846 = vmatpush1.xpose.msra.mxu0 0.0
        %847 = vmatprep.subr.mxu0 0.0
        %848 = vmatpush1.xpose.msra.mxu0 0.0
        %849 = vmatprep.subr.mxu0 0.0
        %850 = vmatpush1.xpose.msra.mxu0 0.0
        %851 = vmatprep.subr.mxu0 0.0
        %852 = vmatpush1.xpose.msra.mxu0 0.0
        %853 = vmatprep.subr.mxu0 0.0
        %854 = vmatpush1.xpose.msra.mxu0 0.0
        %855 = vmatprep.subr.mxu0 0.0
        %856 = vmatpush1.xpose.msra.mxu0 0.0
        %857 = vmatprep.subr.mxu0 0.0
        %858 = vmatpush1.xpose.msra.mxu0 0.0
        %859 = vmatprep.subr.mxu0 0.0
        %860 = vmatpush1.xpose.msra.mxu0 0.0
        %861 = vmatprep.subr.mxu0 0.0
        %862 = vmatpush1.xpose.msra.mxu0 0.0
        %863 = vmatprep.subr.mxu0 0.0
        %864 = vmatpush1.xpose.msra.mxu0 0.0
        %865 = vmatprep.subr.mxu0 0.0
        %866 = vmatpush1.xpose.msra.mxu0 0.0
        %867 = vmatprep.subr.mxu0 0.0
        %868 = vmatpush1.xpose.msra.mxu0 0.0
        %869 = vmatprep.subr.mxu0 0.0
        %870 = vmatpush1.xpose.msra.mxu0 0.0
        %871 = vmatprep.subr.mxu0 0.0
        %872 = vmatpush1.xpose.msra.mxu0 0.0
        %873 = vmatprep.subr.mxu0 0.0
        %874 = vmatpush1.xpose.msra.mxu0 0.0
        %875 = vmatprep.subr.mxu0 0.0
        %876 = vmatpush1.xpose.msra.mxu0 0.0
        %877 = vmatprep.subr.mxu0 0.0
        %878 = vmatpush1.xpose.msra.mxu0 0.0
        %879 = vmatprep.subr.mxu0 0.0
        %880 = vmatpush1.xpose.msra.mxu0 0.0
        %881 = vmatprep.subr.mxu0 0.0
        %882 = vmatpush1.xpose.msra.mxu0 0.0
        %883 = vmatprep.subr.mxu0 0.0
        %884 = vmatpush1.xpose.msra.mxu0 0.0
        %885 = vmatprep.subr.mxu0 0.0
        %886 = vmatpush1.xpose.msra.mxu0 0.0
        %887 = vmatprep.subr.mxu0 0.0
        %888 = vmatpush1.xpose.msra.mxu0 0.0
        %889 = vmatprep.subr.mxu0 0.0
        %890 = vmatpush1.xpose.msra.mxu0 0.0
        %891 = vmatprep.mubr.f32.mxu0 0.0
        %892 = vmatmul.mubr.f32.gmra.mrb[0].mxu0 %v822
        %v893 = vpop.f32.mrb[0].mxu0
        %v894 = vadd.f32 0.0, %v893
        %v895 = vpop.f32.mrb[0].mxu0
        %896 = vdwg.mxu0
        %v897 = vsel %vm744, %v818, -inf
        %898 = vmax.xlane.f32.xlu0 %v897
        %v899 = vpop.xlane.xlu0 %898
        %v900 = vsel %vm744, %v894, -inf
        %901 = vmax.xlane.f32.xlu0 %v900
        %v902 = vpop.xlane.xlu0 %901
        %v903 = vsub.f32 %v818, %v899
        %v904 = vsub.f32 %v894, %v902
        %v905 = vmul.f32 %v903, 1.442695
        %v906 = vpow.pop %v905
        %v907 = vmul.f32 %v904, 1.442695
        %v908 = vpow.pop %v907
        %v909 = vsel %vm744, %v906, 0.0
        %910 = vadd.xlane.f32.xlu0 %v909
        %v911 = vpop.xlane.xlu0 %910
        %v912 = vsel %vm744, %v908, 0.0
        %913 = vadd.xlane.f32.xlu0 %v912
        %v914 = vpop.xlane.xlu0 %913
        %v915 = vrcp.pop %v911
        %v916 = vrcp.pop %v914
        %v917 = vmul.f32 %v906, %v915
        %v918 = vmul.f32 %v908, %v916
        %920 = vrot.lane.b32.xlu0 %v742, 96
        %v921 = vpop.permute.xlu0 %920
        %v924 = vsel %vm744, %v917, 0
        %926 = vmatprep.subr.mxu0 0.0
        %927 = vmatpush1.msra.mxu0 %v921
        %928 = vmatprep.subr.mxu0 0.0
        %929 = vmatpush1.msra.mxu0 0.0
        %930 = vmatprep.subr.mxu0 0.0
        %931 = vmatpush1.msra.mxu0 0.0
        %932 = vmatprep.subr.mxu0 0.0
        %933 = vmatpush1.msra.mxu0 0.0
        %934 = vmatprep.subr.mxu0 0.0
        %935 = vmatpush1.msra.mxu0 0.0
        %936 = vmatprep.subr.mxu0 0.0
        %937 = vmatpush1.msra.mxu0 0.0
        %938 = vmatprep.subr.mxu0 0.0
        %939 = vmatpush1.msra.mxu0 0.0
        %940 = vmatprep.subr.mxu0 0.0
        %941 = vmatpush1.msra.mxu0 0.0
        %942 = vmatprep.subr.mxu0 0.0
        %943 = vmatpush1.msra.mxu0 0.0
        %944 = vmatprep.subr.mxu0 0.0
        %945 = vmatpush1.msra.mxu0 0.0
        %946 = vmatprep.subr.mxu0 0.0
        %947 = vmatpush1.msra.mxu0 0.0
        %948 = vmatprep.subr.mxu0 0.0
        %949 = vmatpush1.msra.mxu0 0.0
        %950 = vmatprep.subr.mxu0 0.0
        %951 = vmatpush1.msra.mxu0 0.0
        %952 = vmatprep.subr.mxu0 0.0
        %953 = vmatpush1.msra.mxu0 0.0
        %954 = vmatprep.subr.mxu0 0.0
        %955 = vmatpush1.msra.mxu0 0.0
        %956 = vmatprep.subr.mxu0 0.0
        %957 = vmatpush1.msra.mxu0 0.0
        %958 = vmatprep.subr.mxu0 0.0
        %959 = vmatpush1.msra.mxu0 0.0
        %960 = vmatprep.subr.mxu0 0.0
        %961 = vmatpush1.msra.mxu0 0.0
        %962 = vmatprep.subr.mxu0 0.0
        %963 = vmatpush1.msra.mxu0 0.0
        %964 = vmatprep.subr.mxu0 0.0
        %965 = vmatpush1.msra.mxu0 0.0
        %966 = vmatprep.subr.mxu0 0.0
        %967 = vmatpush1.msra.mxu0 0.0
        %968 = vmatprep.subr.mxu0 0.0
        %969 = vmatpush1.msra.mxu0 0.0
        %970 = vmatprep.subr.mxu0 0.0
        %971 = vmatpush1.msra.mxu0 0.0
        %972 = vmatprep.subr.mxu0 0.0
        %973 = vmatpush1.msra.mxu0 0.0
        %974 = vmatprep.subr.mxu0 0.0
        %975 = vmatpush1.msra.mxu0 0.0
        %976 = vmatprep.subr.mxu0 0.0
        %977 = vmatpush1.msra.mxu0 0.0
        %978 = vmatprep.subr.mxu0 0.0
        %979 = vmatpush1.msra.mxu0 0.0
        %980 = vmatprep.subr.mxu0 0.0
        %981 = vmatpush1.msra.mxu0 0.0
        %982 = vmatprep.subr.mxu0 0.0
        %983 = vmatpush1.msra.mxu0 0.0
        %984 = vmatprep.subr.mxu0 0.0
        %985 = vmatpush1.msra.mxu0 0.0
        %986 = vmatprep.subr.mxu0 0.0
        %987 = vmatpush1.msra.mxu0 0.0
        %988 = vmatprep.subr.mxu0 0.0
        %989 = vmatpush1.msra.mxu0 0.0
        %990 = vmatprep.mubr.f32.mxu0 0.0
        %991 = vmatmul.mubr.f32.gmra.mrb[0].mxu0 %v924
        %v992 = vpop.f32.mrb[0].mxu0
        %v993 = vadd.f32 0.0, %v992
        %v994 = vpop.f32.mrb[0].mxu0
        %995 = vdwg.mxu0
        %997 = vrot.lane.b32.xlu0 %v743, 96
        %v998 = vpop.permute.xlu0 %997
        %v1001 = vsel %vm744, %v918, 0
        %1003 = vmatprep.subr.mxu0 0.0
        %1004 = vmatpush1.msra.mxu0 %v998
        %1005 = vmatprep.subr.mxu0 0.0
        %1006 = vmatpush1.msra.mxu0 0.0
        %1007 = vmatprep.subr.mxu0 0.0
        %1008 = vmatpush1.msra.mxu0 0.0
        %1009 = vmatprep.subr.mxu0 0.0
        %1010 = vmatpush1.msra.mxu0 0.0
        %1011 = vmatprep.subr.mxu0 0.0
        %1012 = vmatpush1.msra.mxu0 0.0
        %1013 = vmatprep.subr.mxu0 0.0
        %1014 = vmatpush1.msra.mxu0 0.0
        %1015 = vmatprep.subr.mxu0 0.0
        %1016 = vmatpush1.msra.mxu0 0.0
        %1017 = vmatprep.subr.mxu0 0.0
        %1018 = vmatpush1.msra.mxu0 0.0
        %1019 = vmatprep.subr.mxu0 0.0
        %1020 = vmatpush1.msra.mxu0 0.0
        %1021 = vmatprep.subr.mxu0 0.0
        %1022 = vmatpush1.msra.mxu0 0.0
        %1023 = vmatprep.subr.mxu0 0.0
        %1024 = vmatpush1.msra.mxu0 0.0
        %1025 = vmatprep.subr.mxu0 0.0
        %1026 = vmatpush1.msra.mxu0 0.0
        %1027 = vmatprep.subr.mxu0 0.0
        %1028 = vmatpush1.msra.mxu0 0.0
        %1029 = vmatprep.subr.mxu0 0.0
        %1030 = vmatpush1.msra.mxu0 0.0
        %1031 = vmatprep.subr.mxu0 0.0
        %1032 = vmatpush1.msra.mxu0 0.0
        %1033 = vmatprep.subr.mxu0 0.0
        %1034 = vmatpush1.msra.mxu0 0.0
        %1035 = vmatprep.subr.mxu0 0.0
        %1036 = vmatpush1.msra.mxu0 0.0
        %1037 = vmatprep.subr.mxu0 0.0
        %1038 = vmatpush1.msra.mxu0 0.0
        %1039 = vmatprep.subr.mxu0 0.0
        %1040 = vmatpush1.msra.mxu0 0.0
        %1041 = vmatprep.subr.mxu0 0.0
        %1042 = vmatpush1.msra.mxu0 0.0
        %1043 = vmatprep.subr.mxu0 0.0
        %1044 = vmatpush1.msra.mxu0 0.0
        %1045 = vmatprep.subr.mxu0 0.0
        %1046 = vmatpush1.msra.mxu0 0.0
        %1047 = vmatprep.subr.mxu0 0.0
        %1048 = vmatpush1.msra.mxu0 0.0
        %1049 = vmatprep.subr.mxu0 0.0
        %1050 = vmatpush1.msra.mxu0 0.0
        %1051 = vmatprep.subr.mxu0 0.0
        %1052 = vmatpush1.msra.mxu0 0.0
        %1053 = vmatprep.subr.mxu0 0.0
        %1054 = vmatpush1.msra.mxu0 0.0
        %1055 = vmatprep.subr.mxu0 0.0
        %1056 = vmatpush1.msra.mxu0 0.0
        %1057 = vmatprep.subr.mxu0 0.0
        %1058 = vmatpush1.msra.mxu0 0.0
        %1059 = vmatprep.subr.mxu0 0.0
        %1060 = vmatpush1.msra.mxu0 0.0
        %1061 = vmatprep.subr.mxu0 0.0
        %1062 = vmatpush1.msra.mxu0 0.0
        %1063 = vmatprep.subr.mxu0 0.0
        %1064 = vmatpush1.msra.mxu0 0.0
        %1065 = vmatprep.subr.mxu0 0.0
        %1066 = vmatpush1.msra.mxu0 0.0
        %1067 = vmatprep.mubr.f32.mxu0 0.0
        %1068 = vmatmul.mubr.f32.gmra.mrb[0].mxu0 %v1001
        %v1069 = vpop.f32.mrb[0].mxu0
        %v1070 = vadd.f32 0.0, %v1069
        %v1071 = vpop.f32.mrb[0].mxu0
        %1072 = vdwg.mxu0
        %v1073 = vld [vmem:[%s494] sm:$0xff]
        %1074 = vrot.lane.b32.xlu0 %v634, 120
        %v1075 = vpop.permute.xlu0 %1074
        %1076 = vrot.lane.b32.xlu0 %v732, 120
        %v1077 = vpop.permute.xlu0 %1076
        %v1078 = vsel %vm744, %v1075, 0
        %v1080 = vsel %vm744, %v1077, 0
        %1082 = vmatprep.subr.mxu0 0.0
        %1083 = vmatpush1.xpose.msra.mxu0 %v1080
        %1084 = vmatprep.subr.mxu0 0.0
        %1085 = vmatpush1.xpose.msra.mxu0 0.0
        %1086 = vmatprep.subr.mxu0 0.0
        %1087 = vmatpush1.xpose.msra.mxu0 0.0
        %1088 = vmatprep.subr.mxu0 0.0
        %1089 = vmatpush1.xpose.msra.mxu0 0.0
        %1090 = vmatprep.subr.mxu0 0.0
        %1091 = vmatpush1.xpose.msra.mxu0 0.0
        %1092 = vmatprep.subr.mxu0 0.0
        %1093 = vmatpush1.xpose.msra.mxu0 0.0
        %1094 = vmatprep.subr.mxu0 0.0
        %1095 = vmatpush1.xpose.msra.mxu0 0.0
        %1096 = vmatprep.subr.mxu0 0.0
        %1097 = vmatpush1.xpose.msra.mxu0 0.0
        %1098 = vmatprep.subr.mxu0 0.0
        %1099 = vmatpush1.xpose.msra.mxu0 0.0
        %1100 = vmatprep.subr.mxu0 0.0
        %1101 = vmatpush1.xpose.msra.mxu0 0.0
        %1102 = vmatprep.subr.mxu0 0.0
        %1103 = vmatpush1.xpose.msra.mxu0 0.0
        %1104 = vmatprep.subr.mxu0 0.0
        %1105 = vmatpush1.xpose.msra.mxu0 0.0
        %1106 = vmatprep.subr.mxu0 0.0
        %1107 = vmatpush1.xpose.msra.mxu0 0.0
        %1108 = vmatprep.subr.mxu0 0.0
        %1109 = vmatpush1.xpose.msra.mxu0 0.0
        %1110 = vmatprep.subr.mxu0 0.0
        %1111 = vmatpush1.xpose.msra.mxu0 0.0
        %1112 = vmatprep.subr.mxu0 0.0
        %1113 = vmatpush1.xpose.msra.mxu0 0.0
        %1114 = vmatprep.subr.mxu0 0.0
        %1115 = vmatpush1.xpose.msra.mxu0 0.0
        %1116 = vmatprep.subr.mxu0 0.0
        %1117 = vmatpush1.xpose.msra.mxu0 0.0
        %1118 = vmatprep.subr.mxu0 0.0
        %1119 = vmatpush1.xpose.msra.mxu0 0.0
        %1120 = vmatprep.subr.mxu0 0.0
        %1121 = vmatpush1.xpose.msra.mxu0 0.0
        %1122 = vmatprep.subr.mxu0 0.0
        %1123 = vmatpush1.xpose.msra.mxu0 0.0
        %1124 = vmatprep.subr.mxu0 0.0
        %1125 = vmatpush1.xpose.msra.mxu0 0.0
        %1126 = vmatprep.subr.mxu0 0.0
        %1127 = vmatpush1.xpose.msra.mxu0 0.0
        %1128 = vmatprep.subr.mxu0 0.0
        %1129 = vmatpush1.xpose.msra.mxu0 0.0
        %1130 = vmatprep.subr.mxu0 0.0
        %1131 = vmatpush1.xpose.msra.mxu0 0.0
        %1132 = vmatprep.subr.mxu0 0.0
        %1133 = vmatpush1.xpose.msra.mxu0 0.0
        %1134 = vmatprep.subr.mxu0 0.0
        %1135 = vmatpush1.xpose.msra.mxu0 0.0
        %1136 = vmatprep.subr.mxu0 0.0
        %1137 = vmatpush1.xpose.msra.mxu0 0.0
        %1138 = vmatprep.subr.mxu0 0.0
        %1139 = vmatpush1.xpose.msra.mxu0 0.0
        %1140 = vmatprep.subr.mxu0 0.0
        %1141 = vmatpush1.xpose.msra.mxu0 0.0
        %1142 = vmatprep.subr.mxu0 0.0
        %1143 = vmatpush1.xpose.msra.mxu0 0.0
        %1144 = vmatprep.subr.mxu0 0.0
        %1145 = vmatpush1.xpose.msra.mxu0 0.0
        %1146 = vmatprep.mubr.f32.mxu0 0.0
        %1147 = vmatmul.mubr.f32.gmra.mrb[0].mxu0 %v1078
        %v1148 = vpop.f32.mrb[0].mxu0
        %v1149 = vadd.f32 0.0, %v1148
        %v1150 = vpop.f32.mrb[0].mxu0
        %1151 = vdwg.mxu0
        %1152 = vrot.lane.b32.xlu0 %v639, 120
        %v1153 = vpop.permute.xlu0 %1152
        %1154 = vrot.lane.b32.xlu0 %v733, 120
        %v1155 = vpop.permute.xlu0 %1154
        %v1156 = vsel %vm744, %v1153, 0
        %v1158 = vsel %vm744, %v1155, 0
        %1160 = vmatprep.subr.mxu0 0.0
        %1161 = vmatpush1.xpose.msra.mxu0 %v1158
        %1162 = vmatprep.subr.mxu0 0.0
        %1163 = vmatpush1.xpose.msra.mxu0 0.0
        %1164 = vmatprep.subr.mxu0 0.0
        %1165 = vmatpush1.xpose.msra.mxu0 0.0
        %1166 = vmatprep.subr.mxu0 0.0
        %1167 = vmatpush1.xpose.msra.mxu0 0.0
        %1168 = vmatprep.subr.mxu0 0.0
        %1169 = vmatpush1.xpose.msra.mxu0 0.0
        %1170 = vmatprep.subr.mxu0 0.0
        %1171 = vmatpush1.xpose.msra.mxu0 0.0
        %1172 = vmatprep.subr.mxu0 0.0
        %1173 = vmatpush1.xpose.msra.mxu0 0.0
        %1174 = vmatprep.subr.mxu0 0.0
        %1175 = vmatpush1.xpose.msra.mxu0 0.0
        %1176 = vmatprep.subr.mxu0 0.0
        %1177 = vmatpush1.xpose.msra.mxu0 0.0
        %1178 = vmatprep.subr.mxu0 0.0
        %1179 = vmatpush1.xpose.msra.mxu0 0.0
        %1180 = vmatprep.subr.mxu0 0.0
        %1181 = vmatpush1.xpose.msra.mxu0 0.0
        %1182 = vmatprep.subr.mxu0 0.0
        %1183 = vmatpush1.xpose.msra.mxu0 0.0
        %1184 = vmatprep.subr.mxu0 0.0
        %1185 = vmatpush1.xpose.msra.mxu0 0.0
        %1186 = vmatprep.subr.mxu0 0.0
        %1187 = vmatpush1.xpose.msra.mxu0 0.0
        %1188 = vmatprep.subr.mxu0 0.0
        %1189 = vmatpush1.xpose.msra.mxu0 0.0
        %1190 = vmatprep.subr.mxu0 0.0
        %1191 = vmatpush1.xpose.msra.mxu0 0.0
        %1192 = vmatprep.subr.mxu0 0.0
        %1193 = vmatpush1.xpose.msra.mxu0 0.0
        %1194 = vmatprep.subr.mxu0 0.0
        %1195 = vmatpush1.xpose.msra.mxu0 0.0
        %1196 = vmatprep.subr.mxu0 0.0
        %1197 = vmatpush1.xpose.msra.mxu0 0.0
        %1198 = vmatprep.subr.mxu0 0.0
        %1199 = vmatpush1.xpose.msra.mxu0 0.0
        %1200 = vmatprep.subr.mxu0 0.0
        %1201 = vmatpush1.xpose.msra.mxu0 0.0
        %1202 = vmatprep.subr.mxu0 0.0
        %1203 = vmatpush1.xpose.msra.mxu0 0.0
        %1204 = vmatprep.subr.mxu0 0.0
        %1205 = vmatpush1.xpose.msra.mxu0 0.0
        %1206 = vmatprep.subr.mxu0 0.0
        %1207 = vmatpush1.xpose.msra.mxu0 0.0
        %1208 = vmatprep.subr.mxu0 0.0
        %1209 = vmatpush1.xpose.msra.mxu0 0.0
        %1210 = vmatprep.subr.mxu0 0.0
        %1211 = vmatpush1.xpose.msra.mxu0 0.0
        %1212 = vmatprep.subr.mxu0 0.0
        %1213 = vmatpush1.xpose.msra.mxu0 0.0
        %1214 = vmatprep.subr.mxu0 0.0
        %1215 = vmatpush1.xpose.msra.mxu0 0.0
        %1216 = vmatprep.subr.mxu0 0.0
        %1217 = vmatpush1.xpose.msra.mxu0 0.0
        %1218 = vmatprep.subr.mxu0 0.0
        %1219 = vmatpush1.xpose.msra.mxu0 0.0
        %1220 = vmatprep.subr.mxu0 0.0
        %1221 = vmatpush1.xpose.msra.mxu0 0.0
        %1222 = vmatprep.subr.mxu0 0.0
        %1223 = vmatpush1.xpose.msra.mxu0 0.0
        %1224 = vmatprep.mubr.f32.mxu0 0.0
        %1225 = vmatmul.mubr.f32.gmra.mrb[0].mxu0 %v1156
        %v1226 = vpop.f32.mrb[0].mxu0
        %v1227 = vadd.f32 0.0, %v1226
        %v1228 = vpop.f32.mrb[0].mxu0
        %1229 = vdwg.mxu0
        %v1230 = vsel %vm744, %v1149, -inf
        %1231 = vmax.xlane.f32.xlu0 %v1230
        %v1232 = vpop.xlane.xlu0 %1231
        %v1233 = vsel %vm744, %v1227, -inf
        %1234 = vmax.xlane.f32.xlu0 %v1233
        %v1235 = vpop.xlane.xlu0 %1234
        %v1236 = vsub.f32 %v1149, %v1232
        %v1237 = vsub.f32 %v1227, %v1235
        %v1238 = vmul.f32 %v1236, 1.442695
        %v1239 = vpow.pop %v1238
        %v1240 = vmul.f32 %v1237, 1.442695
        %v1241 = vpow.pop %v1240
        %v1242 = vsel %vm744, %v1239, 0.0
        %1243 = vadd.xlane.f32.xlu0 %v1242
        %v1244 = vpop.xlane.xlu0 %1243
        %v1245 = vsel %vm744, %v1241, 0.0
        %1246 = vadd.xlane.f32.xlu0 %v1245
        %v1247 = vpop.xlane.xlu0 %1246
        %v1248 = vrcp.pop %v1244
        %v1249 = vrcp.pop %v1247
        %v1250 = vmul.f32 %v1239, %v1248
        %v1251 = vmul.f32 %v1241, %v1249
        %1252 = vrot.lane.b32.xlu0 %v742, 88
        %v1253 = vpop.permute.xlu0 %1252
        %v1256 = vsel %vm744, %v1250, 0
        %1258 = vmatprep.subr.mxu0 0.0
        %1259 = vmatpush1.msra.mxu0 %v1253
        %1260 = vmatprep.subr.mxu0 0.0
        %1261 = vmatpush1.msra.mxu0 0.0
        %1262 = vmatprep.subr.mxu0 0.0
        %1263 = vmatpush1.msra.mxu0 0.0
        %1264 = vmatprep.subr.mxu0 0.0
        %1265 = vmatpush1.msra.mxu0 0.0
        %1266 = vmatprep.subr.mxu0 0.0
        %1267 = vmatpush1.msra.mxu0 0.0
        %1268 = vmatprep.subr.mxu0 0.0
        %1269 = vmatpush1.msra.mxu0 0.0
        %1270 = vmatprep.subr.mxu0 0.0
        %1271 = vmatpush1.msra.mxu0 0.0
        %1272 = vmatprep.subr.mxu0 0.0
        %1273 = vmatpush1.msra.mxu0 0.0
        %1274 = vmatprep.subr.mxu0 0.0
        %1275 = vmatpush1.msra.mxu0 0.0
        %1276 = vmatprep.subr.mxu0 0.0
        %1277 = vmatpush1.msra.mxu0 0.0
        %1278 = vmatprep.subr.mxu0 0.0
        %1279 = vmatpush1.msra.mxu0 0.0
        %1280 = vmatprep.subr.mxu0 0.0
        %1281 = vmatpush1.msra.mxu0 0.0
        %1282 = vmatprep.subr.mxu0 0.0
        %1283 = vmatpush1.msra.mxu0 0.0
        %1284 = vmatprep.subr.mxu0 0.0
        %1285 = vmatpush1.msra.mxu0 0.0
        %1286 = vmatprep.subr.mxu0 0.0
        %1287 = vmatpush1.msra.mxu0 0.0
        %1288 = vmatprep.subr.mxu0 0.0
        %1289 = vmatpush1.msra.mxu0 0.0
        %1290 = vmatprep.subr.mxu0 0.0
        %1291 = vmatpush1.msra.mxu0 0.0
        %1292 = vmatprep.subr.mxu0 0.0
        %1293 = vmatpush1.msra.mxu0 0.0
        %1294 = vmatprep.subr.mxu0 0.0
        %1295 = vmatpush1.msra.mxu0 0.0
        %1296 = vmatprep.subr.mxu0 0.0
        %1297 = vmatpush1.msra.mxu0 0.0
        %1298 = vmatprep.subr.mxu0 0.0
        %1299 = vmatpush1.msra.mxu0 0.0
        %1300 = vmatprep.subr.mxu0 0.0
        %1301 = vmatpush1.msra.mxu0 0.0
        %1302 = vmatprep.subr.mxu0 0.0
        %1303 = vmatpush1.msra.mxu0 0.0
        %1304 = vmatprep.subr.mxu0 0.0
        %1305 = vmatpush1.msra.mxu0 0.0
        %1306 = vmatprep.subr.mxu0 0.0
        %1307 = vmatpush1.msra.mxu0 0.0
        %1308 = vmatprep.subr.mxu0 0.0
        %1309 = vmatpush1.msra.mxu0 0.0
        %1310 = vmatprep.subr.mxu0 0.0
        %1311 = vmatpush1.msra.mxu0 0.0
        %1312 = vmatprep.subr.mxu0 0.0
        %1313 = vmatpush1.msra.mxu0 0.0
        %1314 = vmatprep.subr.mxu0 0.0
        %1315 = vmatpush1.msra.mxu0 0.0
        %1316 = vmatprep.subr.mxu0 0.0
        %1317 = vmatpush1.msra.mxu0 0.0
        %1318 = vmatprep.subr.mxu0 0.0
        %1319 = vmatpush1.msra.mxu0 0.0
        %1320 = vmatprep.subr.mxu0 0.0
        %1321 = vmatpush1.msra.mxu0 0.0
        %1322 = vmatprep.mubr.f32.mxu0 0.0
        %1323 = vmatmul.mubr.f32.gmra.mrb[0].mxu0 %v1256
        %v1324 = vpop.f32.mrb[0].mxu0
        %v1325 = vadd.f32 0.0, %v1324
        %v1326 = vpop.f32.mrb[0].mxu0
        %1327 = vdwg.mxu0
        %1328 = vrot.lane.b32.xlu0 %v743, 88
        %v1329 = vpop.permute.xlu0 %1328
        %v1332 = vsel %vm744, %v1251, 0
        %1334 = vmatprep.subr.mxu0 0.0
        %1335 = vmatpush1.msra.mxu0 %v1329
        %1336 = vmatprep.subr.mxu0 0.0
        %1337 = vmatpush1.msra.mxu0 0.0
        %1338 = vmatprep.subr.mxu0 0.0
        %1339 = vmatpush1.msra.mxu0 0.0
        %1340 = vmatprep.subr.mxu0 0.0
        %1341 = vmatpush1.msra.mxu0 0.0
        %1342 = vmatprep.subr.mxu0 0.0
        %1343 = vmatpush1.msra.mxu0 0.0
        %1344 = vmatprep.subr.mxu0 0.0
        %1345 = vmatpush1.msra.mxu0 0.0
        %1346 = vmatprep.subr.mxu0 0.0
        %1347 = vmatpush1.msra.mxu0 0.0
        %1348 = vmatprep.subr.mxu0 0.0
        %1349 = vmatpush1.msra.mxu0 0.0
        %1350 = vmatprep.subr.mxu0 0.0
        %1351 = vmatpush1.msra.mxu0 0.0
        %1352 = vmatprep.subr.mxu0 0.0
        %1353 = vmatpush1.msra.mxu0 0.0
        %1354 = vmatprep.subr.mxu0 0.0
        %1355 = vmatpush1.msra.mxu0 0.0
        %1356 = vmatprep.subr.mxu0 0.0
        %1357 = vmatpush1.msra.mxu0 0.0
        %1358 = vmatprep.subr.mxu0 0.0
        %1359 = vmatpush1.msra.mxu0 0.0
        %1360 = vmatprep.subr.mxu0 0.0
        %1361 = vmatpush1.msra.mxu0 0.0
        %1362 = vmatprep.subr.mxu0 0.0
        %1363 = vmatpush1.msra.mxu0 0.0
        %1364 = vmatprep.subr.mxu0 0.0
        %1365 = vmatpush1.msra.mxu0 0.0
        %1366 = vmatprep.subr.mxu0 0.0
        %1367 = vmatpush1.msra.mxu0 0.0
        %1368 = vmatprep.subr.mxu0 0.0
        %1369 = vmatpush1.msra.mxu0 0.0
        %1370 = vmatprep.subr.mxu0 0.0
        %1371 = vmatpush1.msra.mxu0 0.0
        %1372 = vmatprep.subr.mxu0 0.0
        %1373 = vmatpush1.msra.mxu0 0.0
        %1374 = vmatprep.subr.mxu0 0.0
        %1375 = vmatpush1.msra.mxu0 0.0
        %1376 = vmatprep.subr.mxu0 0.0
        %1377 = vmatpush1.msra.mxu0 0.0
        %1378 = vmatprep.subr.mxu0 0.0
        %1379 = vmatpush1.msra.mxu0 0.0
        %1380 = vmatprep.subr.mxu0 0.0
        %1381 = vmatpush1.msra.mxu0 0.0
        %1382 = vmatprep.subr.mxu0 0.0
        %1383 = vmatpush1.msra.mxu0 0.0
        %1384 = vmatprep.subr.mxu0 0.0
        %1385 = vmatpush1.msra.mxu0 0.0
        %1386 = vmatprep.subr.mxu0 0.0
        %1387 = vmatpush1.msra.mxu0 0.0
        %1388 = vmatprep.subr.mxu0 0.0
        %1389 = vmatpush1.msra.mxu0 0.0
        %1390 = vmatprep.subr.mxu0 0.0
        %1391 = vmatpush1.msra.mxu0 0.0
        %1392 = vmatprep.subr.mxu0 0.0
        %1393 = vmatpush1.msra.mxu0 0.0
        %1394 = vmatprep.subr.mxu0 0.0
        %1395 = vmatpush1.msra.mxu0 0.0
        %1396 = vmatprep.subr.mxu0 0.0
        %1397 = vmatpush1.msra.mxu0 0.0
        %1398 = vmatprep.mubr.f32.mxu0 0.0
        %1399 = vmatmul.mubr.f32.gmra.mrb[0].mxu0 %v1332
        %v1400 = vpop.f32.mrb[0].mxu0
        %v1401 = vadd.f32 0.0, %v1400
        %v1402 = vpop.f32.mrb[0].mxu0
        %1403 = vdwg.mxu0
        %v1404 = vld [vmem:[%s494 + $0x8] sm:$0xff]
        %v1406 = vsel %vm744, %v1325, 0
        %v1409 = vsel %vm744, %v1401, 0
        %1411 = vmatprep.subr.mxu0 0.0
        %1412 = vmatpush1.msra.mxu0 %v1404
        %1413 = vmatprep.subr.mxu0 0.0
        %1414 = vmatpush1.msra.mxu0 0.0
        %1415 = vmatprep.subr.mxu0 0.0
        %1416 = vmatpush1.msra.mxu0 0.0
        %1417 = vmatprep.subr.mxu0 0.0
        %1418 = vmatpush1.msra.mxu0 0.0
        %1419 = vmatprep.subr.mxu0 0.0
        %1420 = vmatpush1.msra.mxu0 0.0
        %1421 = vmatprep.subr.mxu0 0.0
        %1422 = vmatpush1.msra.mxu0 0.0
        %1423 = vmatprep.subr.mxu0 0.0
        %1424 = vmatpush1.msra.mxu0 0.0
        %1425 = vmatprep.subr.mxu0 0.0
        %1426 = vmatpush1.msra.mxu0 0.0
        %1427 = vmatprep.subr.mxu0 0.0
        %1428 = vmatpush1.msra.mxu0 0.0
        %1429 = vmatprep.subr.mxu0 0.0
        %1430 = vmatpush1.msra.mxu0 0.0
        %1431 = vmatprep.subr.mxu0 0.0
        %1432 = vmatpush1.msra.mxu0 0.0
        %1433 = vmatprep.subr.mxu0 0.0
        %1434 = vmatpush1.msra.mxu0 0.0
        %1435 = vmatprep.subr.mxu0 0.0
        %1436 = vmatpush1.msra.mxu0 0.0
        %1437 = vmatprep.subr.mxu0 0.0
        %1438 = vmatpush1.msra.mxu0 0.0
        %1439 = vmatprep.subr.mxu0 0.0
        %1440 = vmatpush1.msra.mxu0 0.0
        %1441 = vmatprep.subr.mxu0 0.0
        %1442 = vmatpush1.msra.mxu0 0.0
        %1443 = vmatprep.subr.mxu0 0.0
        %1444 = vmatpush1.msra.mxu0 0.0
        %1445 = vmatprep.subr.mxu0 0.0
        %1446 = vmatpush1.msra.mxu0 0.0
        %1447 = vmatprep.subr.mxu0 0.0
        %1448 = vmatpush1.msra.mxu0 0.0
        %1449 = vmatprep.subr.mxu0 0.0
        %1450 = vmatpush1.msra.mxu0 0.0
        %1451 = vmatprep.subr.mxu0 0.0
        %1452 = vmatpush1.msra.mxu0 0.0
        %1453 = vmatprep.subr.mxu0 0.0
        %1454 = vmatpush1.msra.mxu0 0.0
        %1455 = vmatprep.subr.mxu0 0.0
        %1456 = vmatpush1.msra.mxu0 0.0
        %1457 = vmatprep.subr.mxu0 0.0
        %1458 = vmatpush1.msra.mxu0 0.0
        %1459 = vmatprep.subr.mxu0 0.0
        %1460 = vmatpush1.msra.mxu0 0.0
        %1461 = vmatprep.subr.mxu0 0.0
        %1462 = vmatpush1.msra.mxu0 0.0
        %1463 = vmatprep.subr.mxu0 0.0
        %1464 = vmatpush1.msra.mxu0 0.0
        %1465 = vmatprep.subr.mxu0 0.0
        %1466 = vmatpush1.msra.mxu0 0.0
        %1467 = vmatprep.subr.mxu0 0.0
        %1468 = vmatpush1.msra.mxu0 0.0
        %1469 = vmatprep.subr.mxu0 0.0
        %1470 = vmatpush1.msra.mxu0 0.0
        %1471 = vmatprep.subr.mxu0 0.0
        %1472 = vmatpush1.msra.mxu0 0.0
        %1473 = vmatprep.subr.mxu0 0.0
        %1474 = vmatpush1.msra.mxu0 0.0
        %1475 = vmatprep.mubr.f32.mxu0 0.0
        %1476 = vmatmul.mubr.f32.gmra.mrb[0].mxu0 %v1406
        %v1477 = vpop.f32.mrb[0].mxu0
        %v1478 = vadd.f32 0.0, %v1477
        %v1479 = vpop.f32.mrb[0].mxu0
        %1480 = vmatprep.mubr.f32.mxu0 0.0
        %1481 = vmatmul.mubr.f32.gmra.mrb[0].mxu0 %v1409
        %v1482 = vpop.f32.mrb[0].mxu0
        %v1483 = vadd.f32 0.0, %v1482
        %v1484 = vpop.f32.mrb[0].mxu0
        %1485 = vdwg.mxu0
        %v1487 = vsel %vm744, %v993, 0
        %v1490 = vsel %vm744, %v1070, 0
        %1492 = vmatprep.subr.mxu0 0.0
        %1493 = vmatpush1.msra.mxu0 %v1073
        %1494 = vmatprep.subr.mxu0 0.0
        %1495 = vmatpush1.msra.mxu0 0.0
        %1496 = vmatprep.subr.mxu0 0.0
        %1497 = vmatpush1.msra.mxu0 0.0
        %1498 = vmatprep.subr.mxu0 0.0
        %1499 = vmatpush1.msra.mxu0 0.0
        %1500 = vmatprep.subr.mxu0 0.0
        %1501 = vmatpush1.msra.mxu0 0.0
        %1502 = vmatprep.subr.mxu0 0.0
        %1503 = vmatpush1.msra.mxu0 0.0
        %1504 = vmatprep.subr.mxu0 0.0
        %1505 = vmatpush1.msra.mxu0 0.0
        %1506 = vmatprep.subr.mxu0 0.0
        %1507 = vmatpush1.msra.mxu0 0.0
        %1508 = vmatprep.subr.mxu0 0.0
        %1509 = vmatpush1.msra.mxu0 0.0
        %1510 = vmatprep.subr.mxu0 0.0
        %1511 = vmatpush1.msra.mxu0 0.0
        %1512 = vmatprep.subr.mxu0 0.0
        %1513 = vmatpush1.msra.mxu0 0.0
        %1514 = vmatprep.subr.mxu0 0.0
        %1515 = vmatpush1.msra.mxu0 0.0
        %1516 = vmatprep.subr.mxu0 0.0
        %1517 = vmatpush1.msra.mxu0 0.0
        %1518 = vmatprep.subr.mxu0 0.0
        %1519 = vmatpush1.msra.mxu0 0.0
        %1520 = vmatprep.subr.mxu0 0.0
        %1521 = vmatpush1.msra.mxu0 0.0
        %1522 = vmatprep.subr.mxu0 0.0
        %1523 = vmatpush1.msra.mxu0 0.0
        %1524 = vmatprep.subr.mxu0 0.0
        %1525 = vmatpush1.msra.mxu0 0.0
        %1526 = vmatprep.subr.mxu0 0.0
        %1527 = vmatpush1.msra.mxu0 0.0
        %1528 = vmatprep.subr.mxu0 0.0
        %1529 = vmatpush1.msra.mxu0 0.0
        %1530 = vmatprep.subr.mxu0 0.0
        %1531 = vmatpush1.msra.mxu0 0.0
        %1532 = vmatprep.subr.mxu0 0.0
        %1533 = vmatpush1.msra.mxu0 0.0
        %1534 = vmatprep.subr.mxu0 0.0
        %1535 = vmatpush1.msra.mxu0 0.0
        %1536 = vmatprep.subr.mxu0 0.0
        %1537 = vmatpush1.msra.mxu0 0.0
        %1538 = vmatprep.subr.mxu0 0.0
        %1539 = vmatpush1.msra.mxu0 0.0
        %1540 = vmatprep.subr.mxu0 0.0
        %1541 = vmatpush1.msra.mxu0 0.0
        %1542 = vmatprep.subr.mxu0 0.0
        %1543 = vmatpush1.msra.mxu0 0.0
        %1544 = vmatprep.subr.mxu0 0.0
        %1545 = vmatpush1.msra.mxu0 0.0
        %1546 = vmatprep.subr.mxu0 0.0
        %1547 = vmatpush1.msra.mxu0 0.0
        %1548 = vmatprep.subr.mxu0 0.0
        %1549 = vmatpush1.msra.mxu0 0.0
        %1550 = vmatprep.subr.mxu0 0.0
        %1551 = vmatpush1.msra.mxu0 0.0
        %1552 = vmatprep.subr.mxu0 0.0
        %1553 = vmatpush1.msra.mxu0 0.0
        %1554 = vmatprep.subr.mxu0 0.0
        %1555 = vmatpush1.msra.mxu0 0.0
        %1556 = vmatprep.mubr.f32.mxu0 0.0
        %1557 = vmatmul.mubr.f32.gmra.mrb[0].mxu0 %v1487
        %v1558 = vpop.f32.mrb[0].mxu0
        %v1559 = vadd.f32 %v1478, %v1558
        %v1560 = vpop.f32.mrb[0].mxu0
        %1561 = vmatprep.mubr.f32.mxu0 0.0
        %1562 = vmatmul.mubr.f32.gmra.mrb[0].mxu0 %v1490
        %v1563 = vpop.f32.mrb[0].mxu0
        %v1564 = vadd.f32 %v1483, %v1563
        %v1565 = vpop.f32.mrb[0].mxu0
        %1566 = vdwg.mxu0
        %1567 = vrot.lane.b32.xlu0 %v634, 112
        %v1568 = vpop.permute.xlu0 %1567
        %1569 = vrot.lane.b32.xlu0 %v732, 112
        %v1570 = vpop.permute.xlu0 %1569
        %v1571 = vsel %vm744, %v1568, 0
        %v1573 = vsel %vm744, %v1570, 0
        %1575 = vmatprep.subr.mxu0 0.0
        %1576 = vmatpush1.xpose.msra.mxu0 %v1573
        %1577 = vmatprep.subr.mxu0 0.0
        %1578 = vmatpush1.xpose.msra.mxu0 0.0
        %1579 = vmatprep.subr.mxu0 0.0
        %1580 = vmatpush1.xpose.msra.mxu0 0.0
        %1581 = vmatprep.subr.mxu0 0.0
        %1582 = vmatpush1.xpose.msra.mxu0 0.0
        %1583 = vmatprep.subr.mxu0 0.0
        %1584 = vmatpush1.xpose.msra.mxu0 0.0
        %1585 = vmatprep.subr.mxu0 0.0
        %1586 = vmatpush1.xpose.msra.mxu0 0.0
        %1587 = vmatprep.subr.mxu0 0.0
        %1588 = vmatpush1.xpose.msra.mxu0 0.0
        %1589 = vmatprep.subr.mxu0 0.0
        %1590 = vmatpush1.xpose.msra.mxu0 0.0
        %1591 = vmatprep.subr.mxu0 0.0
        %1592 = vmatpush1.xpose.msra.mxu0 0.0
        %1593 = vmatprep.subr.mxu0 0.0
        %1594 = vmatpush1.xpose.msra.mxu0 0.0
        %1595 = vmatprep.subr.mxu0 0.0
        %1596 = vmatpush1.xpose.msra.mxu0 0.0
        %1597 = vmatprep.subr.mxu0 0.0
        %1598 = vmatpush1.xpose.msra.mxu0 0.0
        %1599 = vmatprep.subr.mxu0 0.0
        %1600 = vmatpush1.xpose.msra.mxu0 0.0
        %1601 = vmatprep.subr.mxu0 0.0
        %1602 = vmatpush1.xpose.msra.mxu0 0.0
        %1603 = vmatprep.subr.mxu0 0.0
        %1604 = vmatpush1.xpose.msra.mxu0 0.0
        %1605 = vmatprep.subr.mxu0 0.0
        %1606 = vmatpush1.xpose.msra.mxu0 0.0
        %1607 = vmatprep.subr.mxu0 0.0
        %1608 = vmatpush1.xpose.msra.mxu0 0.0
        %1609 = vmatprep.subr.mxu0 0.0
        %1610 = vmatpush1.xpose.msra.mxu0 0.0
        %1611 = vmatprep.subr.mxu0 0.0
        %1612 = vmatpush1.xpose.msra.mxu0 0.0
        %1613 = vmatprep.subr.mxu0 0.0
        %1614 = vmatpush1.xpose.msra.mxu0 0.0
        %1615 = vmatprep.subr.mxu0 0.0
        %1616 = vmatpush1.xpose.msra.mxu0 0.0
        %1617 = vmatprep.subr.mxu0 0.0
        %1618 = vmatpush1.xpose.msra.mxu0 0.0
        %1619 = vmatprep.subr.mxu0 0.0
        %1620 = vmatpush1.xpose.msra.mxu0 0.0
        %1621 = vmatprep.subr.mxu0 0.0
        %1622 = vmatpush1.xpose.msra.mxu0 0.0
        %1623 = vmatprep.subr.mxu0 0.0
        %1624 = vmatpush1.xpose.msra.mxu0 0.0
        %1625 = vmatprep.subr.mxu0 0.0
        %1626 = vmatpush1.xpose.msra.mxu0 0.0
        %1627 = vmatprep.subr.mxu0 0.0
        %1628 = vmatpush1.xpose.msra.mxu0 0.0
        %1629 = vmatprep.subr.mxu0 0.0
        %1630 = vmatpush1.xpose.msra.mxu0 0.0
        %1631 = vmatprep.subr.mxu0 0.0
        %1632 = vmatpush1.xpose.msra.mxu0 0.0
        %1633 = vmatprep.subr.mxu0 0.0
        %1634 = vmatpush1.xpose.msra.mxu0 0.0
        %1635 = vmatprep.subr.mxu0 0.0
        %1636 = vmatpush1.xpose.msra.mxu0 0.0
        %1637 = vmatprep.subr.mxu0 0.0
        %1638 = vmatpush1.xpose.msra.mxu0 0.0
        %1639 = vmatprep.mubr.f32.mxu0 0.0
        %1640 = vmatmul.mubr.f32.gmra.mrb[0].mxu0 %v1571
        %v1641 = vpop.f32.mrb[0].mxu0
        %v1642 = vadd.f32 0.0, %v1641
        %v1643 = vpop.f32.mrb[0].mxu0
        %1644 = vdwg.mxu0
        %1645 = vrot.lane.b32.xlu0 %v639, 112
        %v1646 = vpop.permute.xlu0 %1645
        %1647 = vrot.lane.b32.xlu0 %v733, 112
        %v1648 = vpop.permute.xlu0 %1647
        %v1649 = vsel %vm744, %v1646, 0
        %v1651 = vsel %vm744, %v1648, 0
        %1653 = vmatprep.subr.mxu0 0.0
        %1654 = vmatpush1.xpose.msra.mxu0 %v1651
        %1655 = vmatprep.subr.mxu0 0.0
        %1656 = vmatpush1.xpose.msra.mxu0 0.0
        %1657 = vmatprep.subr.mxu0 0.0
        %1658 = vmatpush1.xpose.msra.mxu0 0.0
        %1659 = vmatprep.subr.mxu0 0.0
        %1660 = vmatpush1.xpose.msra.mxu0 0.0
        %1661 = vmatprep.subr.mxu0 0.0
        %1662 = vmatpush1.xpose.msra.mxu0 0.0
        %1663 = vmatprep.subr.mxu0 0.0
        %1664 = vmatpush1.xpose.msra.mxu0 0.0
        %1665 = vmatprep.subr.mxu0 0.0
        %1666 = vmatpush1.xpose.msra.mxu0 0.0
        %1667 = vmatprep.subr.mxu0 0.0
        %1668 = vmatpush1.xpose.msra.mxu0 0.0
        %1669 = vmatprep.subr.mxu0 0.0
        %1670 = vmatpush1.xpose.msra.mxu0 0.0
        %1671 = vmatprep.subr.mxu0 0.0
        %1672 = vmatpush1.xpose.msra.mxu0 0.0
        %1673 = vmatprep.subr.mxu0 0.0
        %1674 = vmatpush1.xpose.msra.mxu0 0.0
        %1675 = vmatprep.subr.mxu0 0.0
        %1676 = vmatpush1.xpose.msra.mxu0 0.0
        %1677 = vmatprep.subr.mxu0 0.0
        %1678 = vmatpush1.xpose.msra.mxu0 0.0
        %1679 = vmatprep.subr.mxu0 0.0
        %1680 = vmatpush1.xpose.msra.mxu0 0.0
        %1681 = vmatprep.subr.mxu0 0.0
        %1682 = vmatpush1.xpose.msra.mxu0 0.0
        %1683 = vmatprep.subr.mxu0 0.0
        %1684 = vmatpush1.xpose.msra.mxu0 0.0
        %1685 = vmatprep.subr.mxu0 0.0
        %1686 = vmatpush1.xpose.msra.mxu0 0.0
        %1687 = vmatprep.subr.mxu0 0.0
        %1688 = vmatpush1.xpose.msra.mxu0 0.0
        %1689 = vmatprep.subr.mxu0 0.0
        %1690 = vmatpush1.xpose.msra.mxu0 0.0
        %1691 = vmatprep.subr.mxu0 0.0
        %1692 = vmatpush1.xpose.msra.mxu0 0.0
        %1693 = vmatprep.subr.mxu0 0.0
        %1694 = vmatpush1.xpose.msra.mxu0 0.0
        %1695 = vmatprep.subr.mxu0 0.0
        %1696 = vmatpush1.xpose.msra.mxu0 0.0
        %1697 = vmatprep.subr.mxu0 0.0
        %1698 = vmatpush1.xpose.msra.mxu0 0.0
        %1699 = vmatprep.subr.mxu0 0.0
        %1700 = vmatpush1.xpose.msra.mxu0 0.0
        %1701 = vmatprep.subr.mxu0 0.0
        %1702 = vmatpush1.xpose.msra.mxu0 0.0
        %1703 = vmatprep.subr.mxu0 0.0
        %1704 = vmatpush1.xpose.msra.mxu0 0.0
        %1705 = vmatprep.subr.mxu0 0.0
        %1706 = vmatpush1.xpose.msra.mxu0 0.0
        %1707 = vmatprep.subr.mxu0 0.0
        %1708 = vmatpush1.xpose.msra.mxu0 0.0
        %1709 = vmatprep.subr.mxu0 0.0
        %1710 = vmatpush1.xpose.msra.mxu0 0.0
        %1711 = vmatprep.subr.mxu0 0.0
        %1712 = vmatpush1.xpose.msra.mxu0 0.0
        %1713 = vmatprep.subr.mxu0 0.0
        %1714 = vmatpush1.xpose.msra.mxu0 0.0
        %1715 = vmatprep.subr.mxu0 0.0
        %1716 = vmatpush1.xpose.msra.mxu0 0.0
        %1717 = vmatprep.mubr.f32.mxu0 0.0
        %1718 = vmatmul.mubr.f32.gmra.mrb[0].mxu0 %v1649
        %v1719 = vpop.f32.mrb[0].mxu0
        %v1720 = vadd.f32 0.0, %v1719
        %v1721 = vpop.f32.mrb[0].mxu0
        %1722 = vdwg.mxu0
        %v1723 = vsel %vm744, %v1642, -inf
        %1724 = vmax.xlane.f32.xlu0 %v1723
        %v1725 = vpop.xlane.xlu0 %1724
        %v1726 = vsel %vm744, %v1720, -inf
        %1727 = vmax.xlane.f32.xlu0 %v1726
        %v1728 = vpop.xlane.xlu0 %1727
        %v1729 = vsub.f32 %v1642, %v1725
        %v1730 = vsub.f32 %v1720, %v1728
        %v1731 = vmul.f32 %v1729, 1.442695
        %v1732 = vpow.pop %v1731
        %v1733 = vmul.f32 %v1730, 1.442695
        %v1734 = vpow.pop %v1733
        %v1735 = vsel %vm744, %v1732, 0.0
        %1736 = vadd.xlane.f32.xlu0 %v1735
        %v1737 = vpop.xlane.xlu0 %1736
        %v1738 = vsel %vm744, %v1734, 0.0
        %1739 = vadd.xlane.f32.xlu0 %v1738
        %v1740 = vpop.xlane.xlu0 %1739
        %v1741 = vrcp.pop %v1737
        %v1742 = vrcp.pop %v1740
        %v1743 = vmul.f32 %v1732, %v1741
        %v1744 = vmul.f32 %v1734, %v1742
        %1745 = vrot.lane.b32.xlu0 %v742, 80
        %v1746 = vpop.permute.xlu0 %1745
        %v1749 = vsel %vm744, %v1743, 0
        %1751 = vmatprep.subr.mxu0 0.0
        %1752 = vmatpush1.msra.mxu0 %v1746
        %1753 = vmatprep.subr.mxu0 0.0
        %1754 = vmatpush1.msra.mxu0 0.0
        %1755 = vmatprep.subr.mxu0 0.0
        %1756 = vmatpush1.msra.mxu0 0.0
        %1757 = vmatprep.subr.mxu0 0.0
        %1758 = vmatpush1.msra.mxu0 0.0
        %1759 = vmatprep.subr.mxu0 0.0
        %1760 = vmatpush1.msra.mxu0 0.0
        %1761 = vmatprep.subr.mxu0 0.0
        %1762 = vmatpush1.msra.mxu0 0.0
        %1763 = vmatprep.subr.mxu0 0.0
        %1764 = vmatpush1.msra.mxu0 0.0
        %1765 = vmatprep.subr.mxu0 0.0
        %1766 = vmatpush1.msra.mxu0 0.0
        %1767 = vmatprep.subr.mxu0 0.0
        %1768 = vmatpush1.msra.mxu0 0.0
        %1769 = vmatprep.subr.mxu0 0.0
        %1770 = vmatpush1.msra.mxu0 0.0
        %1771 = vmatprep.subr.mxu0 0.0
        %1772 = vmatpush1.msra.mxu0 0.0
        %1773 = vmatprep.subr.mxu0 0.0
        %1774 = vmatpush1.msra.mxu0 0.0
        %1775 = vmatprep.subr.mxu0 0.0
        %1776 = vmatpush1.msra.mxu0 0.0
        %1777 = vmatprep.subr.mxu0 0.0
        %1778 = vmatpush1.msra.mxu0 0.0
        %1779 = vmatprep.subr.mxu0 0.0
        %1780 = vmatpush1.msra.mxu0 0.0
        %1781 = vmatprep.subr.mxu0 0.0
        %1782 = vmatpush1.msra.mxu0 0.0
        %1783 = vmatprep.subr.mxu0 0.0
        %1784 = vmatpush1.msra.mxu0 0.0
        %1785 = vmatprep.subr.mxu0 0.0
        %1786 = vmatpush1.msra.mxu0 0.0
        %1787 = vmatprep.subr.mxu0 0.0
        %1788 = vmatpush1.msra.mxu0 0.0
        %1789 = vmatprep.subr.mxu0 0.0
        %1790 = vmatpush1.msra.mxu0 0.0
        %1791 = vmatprep.subr.mxu0 0.0
        %1792 = vmatpush1.msra.mxu0 0.0
        %1793 = vmatprep.subr.mxu0 0.0
        %1794 = vmatpush1.msra.mxu0 0.0
        %1795 = vmatprep.subr.mxu0 0.0
        %1796 = vmatpush1.msra.mxu0 0.0
        %1797 = vmatprep.subr.mxu0 0.0
        %1798 = vmatpush1.msra.mxu0 0.0
        %1799 = vmatprep.subr.mxu0 0.0
        %1800 = vmatpush1.msra.mxu0 0.0
        %1801 = vmatprep.subr.mxu0 0.0
        %1802 = vmatpush1.msra.mxu0 0.0
        %1803 = vmatprep.subr.mxu0 0.0
        %1804 = vmatpush1.msra.mxu0 0.0
        %1805 = vmatprep.subr.mxu0 0.0
        %1806 = vmatpush1.msra.mxu0 0.0
        %1807 = vmatprep.subr.mxu0 0.0
        %1808 = vmatpush1.msra.mxu0 0.0
        %1809 = vmatprep.subr.mxu0 0.0
        %1810 = vmatpush1.msra.mxu0 0.0
        %1811 = vmatprep.subr.mxu0 0.0
        %1812 = vmatpush1.msra.mxu0 0.0
        %1813 = vmatprep.subr.mxu0 0.0
        %1814 = vmatpush1.msra.mxu0 0.0
        %1815 = vmatprep.mubr.f32.mxu0 0.0
        %1816 = vmatmul.mubr.f32.gmra.mrb[0].mxu0 %v1749
        %v1817 = vpop.f32.mrb[0].mxu0
        %v1818 = vadd.f32 0.0, %v1817
        %v1819 = vpop.f32.mrb[0].mxu0
        %1820 = vdwg.mxu0
        %1821 = vrot.lane.b32.xlu0 %v743, 80
        %v1822 = vpop.permute.xlu0 %1821
        %v1825 = vsel %vm744, %v1744, 0
        %1827 = vmatprep.subr.mxu0 0.0
        %1828 = vmatpush1.msra.mxu0 %v1822
        %1829 = vmatprep.subr.mxu0 0.0
        %1830 = vmatpush1.msra.mxu0 0.0
        %1831 = vmatprep.subr.mxu0 0.0
        %1832 = vmatpush1.msra.mxu0 0.0
        %1833 = vmatprep.subr.mxu0 0.0
        %1834 = vmatpush1.msra.mxu0 0.0
        %1835 = vmatprep.subr.mxu0 0.0
        %1836 = vmatpush1.msra.mxu0 0.0
        %1837 = vmatprep.subr.mxu0 0.0
        %1838 = vmatpush1.msra.mxu0 0.0
        %1839 = vmatprep.subr.mxu0 0.0
        %1840 = vmatpush1.msra.mxu0 0.0
        %1841 = vmatprep.subr.mxu0 0.0
        %1842 = vmatpush1.msra.mxu0 0.0
        %1843 = vmatprep.subr.mxu0 0.0
        %1844 = vmatpush1.msra.mxu0 0.0
        %1845 = vmatprep.subr.mxu0 0.0
        %1846 = vmatpush1.msra.mxu0 0.0
        %1847 = vmatprep.subr.mxu0 0.0
        %1848 = vmatpush1.msra.mxu0 0.0
        %1849 = vmatprep.subr.mxu0 0.0
        %1850 = vmatpush1.msra.mxu0 0.0
        %1851 = vmatprep.subr.mxu0 0.0
        %1852 = vmatpush1.msra.mxu0 0.0
        %1853 = vmatprep.subr.mxu0 0.0
        %1854 = vmatpush1.msra.mxu0 0.0
        %1855 = vmatprep.subr.mxu0 0.0
        %1856 = vmatpush1.msra.mxu0 0.0
        %1857 = vmatprep.subr.mxu0 0.0
        %1858 = vmatpush1.msra.mxu0 0.0
        %1859 = vmatprep.subr.mxu0 0.0
        %1860 = vmatpush1.msra.mxu0 0.0
        %1861 = vmatprep.subr.mxu0 0.0
        %1862 = vmatpush1.msra.mxu0 0.0
        %1863 = vmatprep.subr.mxu0 0.0
        %1864 = vmatpush1.msra.mxu0 0.0
        %1865 = vmatprep.subr.mxu0 0.0
        %1866 = vmatpush1.msra.mxu0 0.0
        %1867 = vmatprep.subr.mxu0 0.0
        %1868 = vmatpush1.msra.mxu0 0.0
        %1869 = vmatprep.subr.mxu0 0.0
        %1870 = vmatpush1.msra.mxu0 0.0
        %1871 = vmatprep.subr.mxu0 0.0
        %1872 = vmatpush1.msra.mxu0 0.0
        %1873 = vmatprep.subr.mxu0 0.0
        %1874 = vmatpush1.msra.mxu0 0.0
        %1875 = vmatprep.subr.mxu0 0.0
        %1876 = vmatpush1.msra.mxu0 0.0
        %1877 = vmatprep.subr.mxu0 0.0
        %1878 = vmatpush1.msra.mxu0 0.0
        %1879 = vmatprep.subr.mxu0 0.0
        %1880 = vmatpush1.msra.mxu0 0.0
        %1881 = vmatprep.subr.mxu0 0.0
        %1882 = vmatpush1.msra.mxu0 0.0
        %1883 = vmatprep.subr.mxu0 0.0
        %1884 = vmatpush1.msra.mxu0 0.0
        %1885 = vmatprep.subr.mxu0 0.0
        %1886 = vmatpush1.msra.mxu0 0.0
        %1887 = vmatprep.subr.mxu0 0.0
        %1888 = vmatpush1.msra.mxu0 0.0
        %1889 = vmatprep.subr.mxu0 0.0
        %1890 = vmatpush1.msra.mxu0 0.0
        %1891 = vmatprep.mubr.f32.mxu0 0.0
        %1892 = vmatmul.mubr.f32.gmra.mrb[0].mxu0 %v1825
        %v1893 = vpop.f32.mrb[0].mxu0
        %v1894 = vadd.f32 0.0, %v1893
        %v1895 = vpop.f32.mrb[0].mxu0
        %1896 = vdwg.mxu0
        %v1897 = vld [vmem:[%s494 + $0x10] sm:$0xff]
        %v1899 = vsel %vm744, %v1818, 0
        %v1902 = vsel %vm744, %v1894, 0
        %1904 = vmatprep.subr.mxu0 0.0
        %1905 = vmatpush1.msra.mxu0 %v1897
        %1906 = vmatprep.subr.mxu0 0.0
        %1907 = vmatpush1.msra.mxu0 0.0
        %1908 = vmatprep.subr.mxu0 0.0
        %1909 = vmatpush1.msra.mxu0 0.0
        %1910 = vmatprep.subr.mxu0 0.0
        %1911 = vmatpush1.msra.mxu0 0.0
        %1912 = vmatprep.subr.mxu0 0.0
        %1913 = vmatpush1.msra.mxu0 0.0
        %1914 = vmatprep.subr.mxu0 0.0
        %1915 = vmatpush1.msra.mxu0 0.0
        %1916 = vmatprep.subr.mxu0 0.0
        %1917 = vmatpush1.msra.mxu0 0.0
        %1918 = vmatprep.subr.mxu0 0.0
        %1919 = vmatpush1.msra.mxu0 0.0
        %1920 = vmatprep.subr.mxu0 0.0
        %1921 = vmatpush1.msra.mxu0 0.0
        %1922 = vmatprep.subr.mxu0 0.0
        %1923 = vmatpush1.msra.mxu0 0.0
        %1924 = vmatprep.subr.mxu0 0.0
        %1925 = vmatpush1.msra.mxu0 0.0
        %1926 = vmatprep.subr.mxu0 0.0
        %1927 = vmatpush1.msra.mxu0 0.0
        %1928 = vmatprep.subr.mxu0 0.0
        %1929 = vmatpush1.msra.mxu0 0.0
        %1930 = vmatprep.subr.mxu0 0.0
        %1931 = vmatpush1.msra.mxu0 0.0
        %1932 = vmatprep.subr.mxu0 0.0
        %1933 = vmatpush1.msra.mxu0 0.0
        %1934 = vmatprep.subr.mxu0 0.0
        %1935 = vmatpush1.msra.mxu0 0.0
        %1936 = vmatprep.subr.mxu0 0.0
        %1937 = vmatpush1.msra.mxu0 0.0
        %1938 = vmatprep.subr.mxu0 0.0
        %1939 = vmatpush1.msra.mxu0 0.0
        %1940 = vmatprep.subr.mxu0 0.0
        %1941 = vmatpush1.msra.mxu0 0.0
        %1942 = vmatprep.subr.mxu0 0.0
        %1943 = vmatpush1.msra.mxu0 0.0
        %1944 = vmatprep.subr.mxu0 0.0
        %1945 = vmatpush1.msra.mxu0 0.0
        %1946 = vmatprep.subr.mxu0 0.0
        %1947 = vmatpush1.msra.mxu0 0.0
        %1948 = vmatprep.subr.mxu0 0.0
        %1949 = vmatpush1.msra.mxu0 0.0
        %1950 = vmatprep.subr.mxu0 0.0
        %1951 = vmatpush1.msra.mxu0 0.0
        %1952 = vmatprep.subr.mxu0 0.0
        %1953 = vmatpush1.msra.mxu0 0.0
        %1954 = vmatprep.subr.mxu0 0.0
        %1955 = vmatpush1.msra.mxu0 0.0
        %1956 = vmatprep.subr.mxu0 0.0
        %1957 = vmatpush1.msra.mxu0 0.0
        %1958 = vmatprep.subr.mxu0 0.0
        %1959 = vmatpush1.msra.mxu0 0.0
        %1960 = vmatprep.subr.mxu0 0.0
        %1961 = vmatpush1.msra.mxu0 0.0
        %1962 = vmatprep.subr.mxu0 0.0
        %1963 = vmatpush1.msra.mxu0 0.0
        %1964 = vmatprep.subr.mxu0 0.0
        %1965 = vmatpush1.msra.mxu0 0.0
        %1966 = vmatprep.subr.mxu0 0.0
        %1967 = vmatpush1.msra.mxu0 0.0
        %1968 = vmatprep.mubr.f32.mxu0 0.0
        %1969 = vmatmul.mubr.f32.gmra.mrb[0].mxu0 %v1899
        %v1970 = vpop.f32.mrb[0].mxu0
        %v1971 = vadd.f32 0.0, %v1970
        %v1972 = vpop.f32.mrb[0].mxu0
        %1973 = vmatprep.mubr.f32.mxu0 0.0
        %1974 = vmatmul.mubr.f32.gmra.mrb[0].mxu0 %v1902
        %v1975 = vpop.f32.mrb[0].mxu0
        %v1976 = vadd.f32 0.0, %v1975
        %v1977 = vpop.f32.mrb[0].mxu0
        %1978 = vdwg.mxu0
        %v1979 = vadd.f32 %v1559, %v1971
        %v1980 = vadd.f32 %v1564, %v1976
        %1981 = vrot.lane.b32.xlu0 %v634, 104
        %v1982 = vpop.permute.xlu0 %1981
        %1983 = vrot.lane.b32.xlu0 %v732, 104
        %v1984 = vpop.permute.xlu0 %1983
        %v1985 = vsel %vm744, %v1982, 0
        %v1987 = vsel %vm744, %v1984, 0
        %1989 = vmatprep.subr.mxu0 0.0
        %1990 = vmatpush1.xpose.msra.mxu0 %v1987
        %1991 = vmatprep.subr.mxu0 0.0
        %1992 = vmatpush1.xpose.msra.mxu0 0.0
        %1993 = vmatprep.subr.mxu0 0.0
        %1994 = vmatpush1.xpose.msra.mxu0 0.0
        %1995 = vmatprep.subr.mxu0 0.0
        %1996 = vmatpush1.xpose.msra.mxu0 0.0
        %1997 = vmatprep.subr.mxu0 0.0
        %1998 = vmatpush1.xpose.msra.mxu0 0.0
        %1999 = vmatprep.subr.mxu0 0.0
        %2000 = vmatpush1.xpose.msra.mxu0 0.0
        %2001 = vmatprep.subr.mxu0 0.0
        %2002 = vmatpush1.xpose.msra.mxu0 0.0
        %2003 = vmatprep.subr.mxu0 0.0
        %2004 = vmatpush1.xpose.msra.mxu0 0.0
        %2005 = vmatprep.subr.mxu0 0.0
        %2006 = vmatpush1.xpose.msra.mxu0 0.0
        %2007 = vmatprep.subr.mxu0 0.0
        %2008 = vmatpush1.xpose.msra.mxu0 0.0
        %2009 = vmatprep.subr.mxu0 0.0
        %2010 = vmatpush1.xpose.msra.mxu0 0.0
        %2011 = vmatprep.subr.mxu0 0.0
        %2012 = vmatpush1.xpose.msra.mxu0 0.0
        %2013 = vmatprep.subr.mxu0 0.0
        %2014 = vmatpush1.xpose.msra.mxu0 0.0
        %2015 = vmatprep.subr.mxu0 0.0
        %2016 = vmatpush1.xpose.msra.mxu0 0.0
        %2017 = vmatprep.subr.mxu0 0.0
        %2018 = vmatpush1.xpose.msra.mxu0 0.0
        %2019 = vmatprep.subr.mxu0 0.0
        %2020 = vmatpush1.xpose.msra.mxu0 0.0
        %2021 = vmatprep.subr.mxu0 0.0
        %2022 = vmatpush1.xpose.msra.mxu0 0.0
        %2023 = vmatprep.subr.mxu0 0.0
        %2024 = vmatpush1.xpose.msra.mxu0 0.0
        %2025 = vmatprep.subr.mxu0 0.0
        %2026 = vmatpush1.xpose.msra.mxu0 0.0
        %2027 = vmatprep.subr.mxu0 0.0
        %2028 = vmatpush1.xpose.msra.mxu0 0.0
        %2029 = vmatprep.subr.mxu0 0.0
        %2030 = vmatpush1.xpose.msra.mxu0 0.0
        %2031 = vmatprep.subr.mxu0 0.0
        %2032 = vmatpush1.xpose.msra.mxu0 0.0
        %2033 = vmatprep.subr.mxu0 0.0
        %2034 = vmatpush1.xpose.msra.mxu0 0.0
        %2035 = vmatprep.subr.mxu0 0.0
        %2036 = vmatpush1.xpose.msra.mxu0 0.0
        %2037 = vmatprep.subr.mxu0 0.0
        %2038 = vmatpush1.xpose.msra.mxu0 0.0
        %2039 = vmatprep.subr.mxu0 0.0
        %2040 = vmatpush1.xpose.msra.mxu0 0.0
        %2041 = vmatprep.subr.mxu0 0.0
        %2042 = vmatpush1.xpose.msra.mxu0 0.0
        %2043 = vmatprep.subr.mxu0 0.0
        %2044 = vmatpush1.xpose.msra.mxu0 0.0
        %2045 = vmatprep.subr.mxu0 0.0
        %2046 = vmatpush1.xpose.msra.mxu0 0.0
        %2047 = vmatprep.subr.mxu0 0.0
        %2048 = vmatpush1.xpose.msra.mxu0 0.0
        %2049 = vmatprep.subr.mxu0 0.0
        %2050 = vmatpush1.xpose.msra.mxu0 0.0
        %2051 = vmatprep.subr.mxu0 0.0
        %2052 = vmatpush1.xpose.msra.mxu0 0.0
        %2053 = vmatprep.mubr.f32.mxu0 0.0
        %2054 = vmatmul.mubr.f32.gmra.mrb[0].mxu0 %v1985
        %v2055 = vpop.f32.mrb[0].mxu0
        %v2056 = vadd.f32 0.0, %v2055
        %v2057 = vpop.f32.mrb[0].mxu0
        %2058 = vdwg.mxu0
        %2059 = vrot.lane.b32.xlu0 %v639, 104
        %v2060 = vpop.permute.xlu0 %2059
        %2061 = vrot.lane.b32.xlu0 %v733, 104
        %v2062 = vpop.permute.xlu0 %2061
        %v2063 = vsel %vm744, %v2060, 0
        %v2065 = vsel %vm744, %v2062, 0
        %2067 = vmatprep.subr.mxu0 0.0
        %2068 = vmatpush1.xpose.msra.mxu0 %v2065
        %2069 = vmatprep.subr.mxu0 0.0
        %2070 = vmatpush1.xpose.msra.mxu0 0.0
        %2071 = vmatprep.subr.mxu0 0.0
        %2072 = vmatpush1.xpose.msra.mxu0 0.0
        %2073 = vmatprep.subr.mxu0 0.0
        %2074 = vmatpush1.xpose.msra.mxu0 0.0
        %2075 = vmatprep.subr.mxu0 0.0
        %2076 = vmatpush1.xpose.msra.mxu0 0.0
        %2077 = vmatprep.subr.mxu0 0.0
        %2078 = vmatpush1.xpose.msra.mxu0 0.0
        %2079 = vmatprep.subr.mxu0 0.0
        %2080 = vmatpush1.xpose.msra.mxu0 0.0
        %2081 = vmatprep.subr.mxu0 0.0
        %2082 = vmatpush1.xpose.msra.mxu0 0.0
        %2083 = vmatprep.subr.mxu0 0.0
        %2084 = vmatpush1.xpose.msra.mxu0 0.0
        %2085 = vmatprep.subr.mxu0 0.0
        %2086 = vmatpush1.xpose.msra.mxu0 0.0
        %2087 = vmatprep.subr.mxu0 0.0
        %2088 = vmatpush1.xpose.msra.mxu0 0.0
        %2089 = vmatprep.subr.mxu0 0.0
        %2090 = vmatpush1.xpose.msra.mxu0 0.0
        %2091 = vmatprep.subr.mxu0 0.0
        %2092 = vmatpush1.xpose.msra.mxu0 0.0
        %2093 = vmatprep.subr.mxu0 0.0
        %2094 = vmatpush1.xpose.msra.mxu0 0.0
        %2095 = vmatprep.subr.mxu0 0.0
        %2096 = vmatpush1.xpose.msra.mxu0 0.0
        %2097 = vmatprep.subr.mxu0 0.0
        %2098 = vmatpush1.xpose.msra.mxu0 0.0
        %2099 = vmatprep.subr.mxu0 0.0
        %2100 = vmatpush1.xpose.msra.mxu0 0.0
        %2101 = vmatprep.subr.mxu0 0.0
        %2102 = vmatpush1.xpose.msra.mxu0 0.0
        %2103 = vmatprep.subr.mxu0 0.0
        %2104 = vmatpush1.xpose.msra.mxu0 0.0
        %2105 = vmatprep.subr.mxu0 0.0
        %2106 = vmatpush1.xpose.msra.mxu0 0.0
        %2107 = vmatprep.subr.mxu0 0.0
        %2108 = vmatpush1.xpose.msra.mxu0 0.0
        %2109 = vmatprep.subr.mxu0 0.0
        %2110 = vmatpush1.xpose.msra.mxu0 0.0
        %2111 = vmatprep.subr.mxu0 0.0
        %2112 = vmatpush1.xpose.msra.mxu0 0.0
        %2113 = vmatprep.subr.mxu0 0.0
        %2114 = vmatpush1.xpose.msra.mxu0 0.0
        %2115 = vmatprep.subr.mxu0 0.0
        %2116 = vmatpush1.xpose.msra.mxu0 0.0
        %2117 = vmatprep.subr.mxu0 0.0
        %2118 = vmatpush1.xpose.msra.mxu0 0.0
        %2119 = vmatprep.subr.mxu0 0.0
        %2120 = vmatpush1.xpose.msra.mxu0 0.0
        %2121 = vmatprep.subr.mxu0 0.0
        %2122 = vmatpush1.xpose.msra.mxu0 0.0
        %2123 = vmatprep.subr.mxu0 0.0
        %2124 = vmatpush1.xpose.msra.mxu0 0.0
        %2125 = vmatprep.subr.mxu0 0.0
        %2126 = vmatpush1.xpose.msra.mxu0 0.0
        %2127 = vmatprep.subr.mxu0 0.0
        %2128 = vmatpush1.xpose.msra.mxu0 0.0
        %2129 = vmatprep.subr.mxu0 0.0
        %2130 = vmatpush1.xpose.msra.mxu0 0.0
        %2131 = vmatprep.mubr.f32.mxu0 0.0
        %2132 = vmatmul.mubr.f32.gmra.mrb[0].mxu0 %v2063
        %v2133 = vpop.f32.mrb[0].mxu0
        %v2134 = vadd.f32 0.0, %v2133
        %v2135 = vpop.f32.mrb[0].mxu0
        %2136 = vdwg.mxu0
        %v2137 = vsel %vm744, %v2056, -inf
        %2138 = vmax.xlane.f32.xlu0 %v2137
        %v2139 = vpop.xlane.xlu0 %2138
        %v2140 = vsel %vm744, %v2134, -inf
        %2141 = vmax.xlane.f32.xlu0 %v2140
        %v2142 = vpop.xlane.xlu0 %2141
        %v2143 = vsub.f32 %v2056, %v2139
        %v2144 = vsub.f32 %v2134, %v2142
        %v2145 = vmul.f32 %v2143, 1.442695
        %v2146 = vpow.pop %v2145
        %v2147 = vmul.f32 %v2144, 1.442695
        %v2148 = vpow.pop %v2147
        %v2149 = vsel %vm744, %v2146, 0.0
        %2150 = vadd.xlane.f32.xlu0 %v2149
        %v2151 = vpop.xlane.xlu0 %2150
        %v2152 = vsel %vm744, %v2148, 0.0
        %2153 = vadd.xlane.f32.xlu0 %v2152
        %v2154 = vpop.xlane.xlu0 %2153
        %v2155 = vrcp.pop %v2151
        %v2156 = vrcp.pop %v2154
        %v2157 = vmul.f32 %v2146, %v2155
        %v2158 = vmul.f32 %v2148, %v2156
        %2159 = vrot.lane.b32.xlu0 %v742, 72
        %v2160 = vpop.permute.xlu0 %2159
        %v2163 = vsel %vm744, %v2157, 0
        %2165 = vmatprep.subr.mxu0 0.0
        %2166 = vmatpush1.msra.mxu0 %v2160
        %2167 = vmatprep.subr.mxu0 0.0
        %2168 = vmatpush1.msra.mxu0 0.0
        %2169 = vmatprep.subr.mxu0 0.0
        %2170 = vmatpush1.msra.mxu0 0.0
        %2171 = vmatprep.subr.mxu0 0.0
        %2172 = vmatpush1.msra.mxu0 0.0
        %2173 = vmatprep.subr.mxu0 0.0
        %2174 = vmatpush1.msra.mxu0 0.0
        %2175 = vmatprep.subr.mxu0 0.0
        %2176 = vmatpush1.msra.mxu0 0.0
        %2177 = vmatprep.subr.mxu0 0.0
        %2178 = vmatpush1.msra.mxu0 0.0
        %2179 = vmatprep.subr.mxu0 0.0
        %2180 = vmatpush1.msra.mxu0 0.0
        %2181 = vmatprep.subr.mxu0 0.0
        %2182 = vmatpush1.msra.mxu0 0.0
        %2183 = vmatprep.subr.mxu0 0.0
        %2184 = vmatpush1.msra.mxu0 0.0
        %2185 = vmatprep.subr.mxu0 0.0
        %2186 = vmatpush1.msra.mxu0 0.0
        %2187 = vmatprep.subr.mxu0 0.0
        %2188 = vmatpush1.msra.mxu0 0.0
        %2189 = vmatprep.subr.mxu0 0.0
        %2190 = vmatpush1.msra.mxu0 0.0
        %2191 = vmatprep.subr.mxu0 0.0
        %2192 = vmatpush1.msra.mxu0 0.0
        %2193 = vmatprep.subr.mxu0 0.0
        %2194 = vmatpush1.msra.mxu0 0.0
        %2195 = vmatprep.subr.mxu0 0.0
        %2196 = vmatpush1.msra.mxu0 0.0
        %2197 = vmatprep.subr.mxu0 0.0
        %2198 = vmatpush1.msra.mxu0 0.0
        %2199 = vmatprep.subr.mxu0 0.0
        %2200 = vmatpush1.msra.mxu0 0.0
        %2201 = vmatprep.subr.mxu0 0.0
        %2202 = vmatpush1.msra.mxu0 0.0
        %2203 = vmatprep.subr.mxu0 0.0
        %2204 = vmatpush1.msra.mxu0 0.0
        %2205 = vmatprep.subr.mxu0 0.0
        %2206 = vmatpush1.msra.mxu0 0.0
        %2207 = vmatprep.subr.mxu0 0.0
        %2208 = vmatpush1.msra.mxu0 0.0
        %2209 = vmatprep.subr.mxu0 0.0
        %2210 = vmatpush1.msra.mxu0 0.0
        %2211 = vmatprep.subr.mxu0 0.0
        %2212 = vmatpush1.msra.mxu0 0.0
        %2213 = vmatprep.subr.mxu0 0.0
        %2214 = vmatpush1.msra.mxu0 0.0
        %2215 = vmatprep.subr.mxu0 0.0
        %2216 = vmatpush1.msra.mxu0 0.0
        %2217 = vmatprep.subr.mxu0 0.0
        %2218 = vmatpush1.msra.mxu0 0.0
        %2219 = vmatprep.subr.mxu0 0.0
        %2220 = vmatpush1.msra.mxu0 0.0
        %2221 = vmatprep.subr.mxu0 0.0
        %2222 = vmatpush1.msra.mxu0 0.0
        %2223 = vmatprep.subr.mxu0 0.0
        %2224 = vmatpush1.msra.mxu0 0.0
        %2225 = vmatprep.subr.mxu0 0.0
        %2226 = vmatpush1.msra.mxu0 0.0
        %2227 = vmatprep.subr.mxu0 0.0
        %2228 = vmatpush1.msra.mxu0 0.0
        %2229 = vmatprep.mubr.f32.mxu0 0.0
        %2230 = vmatmul.mubr.f32.gmra.mrb[0].mxu0 %v2163
        %v2231 = vpop.f32.mrb[0].mxu0
        %v2232 = vadd.f32 0.0, %v2231
        %v2233 = vpop.f32.mrb[0].mxu0
        %2234 = vdwg.mxu0
        %2235 = vrot.lane.b32.xlu0 %v743, 72
        %v2236 = vpop.permute.xlu0 %2235
        %v2239 = vsel %vm744, %v2158, 0
        %2241 = vmatprep.subr.mxu0 0.0
        %2242 = vmatpush1.msra.mxu0 %v2236
        %2243 = vmatprep.subr.mxu0 0.0
        %2244 = vmatpush1.msra.mxu0 0.0
        %2245 = vmatprep.subr.mxu0 0.0
        %2246 = vmatpush1.msra.mxu0 0.0
        %2247 = vmatprep.subr.mxu0 0.0
        %2248 = vmatpush1.msra.mxu0 0.0
        %2249 = vmatprep.subr.mxu0 0.0
        %2250 = vmatpush1.msra.mxu0 0.0
        %2251 = vmatprep.subr.mxu0 0.0
        %2252 = vmatpush1.msra.mxu0 0.0
        %2253 = vmatprep.subr.mxu0 0.0
        %2254 = vmatpush1.msra.mxu0 0.0
        %2255 = vmatprep.subr.mxu0 0.0
        %2256 = vmatpush1.msra.mxu0 0.0
        %2257 = vmatprep.subr.mxu0 0.0
        %2258 = vmatpush1.msra.mxu0 0.0
        %2259 = vmatprep.subr.mxu0 0.0
        %2260 = vmatpush1.msra.mxu0 0.0
        %2261 = vmatprep.subr.mxu0 0.0
        %2262 = vmatpush1.msra.mxu0 0.0
        %2263 = vmatprep.subr.mxu0 0.0
        %2264 = vmatpush1.msra.mxu0 0.0
        %2265 = vmatprep.subr.mxu0 0.0
        %2266 = vmatpush1.msra.mxu0 0.0
        %2267 = vmatprep.subr.mxu0 0.0
        %2268 = vmatpush1.msra.mxu0 0.0
        %2269 = vmatprep.subr.mxu0 0.0
        %2270 = vmatpush1.msra.mxu0 0.0
        %2271 = vmatprep.subr.mxu0 0.0
        %2272 = vmatpush1.msra.mxu0 0.0
        %2273 = vmatprep.subr.mxu0 0.0
        %2274 = vmatpush1.msra.mxu0 0.0
        %2275 = vmatprep.subr.mxu0 0.0
        %2276 = vmatpush1.msra.mxu0 0.0
        %2277 = vmatprep.subr.mxu0 0.0
        %2278 = vmatpush1.msra.mxu0 0.0
        %2279 = vmatprep.subr.mxu0 0.0
        %2280 = vmatpush1.msra.mxu0 0.0
        %2281 = vmatprep.subr.mxu0 0.0
        %2282 = vmatpush1.msra.mxu0 0.0
        %2283 = vmatprep.subr.mxu0 0.0
        %2284 = vmatpush1.msra.mxu0 0.0
        %2285 = vmatprep.subr.mxu0 0.0
        %2286 = vmatpush1.msra.mxu0 0.0
        %2287 = vmatprep.subr.mxu0 0.0
        %2288 = vmatpush1.msra.mxu0 0.0
        %2289 = vmatprep.subr.mxu0 0.0
        %2290 = vmatpush1.msra.mxu0 0.0
        %2291 = vmatprep.subr.mxu0 0.0
        %2292 = vmatpush1.msra.mxu0 0.0
        %2293 = vmatprep.subr.mxu0 0.0
        %2294 = vmatpush1.msra.mxu0 0.0
        %2295 = vmatprep.subr.mxu0 0.0
        %2296 = vmatpush1.msra.mxu0 0.0
        %2297 = vmatprep.subr.mxu0 0.0
        %2298 = vmatpush1.msra.mxu0 0.0
        %2299 = vmatprep.subr.mxu0 0.0
        %2300 = vmatpush1.msra.mxu0 0.0
        %2301 = vmatprep.subr.mxu0 0.0
        %2302 = vmatpush1.msra.mxu0 0.0
        %2303 = vmatprep.subr.mxu0 0.0
        %2304 = vmatpush1.msra.mxu0 0.0
        %2305 = vmatprep.mubr.f32.mxu0 0.0
        %2306 = vmatmul.mubr.f32.gmra.mrb[0].mxu0 %v2239
        %v2307 = vpop.f32.mrb[0].mxu0
        %v2308 = vadd.f32 0.0, %v2307
        %v2309 = vpop.f32.mrb[0].mxu0
        %2310 = vdwg.mxu0
        %v2311 = vld [vmem:[%s494 + $0x18] sm:$0xff]
        %v2313 = vsel %vm744, %v2232, 0
        %v2316 = vsel %vm744, %v2308, 0
        %2318 = vmatprep.subr.mxu0 0.0
        %2319 = vmatpush1.msra.mxu0 %v2311
        %2320 = vmatprep.subr.mxu0 0.0
        %2321 = vmatpush1.msra.mxu0 0.0
        %2322 = vmatprep.subr.mxu0 0.0
        %2323 = vmatpush1.msra.mxu0 0.0
        %2324 = vmatprep.subr.mxu0 0.0
        %2325 = vmatpush1.msra.mxu0 0.0
        %2326 = vmatprep.subr.mxu0 0.0
        %2327 = vmatpush1.msra.mxu0 0.0
        %2328 = vmatprep.subr.mxu0 0.0
        %2329 = vmatpush1.msra.mxu0 0.0
        %2330 = vmatprep.subr.mxu0 0.0
        %2331 = vmatpush1.msra.mxu0 0.0
        %2332 = vmatprep.subr.mxu0 0.0
        %2333 = vmatpush1.msra.mxu0 0.0
        %2334 = vmatprep.subr.mxu0 0.0
        %2335 = vmatpush1.msra.mxu0 0.0
        %2336 = vmatprep.subr.mxu0 0.0
        %2337 = vmatpush1.msra.mxu0 0.0
        %2338 = vmatprep.subr.mxu0 0.0
        %2339 = vmatpush1.msra.mxu0 0.0
        %2340 = vmatprep.subr.mxu0 0.0
        %2341 = vmatpush1.msra.mxu0 0.0
        %2342 = vmatprep.subr.mxu0 0.0
        %2343 = vmatpush1.msra.mxu0 0.0
        %2344 = vmatprep.subr.mxu0 0.0
        %2345 = vmatpush1.msra.mxu0 0.0
        %2346 = vmatprep.subr.mxu0 0.0
        %2347 = vmatpush1.msra.mxu0 0.0
        %2348 = vmatprep.subr.mxu0 0.0
        %2349 = vmatpush1.msra.mxu0 0.0
        %2350 = vmatprep.subr.mxu0 0.0
        %2351 = vmatpush1.msra.mxu0 0.0
        %2352 = vmatprep.subr.mxu0 0.0
        %2353 = vmatpush1.msra.mxu0 0.0
        %2354 = vmatprep.subr.mxu0 0.0
        %2355 = vmatpush1.msra.mxu0 0.0
        %2356 = vmatprep.subr.mxu0 0.0
        %2357 = vmatpush1.msra.mxu0 0.0
        %2358 = vmatprep.subr.mxu0 0.0
        %2359 = vmatpush1.msra.mxu0 0.0
        %2360 = vmatprep.subr.mxu0 0.0
        %2361 = vmatpush1.msra.mxu0 0.0
        %2362 = vmatprep.subr.mxu0 0.0
        %2363 = vmatpush1.msra.mxu0 0.0
        %2364 = vmatprep.subr.mxu0 0.0
        %2365 = vmatpush1.msra.mxu0 0.0
        %2366 = vmatprep.subr.mxu0 0.0
        %2367 = vmatpush1.msra.mxu0 0.0
        %2368 = vmatprep.subr.mxu0 0.0
        %2369 = vmatpush1.msra.mxu0 0.0
        %2370 = vmatprep.subr.mxu0 0.0
        %2371 = vmatpush1.msra.mxu0 0.0
        %2372 = vmatprep.subr.mxu0 0.0
        %2373 = vmatpush1.msra.mxu0 0.0
        %2374 = vmatprep.subr.mxu0 0.0
        %2375 = vmatpush1.msra.mxu0 0.0
        %2376 = vmatprep.subr.mxu0 0.0
        %2377 = vmatpush1.msra.mxu0 0.0
        %2378 = vmatprep.subr.mxu0 0.0
        %2379 = vmatpush1.msra.mxu0 0.0
        %2380 = vmatprep.subr.mxu0 0.0
        %2381 = vmatpush1.msra.mxu0 0.0
        %2382 = vmatprep.mubr.f32.mxu0 0.0
        %2383 = vmatmul.mubr.f32.gmra.mrb[0].mxu0 %v2313
        %v2384 = vpop.f32.mrb[0].mxu0
        %v2385 = vadd.f32 0.0, %v2384
        %v2386 = vpop.f32.mrb[0].mxu0
        %2387 = vmatprep.mubr.f32.mxu0 0.0
        %2388 = vmatmul.mubr.f32.gmra.mrb[0].mxu0 %v2316
        %v2389 = vpop.f32.mrb[0].mxu0
        %v2390 = vadd.f32 0.0, %v2389
        %v2391 = vpop.f32.mrb[0].mxu0
        %2392 = vdwg.mxu0
        %v2393 = vadd.f32 %v1979, %v2385
        %v2394 = vadd.f32 %v1980, %v2390
        %v2395 = vadd.f32 %v522, %v2393
        %v2396 = vadd.f32 %v523, %v2394
        %v2397 = vlaneseq
        %v2398 = vshrl.u32 %v2397, 7
        %v2399 = vsub.s32 3, %v2398
        %v2400 = vrot.slane %v524, %v2399
        %v2401 = vadd.f32 %v2395, %v2400
        %v2402 = vadd.f32 %v2396, %v2400
        %v2403 = vsel %vm525, %v2401, 0.0
        %2404 = vadd.xlane.f32.xlu0 %v2403
        %v2405 = vpop.xlane.xlu0 %2404
        %v2406 = vsel %vm525, %v2402, 0.0
        %2407 = vadd.xlane.f32.xlu0 %v2406
        %v2408 = vpop.xlane.xlu0 %2407
        %v2409 = vmul.f32 %v2405, %v532
        %v2410 = vmul.f32 %v2408, %v532
        %v2411 = vsub.f32 %v2401, %v2409
        %v2412 = vsub.f32 %v2402, %v2410
        %v2413 = vmul.f32 %v2411, %v2411
        %v2414 = vmul.f32 %v2412, %v2412
        %v2415 = vsel %vm525, %v2413, 0.0
        %2416 = vadd.xlane.f32.xlu0 %v2415
        %v2417 = vpop.xlane.xlu0 %2416
        %v2418 = vsel %vm525, %v2414, 0.0
        %2419 = vadd.xlane.f32.xlu0 %v2418
        %v2420 = vpop.xlane.xlu0 %2419
        %v2421 = vmul.f32 %v2417, %v532
        %v2422 = vmul.f32 %v2420, %v532
        %v2423 = vadd.f32 %v2421, 1e-05
        %v2424 = vadd.f32 %v2422, 1e-05
        %v2425 = vrsqrt.pop %v2423
        %v2426 = vrsqrt.pop %v2424
        %v2427 = vmul.f32 %v2411, %v2425
        %v2428 = vmul.f32 %v2412, %v2426
        %v2429 = vld [vmem:[%s499] sm:$0xff]
        %v2430 = vld [vmem:[%s499 + $0x8] sm:$0xff]
        %v2431 = vld [vmem:[%s499 + $0x10] sm:$0xff]
        %v2432 = vld [vmem:[%s499 + $0x18] sm:$0xff]
        %v2433 = vld [vmem:[%s511] sm:$0x1]
        %v2435 = vlaneseq
        %v2436 = vshrl.u32 %v2435, 7
        %v2437 = vsub.s32 0, %v2436
        %v2438 = vrot.slane %v2433, %v2437
        %v2441 = vsel %vm525, %v2427, 0
        %v2444 = vsel %vm525, %v2428, 0
        %2446 = vmatprep.subr.mxu0 0.0
        %2447 = vmatpush1.msra.mxu0 %v2429
        %2448 = vmatprep.subr.mxu0 0.0
        %2449 = vmatpush1.msra.mxu0 %v2430
        %2450 = vmatprep.subr.mxu0 0.0
        %2451 = vmatpush1.msra.mxu0 %v2431
        %2452 = vmatprep.subr.mxu0 0.0
        %2453 = vmatpush1.msra.mxu0 %v2432
        %2454 = vmatprep.subr.mxu0 0.0
        %2455 = vmatpush1.msra.mxu0 0.0
        %2456 = vmatprep.subr.mxu0 0.0
        %2457 = vmatpush1.msra.mxu0 0.0
        %2458 = vmatprep.subr.mxu0 0.0
        %2459 = vmatpush1.msra.mxu0 0.0
        %2460 = vmatprep.subr.mxu0 0.0
        %2461 = vmatpush1.msra.mxu0 0.0
        %2462 = vmatprep.subr.mxu0 0.0
        %2463 = vmatpush1.msra.mxu0 0.0
        %2464 = vmatprep.subr.mxu0 0.0
        %2465 = vmatpush1.msra.mxu0 0.0
        %2466 = vmatprep.subr.mxu0 0.0
        %2467 = vmatpush1.msra.mxu0 0.0
        %2468 = vmatprep.subr.mxu0 0.0
        %2469 = vmatpush1.msra.mxu0 0.0
        %2470 = vmatprep.subr.mxu0 0.0
        %2471 = vmatpush1.msra.mxu0 0.0
        %2472 = vmatprep.subr.mxu0 0.0
        %2473 = vmatpush1.msra.mxu0 0.0
        %2474 = vmatprep.subr.mxu0 0.0
        %2475 = vmatpush1.msra.mxu0 0.0
        %2476 = vmatprep.subr.mxu0 0.0
        %2477 = vmatpush1.msra.mxu0 0.0
        %2478 = vmatprep.subr.mxu0 0.0
        %2479 = vmatpush1.msra.mxu0 0.0
        %2480 = vmatprep.subr.mxu0 0.0
        %2481 = vmatpush1.msra.mxu0 0.0
        %2482 = vmatprep.subr.mxu0 0.0
        %2483 = vmatpush1.msra.mxu0 0.0
        %2484 = vmatprep.subr.mxu0 0.0
        %2485 = vmatpush1.msra.mxu0 0.0
        %2486 = vmatprep.subr.mxu0 0.0
        %2487 = vmatpush1.msra.mxu0 0.0
        %2488 = vmatprep.subr.mxu0 0.0
        %2489 = vmatpush1.msra.mxu0 0.0
        %2490 = vmatprep.subr.mxu0 0.0
        %2491 = vmatpush1.msra.mxu0 0.0
        %2492 = vmatprep.subr.mxu0 0.0
        %2493 = vmatpush1.msra.mxu0 0.0
        %2494 = vmatprep.subr.mxu0 0.0
        %2495 = vmatpush1.msra.mxu0 0.0
        %2496 = vmatprep.subr.mxu0 0.0
        %2497 = vmatpush1.msra.mxu0 0.0
        %2498 = vmatprep.subr.mxu0 0.0
        %2499 = vmatpush1.msra.mxu0 0.0
        %2500 = vmatprep.subr.mxu0 0.0
        %2501 = vmatpush1.msra.mxu0 0.0
        %2502 = vmatprep.subr.mxu0 0.0
        %2503 = vmatpush1.msra.mxu0 0.0
        %2504 = vmatprep.subr.mxu0 0.0
        %2505 = vmatpush1.msra.mxu0 0.0
        %2506 = vmatprep.subr.mxu0 0.0
        %2507 = vmatpush1.msra.mxu0 0.0
        %2508 = vmatprep.subr.mxu0 0.0
        %2509 = vmatpush1.msra.mxu0 0.0
        %2510 = vmatprep.mubr.f32.mxu0 0.0
        %2511 = vmatmul.mubr.f32.gmra.mrb[0].mxu0 %v2441
        %v2512 = vpop.f32.mrb[0].mxu0
        %v2513 = vadd.f32 %v2438, %v2512
        %v2514 = vpop.f32.mrb[0].mxu0
        %2515 = vmatprep.mubr.f32.mxu0 0.0
        %2516 = vmatmul.mubr.f32.gmra.mrb[0].mxu0 %v2444
        %v2517 = vpop.f32.mrb[0].mxu0
        %v2518 = vadd.f32 %v2438, %v2517
        %v2519 = vpop.f32.mrb[0].mxu0
        %2520 = vdwg.mxu0
        %v2521 = vmul.f32 %v2513, 0.5
        %v2522 = vmul.f32 %v2518, 0.5
        %v2523 = vmul.f32 %v2513, 0.044715
        %v2524 = vmul.f32 %v2518, 0.044715
        %v2525 = vmul.f32 %v2523, %v2513
        %v2526 = vmul.f32 %v2524, %v2518
        %v2527 = vmul.f32 %v2525, %v2513
        %v2528 = vmul.f32 %v2526, %v2518
        %v2529 = vadd.f32 %v2513, %v2527
        %v2530 = vadd.f32 %v2518, %v2528
        %v2531 = vmul.f32 %v2529, 0.7978846
        %v2532 = vmul.f32 %v2530, 0.7978846
        %v2533 = vtanh.pop %v2531
        %v2534 = vtanh.pop %v2532
        %v2535 = vadd.f32 %v2533, 1.0
        %v2536 = vadd.f32 %v2534, 1.0
        %v2537 = vmul.f32 %v2521, %v2535
        %v2538 = vmul.f32 %v2522, %v2536
        %v2539 = vld [vmem:[%s504] sm:$0xff]
        %v2540 = vld [vmem:[%s504 + $0x8] sm:$0xff]
        %v2541 = vld [vmem:[%s504 + $0x10] sm:$0xff]
        %v2542 = vld [vmem:[%s504 + $0x18] sm:$0xff]
        %v2543 = vld [vmem:[%s504 + $0x20] sm:$0xff]
        %v2544 = vld [vmem:[%s504 + $0x28] sm:$0xff]
        %v2545 = vld [vmem:[%s504 + $0x30] sm:$0xff]
        %v2546 = vld [vmem:[%s504 + $0x38] sm:$0xff]
        %v2547 = vlaneseq
        %v2548 = vshrl.u32 %v2547, 7
        %v2549 = vsub.s32 4, %v2548
        %v2550 = vrot.slane %v524, %v2549
        %vm2551 = vcmask 523264
        %v2553 = vsel %vm2551, %v2537, 0
        %v2556 = vsel %vm2551, %v2538, 0
        %2558 = vmatprep.subr.mxu0 0.0
        %2559 = vmatpush1.msra.mxu0 %v2539
        %2560 = vmatprep.subr.mxu0 0.0
        %2561 = vmatpush1.msra.mxu0 %v2540
        %2562 = vmatprep.subr.mxu0 0.0
        %2563 = vmatpush1.msra.mxu0 %v2541
        %2564 = vmatprep.subr.mxu0 0.0
        %2565 = vmatpush1.msra.mxu0 %v2542
        %2566 = vmatprep.subr.mxu0 0.0
        %2567 = vmatpush1.msra.mxu0 %v2543
        %2568 = vmatprep.subr.mxu0 0.0
        %2569 = vmatpush1.msra.mxu0 %v2544
        %2570 = vmatprep.subr.mxu0 0.0
        %2571 = vmatpush1.msra.mxu0 %v2545
        %2572 = vmatprep.subr.mxu0 0.0
        %2573 = vmatpush1.msra.mxu0 %v2546
        %2574 = vmatprep.subr.mxu0 0.0
        %2575 = vmatpush1.msra.mxu0 0.0
        %2576 = vmatprep.subr.mxu0 0.0
        %2577 = vmatpush1.msra.mxu0 0.0
        %2578 = vmatprep.subr.mxu0 0.0
        %2579 = vmatpush1.msra.mxu0 0.0
        %2580 = vmatprep.subr.mxu0 0.0
        %2581 = vmatpush1.msra.mxu0 0.0
        %2582 = vmatprep.subr.mxu0 0.0
        %2583 = vmatpush1.msra.mxu0 0.0
        %2584 = vmatprep.subr.mxu0 0.0
        %2585 = vmatpush1.msra.mxu0 0.0
        %2586 = vmatprep.subr.mxu0 0.0
        %2587 = vmatpush1.msra.mxu0 0.0
        %2588 = vmatprep.subr.mxu0 0.0
        %2589 = vmatpush1.msra.mxu0 0.0
        %2590 = vmatprep.subr.mxu0 0.0
        %2591 = vmatpush1.msra.mxu0 0.0
        %2592 = vmatprep.subr.mxu0 0.0
        %2593 = vmatpush1.msra.mxu0 0.0
        %2594 = vmatprep.subr.mxu0 0.0
        %2595 = vmatpush1.msra.mxu0 0.0
        %2596 = vmatprep.subr.mxu0 0.0
        %2597 = vmatpush1.msra.mxu0 0.0
        %2598 = vmatprep.subr.mxu0 0.0
        %2599 = vmatpush1.msra.mxu0 0.0
        %2600 = vmatprep.subr.mxu0 0.0
        %2601 = vmatpush1.msra.mxu0 0.0
        %2602 = vmatprep.subr.mxu0 0.0
        %2603 = vmatpush1.msra.mxu0 0.0
        %2604 = vmatprep.subr.mxu0 0.0
        %2605 = vmatpush1.msra.mxu0 0.0
        %2606 = vmatprep.subr.mxu0 0.0
        %2607 = vmatpush1.msra.mxu0 0.0
        %2608 = vmatprep.subr.mxu0 0.0
        %2609 = vmatpush1.msra.mxu0 0.0
        %2610 = vmatprep.subr.mxu0 0.0
        %2611 = vmatpush1.msra.mxu0 0.0
        %2612 = vmatprep.subr.mxu0 0.0
        %2613 = vmatpush1.msra.mxu0 0.0
        %2614 = vmatprep.subr.mxu0 0.0
        %2615 = vmatpush1.msra.mxu0 0.0
        %2616 = vmatprep.subr.mxu0 0.0
        %2617 = vmatpush1.msra.mxu0 0.0
        %2618 = vmatprep.subr.mxu0 0.0
        %2619 = vmatpush1.msra.mxu0 0.0
        %2620 = vmatprep.subr.mxu0 0.0
        %2621 = vmatpush1.msra.mxu0 0.0
        %2622 = vmatprep.mubr.f32.mxu0 0.0
        %2623 = vmatmul.mubr.f32.gmra.mrb[0].mxu0 %v2553
        %v2624 = vpop.f32.mrb[0].mxu0
        %v2625 = vadd.f32 %v2550, %v2624
        %v2626 = vpop.f32.mrb[0].mxu0
        %2627 = vmatprep.mubr.f32.mxu0 0.0
        %2628 = vmatmul.mubr.f32.gmra.mrb[0].mxu0 %v2556
        %v2629 = vpop.f32.mrb[0].mxu0
        %v2630 = vadd.f32 %v2550, %v2629
        %v2631 = vpop.f32.mrb[0].mxu0
        %2632 = vdwg.mxu0
        %v2633 = vadd.f32 %v2401, %v2625
        %v2634 = vadd.f32 %v2402, %v2630
        %2635 = vst.msk [vmem:[#allocation2] sm:$0xff] %vm525, %v2633
        %2636 = vst.msk [vmem:[#allocation2 + $0x8] sm:$0xff] %vm525, %v2634
        %p2637 = scmp.eq.s32.totalorder %s28, 1
        // Predicated region
        $region73: #{tpu_custom_call.1} parent=55 // pred_check
          %p2638 = pneg %p2637
        $region74: #{tpu_custom_call.1} parent=55 // pred_check_branch
          %2640 = sbr.rel (%p2638) target = $region76
        $region75: #{tpu_custom_call.1} parent=55 // pred_region
          %v2641 = vld [vmem:[#allocation2] sm:$0xff]
          %v2642 = vld [vmem:[#allocation2 + $0x8] sm:$0xff]
          %2643 = vst.msk [vmem:[#allocation9] sm:$0xff] %vm525, %v2641
          %2644 = vst.msk [vmem:[#allocation9 + $0x8] sm:$0xff] %vm525, %v2642
        $region76: #{tpu_custom_call.1} parent=55 // pred_fallthru
          _
        // Predicated region
        $region77: #{tpu_custom_call.1} parent=55 // pred_check
          %p2645 = pneg %p287
        $region78: #{tpu_custom_call.1} parent=55 // pred_check_branch
          %2647 = sbr.rel (%p2645) target = $region80
        $region79: #{tpu_custom_call.1} parent=55 // pred_region
          %s2648 = smul.u32 2, %s27
          %s2650 = ssub.s32 256, 256
          %2651 = vsyncadd [#allocation5], %s2650
          %s2652 = smul.addr %s2648, 128
          %s2653 = scalar_lea.hbm %s9, %s2652
          %s2654 = sshll.u32 [#allocation9], 4
          %s2655 = int_to_ptr.vmem [resolvable:$true] %s2654
          %2660 = dma.vmem_to_hbm [thread:$0]  %s2655, 256, %s2653, [#allocation5], 128, 128, 8
        $region80: #{tpu_custom_call.1} parent=55 // pred_fallthru
          _
        // Predicated region
        $region81: #{tpu_custom_call.1} parent=55 // pred_check
          %p2661 = pneg %p287
        $region82: #{tpu_custom_call.1} parent=55 // pred_check_branch
          %2663 = sbr.rel (%p2661) target = $region84
        $region83: #{tpu_custom_call.1} parent=55 // pred_region
          %2664 = dma.done [#allocation5], 256
        $region84: #{tpu_custom_call.1} parent=55 // pred_fallthru
          _
      $region56: #{tpu_custom_call.1} parent=5 // pred_fallthru
        _
      %p2665 = scmp.le.s32.totalorder 2, %s18
      // Predicated region
      $region85: #{tpu_custom_call.1} parent=5 // pred_check
        %p2666 = pneg %p2665
      $region86: #{tpu_custom_call.1} parent=5 // pred_check_branch
        %2668 = sbr.rel (%p2666) target = $region88
      $region87: #{tpu_custom_call.1} parent=5 // pred_region
        %s2669 = ssub.s32 %s18, 2
      $region88: #{tpu_custom_call.1} parent=5 // pred_fallthru
        _
    $region6: #{tpu_custom_call.1} parent=1 // loop_footer
      %s22 = sadd.s32 1, %s18
    $region7: #{tpu_custom_call.1} parent=1 // loop_footer_branch
      %17 = sbr.rel target = $region3
    $region8: #{tpu_custom_call.1} parent=1 // loop_exit
      _
    %2670 = vsyncpa [#allocation4], 1
    %s2671 = scalar_lea.sflag [#allocation4], 1
    %2672 = vsyncpa %s2671, 1
    %2673 = vsyncpa [#allocation7], 1
    %2674 = vsyncpa [#allocation5], 1
    %s2675 = scalar_lea.sflag [#allocation5], 1
    %2676 = vsyncpa %s2675, 1

</llo_original>
